<compile_context>
chip_gen: v5e
topology: v5e:2x2
jax: 0.10.0
libtpu: 0.0.40
codegen_flags: <defaults>
</compile_context>

<pallas_src>
import functools

import jax
import jax.numpy as jnp
from jax.experimental import pallas as pl
from jax.experimental.pallas import tpu as pltpu

LANE = 128


def _round_up(v, m):
    return ((v + m - 1) // m) * m


# ------------------------------ kernel body -----------------------------------

def _sage_kernel(adj_ref, invdeg_ref, x_ref, w_ref, b_ref, o_ref, *,
                 tile_m, apply_relu):
    """One row stripe of:  out = [(A @ X) * inv_deg | X_stripe] @ [Wl ; Wr] + b."""
    i = pl.program_id(0)
    row0 = pl.multiple_of(i * tile_m, tile_m)

    adj = adj_ref[...]                                   # [TM, Np] bf16, streamed, no cast
    # Aggregation operand: small [Np, F] feature slab cast to bf16 so the big
    # matmul takes the native bf16 MXU path; accumulation stays f32.
    x_bf = x_ref[...].astype(jnp.bfloat16)
    aggr = jnp.dot(adj, x_bf, preferred_element_type=jnp.float32)
    aggr = aggr * invdeg_ref[...]                        # mean over in-neighbours

    # Root term: slice the resident f32 X (full precision, no second stream).
    x_self = x_ref[pl.ds(row0, tile_m), :]

    fused = jnp.concatenate([aggr, x_self], axis=-1)     # [TM, 2F] f32
    out = jnp.dot(fused, w_ref[...], preferred_element_type=jnp.float32)
    out = out + b_ref[...]
    if apply_relu:
        out = jnp.maximum(out, 0.0)
    o_ref[...] = out.astype(o_ref.dtype)


# ------------------------------ tile planning ----------------------------------

def _vmem_limit_bytes():
    try:
        cap = int(pltpu.get_tpu_info().vmem_capacity_bytes)
    except Exception:
        cap = 64 * 1024 * 1024                 # conservative (v7x per-TensorCore)
    return min((cap * 3) // 4, 100 * 1024 * 1024)


def _budget_tile_m(n_pad, f_in, f_out_pad, vmem_limit):
    # Resident (one copy each thanks to pl.Buffered(1)): X f32, the in-kernel
    # bf16 copy of X, stacked weight + bias.
    resident = n_pad * f_in * (4 + 2) + (2 * f_in + 1) * f_out_pad * 4
    # Bytes per stripe row: A stripe (bf16, 2 pipeline buffers), inv_deg block
    # (lane-padded, 2 buffers), output block (2 buffers), and the f32 in-kernel
    # temporaries (aggr / x_self / fused / out, lane-padded).
    per_row = (2 * n_pad * 2
               + 2 * LANE * 4
               + 2 * f_out_pad * 4
               + (4 * LANE + 2 * f_out_pad) * 4)
    budget = vmem_limit - resident - (4 << 20)
    budget = max(budget, 32 * per_row)
    tm = int(budget // per_row)
    tm = max(32, min(tm, n_pad, 2048))
    return tm - (tm % 32)


def _plan_tiles(n, f_in_max, f_out_pad_max, tile_m, vmem_limit):
    n_est = _round_up(n, LANE)
    if tile_m is None:
        tm0 = _budget_tile_m(n_est, f_in_max, f_out_pad_max, vmem_limit)
        stripes = pl.cdiv(n_est, tm0)
        tm = _round_up(pl.cdiv(n_est, stripes), 32)    # even stripes, minimal padding
    else:
        if tile_m % 32 != 0:
            raise ValueError("tile_m must be a multiple of 32")
        tm = tile_m
        stripes = pl.cdiv(n_est, tm)
    return tm, stripes, tm * stripes


# ------------------------------ layer wrapper ----------------------------------

def sage_conv_layer(x_pad, adj_bf16, inv_deg, w_stack, b_pad, *, tile_m,
                    apply_relu, vmem_limit, single_buffer_constants=True):
    n_pad, f_in = x_pad.shape
    f_out_pad = w_stack.shape[1]
    stripes = n_pad // tile_m

    const_kw = (dict(pipeline_mode=pl.Buffered(1))
                if single_buffer_constants else {})

    kernel = functools.partial(_sage_kernel, tile_m=tile_m, apply_relu=apply_relu)

    flops = (2 * n_pad * n_pad * f_in                 # aggregation matmul
             + 2 * n_pad * (2 * f_in) * f_out_pad     # fused projection
             + 2 * n_pad * f_out_pad)                 # bias / relu / scale
    bytes_accessed = (n_pad * n_pad * 2               # streamed A (bf16)
                      + n_pad * f_in * 4 + n_pad * 4  # X + inv_deg
                      + n_pad * f_out_pad * 4         # output
                      + (2 * f_in + 1) * f_out_pad * 4)

    return pl.pallas_call(
        kernel,
        out_shape=jax.ShapeDtypeStruct((n_pad, f_out_pad), jnp.float32),
        grid=(stripes,),
        in_specs=[
            pl.BlockSpec((tile_m, n_pad), lambda i: (i, 0)),                  # A stripe (streamed)
            pl.BlockSpec((tile_m, 1), lambda i: (i, 0)),                      # inv-degree stripe
            pl.BlockSpec((n_pad, f_in), lambda i: (0, 0), **const_kw),        # X, resident
            pl.BlockSpec((2 * f_in, f_out_pad), lambda i: (0, 0), **const_kw),  # [Wl ; Wr]
            pl.BlockSpec((1, f_out_pad), lambda i: (0, 0), **const_kw),       # bias
        ],
        out_specs=pl.BlockSpec((tile_m, f_out_pad), lambda i: (i, 0)),
        compiler_params=pltpu.CompilerParams(
            dimension_semantics=("parallel",),
            vmem_limit_bytes=int(vmem_limit)),
        cost_estimate=pl.CostEstimate(flops=int(flops), transcendentals=0,
                                      bytes_accessed=int(bytes_accessed)),
    )(adj_bf16, inv_deg, x_pad, w_stack, b_pad)


def _stack_and_pad(wl, wr, b, f_out_pad):
    f_out = wl.shape[1]
    w = jnp.concatenate([wl, wr], axis=0).astype(jnp.float32)     # [Wl ; Wr]
    w = jnp.pad(w, ((0, 0), (0, f_out_pad - f_out)))
    b2 = jnp.pad(jnp.reshape(b, (1, f_out)).astype(jnp.float32),
                 ((0, 0), (0, f_out_pad - f_out)))
    return w, b2


# -------------------------------- GNN forward ----------------------------------

def gnn_forward(x, edge_index, params, *, tile_m=None):
    """x: [N, F_in] f32; edge_index: [2, E] int32 (row0 = source j, row1 = dest i)."""
    n, f_in = x.shape
    hidden = params["w1l"].shape[1]
    out_c = params["w2l"].shape[1]

    vmem_limit = _vmem_limit_bytes()
    f_out_pad1 = _round_up(hidden, LANE)
    f_out_pad2 = _round_up(out_c, LANE)
    tm, _, n_pad = _plan_tiles(n, max(f_in, hidden), max(f_out_pad1, f_out_pad2),
                               tile_m, vmem_limit)

    # Glue (plain JAX): dense multiplicity adjacency (exact in bf16 for edge
    # counts <= 256) + inverse in-degree, built directly at the padded size.
    src, dst = edge_index[0], edge_index[1]
    adj = jnp.zeros((n_pad, n_pad), jnp.float32).at[dst, src].add(1.0)
    inv_deg = 1.0 / jnp.maximum(jnp.sum(adj, axis=1, keepdims=True), 1.0)
    adj_bf16 = adj.astype(jnp.bfloat16)
    x_pad = jnp.pad(x.astype(jnp.float32), ((0, n_pad - n), (0, 0)))

    w1, b1 = _stack_and_pad(params["w1l"], params["w1r"], params["b1"], f_out_pad1)
    w2, b2 = _stack_and_pad(params["w2l"], params["w2r"], params["b2"], f_out_pad2)

    def run(single_buf):
        h = sage_conv_layer(x_pad, adj_bf16, inv_deg, w1, b1, tile_m=tm,
                            apply_relu=True, vmem_limit=vmem_limit,
                            single_buffer_constants=single_buf)
        h = h[:, :hidden]                        # drop lane padding between layers
        out = sage_conv_layer(h, adj_bf16, inv_deg, w2, b2, tile_m=tm,
                              apply_relu=False, vmem_limit=vmem_limit,
                              single_buffer_constants=single_buf)
        return out[:n, :out_c]

    try:
        return jax.block_until_ready(run(True))
    except Exception:
        # pl.Buffered(1) rejected by this jax/libtpu: fall back to default buffering.
        return jax.block_until_ready(run(False))


def ref_forward(x, edge_index, params):
    """Pure-JAX f32 reference of the PyTorch/PyG forward."""
    n = x.shape[0]
    mm = functools.partial(jnp.matmul, precision=jax.lax.Precision.HIGHEST)
    adj = jnp.zeros((n, n), jnp.float32).at[edge_index[1], edge_index[0]].add(1.0)
    a = adj / jnp.maximum(adj.sum(axis=1, keepdims=True), 1.0)
    h = jax.nn.relu(mm(mm(a, x), params["w1l"]) + params["b1"] + mm(x, params["w1r"]))
    return mm(mm(a, h), params["w2l"]) + params["b2"] + mm(h, params["w2r"])


if __name__ == "__main__":
    # Small shapes consistent with the module: lazy in_channels -> 16,
    # hidden_channels=32, out_channels=16; N=512 nodes, E=2048 edges.
    N, E = 512, 2048
    in_c, hidden_c, out_c = 16, 32, 16

    key = jax.random.PRNGKey(0)
    k = jax.random.split(key, 8)

    x = jax.random.normal(k[0], (N, in_c), jnp.float32)
    src = jax.random.randint(k[1], (E,), 0, N, dtype=jnp.int32)
    dst = jax.random.randint(k[2], (E,), 0, N, dtype=jnp.int32)
    edge_index = jnp.stack([src, dst], axis=0)

    # SAGEConv params: lin_l has a bias, lin_r has none. Weights stored [F_in, F_out].
    params = {
        "w1l": 0.1 * jax.random.normal(k[3], (in_c, hidden_c), jnp.float32),
        "w1r": 0.1 * jax.random.normal(k[4], (in_c, hidden_c), jnp.float32),
        "b1":  0.01 * jnp.arange(hidden_c, dtype=jnp.float32).reshape(1, hidden_c),
        "w2l": 0.1 * jax.random.normal(k[5], (hidden_c, out_c), jnp.float32),
        "w2r": 0.1 * jax.random.normal(k[6], (hidden_c, out_c), jnp.float32),
        "b2":  0.01 * jnp.arange(out_c, dtype=jnp.float32).reshape(1, out_c),
    }

    # Auto-planned tiling (single stripe for this small config, per review).
    out = jax.block_until_ready(gnn_forward(x, edge_index, params))
    assert out.shape == (N, out_c)

    # Consistency check: forcing a 128-row stripe exercises the multi-stripe
    # pipeline and the in-kernel root slice; must match the single-stripe run.
    out_striped = jax.block_until_ready(gnn_forward(x, edge_index, params, tile_m=128))
    assert jnp.allclose(out, out_striped, atol=1e-4, rtol=1e-4), \
        f"striped mismatch (max abs err {float(jnp.max(jnp.abs(out - out_striped)))})"

    # Reference check. The aggregation matmul deliberately runs in bf16 on the
    # MXU (f32 accumulation); tolerance reflects that precision trade.
    ref = ref_forward(x, edge_index, params)
    max_err = float(jnp.max(jnp.abs(out - ref)))
    assert jnp.allclose(out, ref, atol=2e-2, rtol=2e-2), \
        f"mismatch vs reference (max abs err {max_err})"

    print("KERNEL_OK")
</pallas_src>

<mosaic_0001>
module attributes {stable_mosaic.version = 11 : i64} {
  func.func @_sage_kernel(%arg0: i32, %arg1: memref<512x512xbf16, #tpu.memory_space<vmem>>, %arg2: memref<512x1xf32, #tpu.memory_space<vmem>>, %arg3: memref<512x16xf32, #tpu.memory_space<vmem>>, %arg4: memref<32x128xf32, #tpu.memory_space<vmem>>, %arg5: memref<1x128xf32, #tpu.memory_space<vmem>>, %arg6: memref<512x128xf32, #tpu.memory_space<vmem>>) attributes {dimension_semantics = [#tpu.dimension_semantics<parallel>], iteration_bounds = array<i64: 1>, scalar_prefetch = 0 : i64, scratch_operands = 0 : i64, tpu.core_type = #tpu.core_type<tc>, window_params = [{transform_indices = @transform_0, window_bounds = array<i64: 512, 512>}, {transform_indices = @transform_1, window_bounds = array<i64: 512, 1>}, {pipeline_mode = #tpu.pipeline_mode<synchronous>, transform_indices = @transform_2, window_bounds = array<i64: 512, 16>}, {pipeline_mode = #tpu.pipeline_mode<synchronous>, transform_indices = @transform_3, window_bounds = array<i64: 32, 128>}, {pipeline_mode = #tpu.pipeline_mode<synchronous>, transform_indices = @transform_4, window_bounds = array<i64: 1, 128>}, {transform_indices = @transform_5, window_bounds = array<i64: 512, 128>}]} {
    %c512_i32 = arith.constant 512 : i32
    %0 = arith.muli %arg0, %c512_i32 : i32
    %1 = tpu.assume_multiple %0, 512 : i32
    %c0 = arith.constant 0 : index
    %c0_0 = arith.constant 0 : index
    %2 = vector.load %arg1[%c0, %c0_0] : memref<512x512xbf16, #tpu.memory_space<vmem>>, vector<512x512xbf16>
    %c0_1 = arith.constant 0 : index
    %c0_2 = arith.constant 0 : index
    %3 = vector.load %arg3[%c0_1, %c0_2] : memref<512x16xf32, #tpu.memory_space<vmem>>, vector<512x16xf32>
    %4 = arith.truncf %3 : vector<512x16xf32> to vector<512x16xbf16>
    %cst = arith.constant dense<0.000000e+00> : vector<512x16xf32>
    %5 = tpu.matmul %2, %4, %cst {dimension_numbers = #tpu.dot_dimension_numbers<[1], [0], [0], [1], [0, 0, 1, 1], [], []>} : vector<512x512xbf16>, vector<512x16xbf16>, vector<512x16xf32> -> vector<512x16xf32>
    %c0_3 = arith.constant 0 : index
    %c0_4 = arith.constant 0 : index
    %6 = vector.load %arg2[%c0_3, %c0_4] : memref<512x1xf32, #tpu.memory_space<vmem>>, vector<512x1xf32>
    %7 = vector.broadcast %6 : vector<512x1xf32> to vector<512x16xf32>
    %8 = arith.mulf %5, %7 : vector<512x16xf32>
    %9 = arith.index_cast %1 : i32 to index
    %c0_5 = arith.constant 0 : index
    %10 = vector.load %arg3[%9, %c0_5] : memref<512x16xf32, #tpu.memory_space<vmem>>, vector<512x16xf32>
    %11 = tpu.concatenate %8, %10 in 1 : vector<512x16xf32>, vector<512x16xf32> -> vector<512x32xf32>
    %c0_6 = arith.constant 0 : index
    %c0_7 = arith.constant 0 : index
    %12 = vector.load %arg4[%c0_6, %c0_7] : memref<32x128xf32, #tpu.memory_space<vmem>>, vector<32x128xf32>
    %cst_8 = arith.constant dense<0.000000e+00> : vector<512x128xf32>
    %13 = tpu.matmul %11, %12, %cst_8 {dimension_numbers = #tpu.dot_dimension_numbers<[1], [0], [0], [1], [0, 0, 1, 1], [], []>} : vector<512x32xf32>, vector<32x128xf32>, vector<512x128xf32> -> vector<512x128xf32>
    %c0_9 = arith.constant 0 : index
    %c0_10 = arith.constant 0 : index
    %14 = vector.load %arg5[%c0_9, %c0_10] : memref<1x128xf32, #tpu.memory_space<vmem>>, vector<1x128xf32>
    %15 = vector.broadcast %14 : vector<1x128xf32> to vector<512x128xf32>
    %16 = arith.addf %13, %15 : vector<512x128xf32>
    %cst_11 = arith.constant 0.000000e+00 : f32
    %17 = vector.broadcast %cst_11 : f32 to vector<512x128xf32>
    %18 = arith.maximumf %16, %17 : vector<512x128xf32>
    %c0_12 = arith.constant 0 : index
    %c0_13 = arith.constant 0 : index
    %19 = vector.load %arg6[%c0_12, %c0_13] : memref<512x128xf32, #tpu.memory_space<vmem>>, vector<512x128xf32>
    tpu.vector_store %arg6[%c0_12, %c0_13], %18 {strides = array<i32>} : memref<512x128xf32, #tpu.memory_space<vmem>>, vector<512x128xf32>,
    return
  }
  func.func @transform_0(%arg0: i32) -> (i32, i32) {
    %c0_i32 = arith.constant 0 : i32
    %c0_i32_0 = arith.constant 0 : i32
    return %arg0, %c0_i32 : i32, i32
  }
  func.func @transform_1(%arg0: i32) -> (i32, i32) {
    %c0_i32 = arith.constant 0 : i32
    %c0_i32_0 = arith.constant 0 : i32
    return %arg0, %c0_i32 : i32, i32
  }
  func.func @transform_2(%arg0: i32) -> (i32, i32) {
    %c0_i32 = arith.constant 0 : i32
    %c0_i32_0 = arith.constant 0 : i32
    %c0_i32_1 = arith.constant 0 : i32
    return %c0_i32, %c0_i32_0 : i32, i32
  }
  func.func @transform_3(%arg0: i32) -> (i32, i32) {
    %c0_i32 = arith.constant 0 : i32
    %c0_i32_0 = arith.constant 0 : i32
    %c0_i32_1 = arith.constant 0 : i32
    return %c0_i32, %c0_i32_0 : i32, i32
  }
  func.func @transform_4(%arg0: i32) -> (i32, i32) {
    %c0_i32 = arith.constant 0 : i32
    %c0_i32_0 = arith.constant 0 : i32
    %c0_i32_1 = arith.constant 0 : i32
    return %c0_i32, %c0_i32_0 : i32, i32
  }
  func.func @transform_5(%arg0: i32) -> (i32, i32) {
    %c0_i32 = arith.constant 0 : i32
    %c0_i32_0 = arith.constant 0 : i32
    return %arg0, %c0_i32 : i32, i32
  }
}

module attributes {stable_mosaic.version = 11 : i64} {
  func.func @_sage_kernel(%arg0: i32, %arg1: memref<512x512xbf16, #tpu.memory_space<vmem>>, %arg2: memref<512x1xf32, #tpu.memory_space<vmem>>, %arg3: memref<512x16xf32, #tpu.memory_space<vmem>>, %arg4: memref<32x128xf32, #tpu.memory_space<vmem>>, %arg5: memref<1x128xf32, #tpu.memory_space<vmem>>, %arg6: memref<512x128xf32, #tpu.memory_space<vmem>>) attributes {dimension_semantics = [#tpu.dimension_semantics<parallel>], iteration_bounds = array<i64: 1>, scalar_prefetch = 0 : i64, scratch_operands = 0 : i64, tpu.core_type = #tpu.core_type<tc>, window_params = [{transform_indices = @transform_0, window_bounds = array<i64: 512, 512>}, {transform_indices = @transform_1, window_bounds = array<i64: 512, 1>}, {pipeline_mode = #tpu.pipeline_mode<synchronous>, transform_indices = @transform_2, window_bounds = array<i64: 512, 16>}, {pipeline_mode = #tpu.pipeline_mode<synchronous>, transform_indices = @transform_3, window_bounds = array<i64: 32, 128>}, {pipeline_mode = #tpu.pipeline_mode<synchronous>, transform_indices = @transform_4, window_bounds = array<i64: 1, 128>}, {transform_indices = @transform_5, window_bounds = array<i64: 512, 128>}]} {
    %c512_i32 = arith.constant 512 : i32
    %0 = arith.muli %arg0, %c512_i32 : i32
    %1 = tpu.assume_multiple %0, 512 : i32
    %c0 = arith.constant 0 : index
    %c0_0 = arith.constant 0 : index
    %2 = vector.load %arg1[%c0, %c0_0] : memref<512x512xbf16, #tpu.memory_space<vmem>>, vector<512x512xbf16>
    %c0_1 = arith.constant 0 : index
    %c0_2 = arith.constant 0 : index
    %3 = vector.load %arg3[%c0_1, %c0_2] : memref<512x16xf32, #tpu.memory_space<vmem>>, vector<512x16xf32>
    %4 = arith.truncf %3 : vector<512x16xf32> to vector<512x16xbf16>
    %cst = arith.constant dense<0.000000e+00> : vector<512x16xf32>
    %5 = tpu.matmul %2, %4, %cst {dimension_numbers = #tpu.dot_dimension_numbers<[1], [0], [0], [1], [0, 0, 1, 1], [], []>} : vector<512x512xbf16>, vector<512x16xbf16>, vector<512x16xf32> -> vector<512x16xf32>
    %c0_3 = arith.constant 0 : index
    %c0_4 = arith.constant 0 : index
    %6 = vector.load %arg2[%c0_3, %c0_4] : memref<512x1xf32, #tpu.memory_space<vmem>>, vector<512x1xf32>
    %7 = vector.broadcast %6 : vector<512x1xf32> to vector<512x16xf32>
    %8 = arith.mulf %5, %7 : vector<512x16xf32>
    %9 = arith.index_cast %1 : i32 to index
    %c0_5 = arith.constant 0 : index
    %10 = vector.load %arg3[%9, %c0_5] : memref<512x16xf32, #tpu.memory_space<vmem>>, vector<512x16xf32>
    %11 = tpu.concatenate %8, %10 in 1 : vector<512x16xf32>, vector<512x16xf32> -> vector<512x32xf32>
    %c0_6 = arith.constant 0 : index
    %c0_7 = arith.constant 0 : index
    %12 = vector.load %arg4[%c0_6, %c0_7] : memref<32x128xf32, #tpu.memory_space<vmem>>, vector<32x128xf32>
    %cst_8 = arith.constant dense<0.000000e+00> : vector<512x128xf32>
    %13 = tpu.matmul %11, %12, %cst_8 {dimension_numbers = #tpu.dot_dimension_numbers<[1], [0], [0], [1], [0, 0, 1, 1], [], []>} : vector<512x32xf32>, vector<32x128xf32>, vector<512x128xf32> -> vector<512x128xf32>
    %c0_9 = arith.constant 0 : index
    %c0_10 = arith.constant 0 : index
    %14 = vector.load %arg5[%c0_9, %c0_10] : memref<1x128xf32, #tpu.memory_space<vmem>>, vector<1x128xf32>
    %15 = vector.broadcast %14 : vector<1x128xf32> to vector<512x128xf32>
    %16 = arith.addf %13, %15 : vector<512x128xf32>
    %cst_11 = arith.constant 0.000000e+00 : f32
    %17 = vector.broadcast %cst_11 : f32 to vector<512x128xf32>
    %18 = arith.maximumf %16, %17 : vector<512x128xf32>
    %c0_12 = arith.constant 0 : index
    %c0_13 = arith.constant 0 : index
    %19 = vector.load %arg6[%c0_12, %c0_13] : memref<512x128xf32, #tpu.memory_space<vmem>>, vector<512x128xf32>
    tpu.vector_store %arg6[%c0_12, %c0_13], %18 {strides = array<i32>} : memref<512x128xf32, #tpu.memory_space<vmem>>, vector<512x128xf32>,
    return
  }
  func.func @transform_0(%arg0: i32) -> (i32, i32) {
    %c0_i32 = arith.constant 0 : i32
    %c0_i32_0 = arith.constant 0 : i32
    return %arg0, %c0_i32 : i32, i32
  }
  func.func @transform_1(%arg0: i32) -> (i32, i32) {
    %c0_i32 = arith.constant 0 : i32
    %c0_i32_0 = arith.constant 0 : i32
    return %arg0, %c0_i32 : i32, i32
  }
  func.func @transform_2(%arg0: i32) -> (i32, i32) {
    %c0_i32 = arith.constant 0 : i32
    %c0_i32_0 = arith.constant 0 : i32
    %c0_i32_1 = arith.constant 0 : i32
    return %c0_i32, %c0_i32_0 : i32, i32
  }
  func.func @transform_3(%arg0: i32) -> (i32, i32) {
    %c0_i32 = arith.constant 0 : i32
    %c0_i32_0 = arith.constant 0 : i32
    %c0_i32_1 = arith.constant 0 : i32
    return %c0_i32, %c0_i32_0 : i32, i32
  }
  func.func @transform_4(%arg0: i32) -> (i32, i32) {
    %c0_i32 = arith.constant 0 : i32
    %c0_i32_0 = arith.constant 0 : i32
    %c0_i32_1 = arith.constant 0 : i32
    return %c0_i32, %c0_i32_0 : i32, i32
  }
  func.func @transform_5(%arg0: i32) -> (i32, i32) {
    %c0_i32 = arith.constant 0 : i32
    %c0_i32_0 = arith.constant 0 : i32
    return %arg0, %c0_i32 : i32, i32
  }
}

</mosaic_0001>

<llo_original>
// kernel: tpu_custom_call.1
$region0: #{tpu_custom_call.1}
  #allocation0 [shape = 'u32[]', space=smem, size = 0x4, offset = 0x4, fixed_abs, tag = 'smem constant byte address 0x4 - core index']
  #allocation1 [shape = 'u32[72,128]{1,0:T(1,128)}', space=vmem, size = 0x9000, scoped, tag = 'internal scratch']
  %s0 = inlined_call_operand.vmem [shape: bf16[512,512], index: 0, kind: input, shape index: {}]
  %s1 = inlined_call_operand.vmem [shape: f32[512,1], index: 1, kind: input, shape index: {}]
  %s2 = inlined_call_operand.vmem [shape: f32[512,16], index: 2, kind: input, shape index: {}]
  %s3 = inlined_call_operand.vmem [shape: f32[32,128], index: 3, kind: input, shape index: {}]
  %s4 = inlined_call_operand.vmem [shape: f32[1,128], index: 4, kind: input, shape index: {}]
  %s5 = inlined_call_operand.hbm [shape: f32[512,128], index: 5, kind: output, shape index: {}]
  %s6 = sld [smem:[#allocation0]]
  $region30: #{tpu_custom_call.1} parent=0
    _
  %s8 = ssub.s32 1, %s6
  %s9 = scalar_select 0, %s8, %s6
  $region1: #{tpu_custom_call.1} parent=0
    #allocation2 [shape = 'u8[262144]{0}', space=vmem, size = 0x40000, scoped, tag = 'output window, operand 0, single buffered']
    #allocation3 [shape = 's32[1]{0}', space=sflag, size = 0x4, scoped, tag = 'scoped memory for tpu_custom_call.1']
    %10 = vsyncpa [#allocation3], 0
    // Predicated region
    $region2: #{tpu_custom_call.1} parent=1 // pred_check
      _
    $region3: #{tpu_custom_call.1} parent=1 // pred_check_branch
      %12 = sbr.rel (0) target = $region5
    $region4: #{tpu_custom_call.1} parent=1 // pred_region
      _
    $region5: #{tpu_custom_call.1} parent=1 // pred_fallthru
      _
    // Predicated region
    $region6: #{tpu_custom_call.1} parent=1 // pred_check
      _
    $region7: #{tpu_custom_call.1} parent=1 // pred_check_branch
      %14 = sbr.rel (0) target = $region9
    $region8: #{tpu_custom_call.1} parent=1 // pred_region
      _
    $region9: #{tpu_custom_call.1} parent=1 // pred_fallthru
      _
    // Predicated region
    $region10: #{tpu_custom_call.1} parent=1 // pred_check
      _
    $region11: #{tpu_custom_call.1} parent=1 // pred_check_branch
      %16 = sbr.rel (0) target = $region13
    $region12: #{tpu_custom_call.1} parent=1 // pred_region
      _
    $region13: #{tpu_custom_call.1} parent=1 // pred_fallthru
      _
    // Predicated region
    $region14: #{tpu_custom_call.1} parent=1 // pred_check
      _
    $region15: #{tpu_custom_call.1} parent=1 // pred_check_branch
      %18 = sbr.rel (0) target = $region17
    $region16: #{tpu_custom_call.1} parent=1 // pred_region
      _
    $region17: #{tpu_custom_call.1} parent=1 // pred_fallthru
      _
    // Predicated region
    $region18: #{tpu_custom_call.1} parent=1 // pred_check
      _
    $region19: #{tpu_custom_call.1} parent=1 // pred_check_branch
      %20 = sbr.rel (0) target = $region21
    $region20: #{tpu_custom_call.1} parent=1 // pred_region
      _
    $region21: #{tpu_custom_call.1} parent=1 // pred_fallthru
      _
    %s21 = smul.u32 0, 512
    %v22 = vld [vmem:[%s0] sm:$0xff]
    %v23 = vld [vmem:[%s0 + $0x8] sm:$0xff]
    %v24 = vld [vmem:[%s0 + $0x10] sm:$0xff]
    %v25 = vld [vmem:[%s0 + $0x18] sm:$0xff]
    %v26 = vld [vmem:[%s0 + $0x20] sm:$0xff]
    %v27 = vld [vmem:[%s0 + $0x28] sm:$0xff]
    %v28 = vld [vmem:[%s0 + $0x30] sm:$0xff]
    %v29 = vld [vmem:[%s0 + $0x38] sm:$0xff]
    %v30 = vld [vmem:[%s0 + $0x40] sm:$0xff]
    %v31 = vld [vmem:[%s0 + $0x48] sm:$0xff]
    %v32 = vld [vmem:[%s0 + $0x50] sm:$0xff]
    %v33 = vld [vmem:[%s0 + $0x58] sm:$0xff]
    %v34 = vld [vmem:[%s0 + $0x60] sm:$0xff]
    %v35 = vld [vmem:[%s0 + $0x68] sm:$0xff]
    %v36 = vld [vmem:[%s0 + $0x70] sm:$0xff]
    %v37 = vld [vmem:[%s0 + $0x78] sm:$0xff]
    %v38 = vld [vmem:[%s0 + $0x80] sm:$0xff]
    %v39 = vld [vmem:[%s0 + $0x88] sm:$0xff]
    %v40 = vld [vmem:[%s0 + $0x90] sm:$0xff]
    %v41 = vld [vmem:[%s0 + $0x98] sm:$0xff]
    %v42 = vld [vmem:[%s0 + $0xa0] sm:$0xff]
    %v43 = vld [vmem:[%s0 + $0xa8] sm:$0xff]
    %v44 = vld [vmem:[%s0 + $0xb0] sm:$0xff]
    %v45 = vld [vmem:[%s0 + $0xb8] sm:$0xff]
    %v46 = vld [vmem:[%s0 + $0xc0] sm:$0xff]
    %v47 = vld [vmem:[%s0 + $0xc8] sm:$0xff]
    %v48 = vld [vmem:[%s0 + $0xd0] sm:$0xff]
    %v49 = vld [vmem:[%s0 + $0xd8] sm:$0xff]
    %v50 = vld [vmem:[%s0 + $0xe0] sm:$0xff]
    %v51 = vld [vmem:[%s0 + $0xe8] sm:$0xff]
    %v52 = vld [vmem:[%s0 + $0xf0] sm:$0xff]
    %v53 = vld [vmem:[%s0 + $0xf8] sm:$0xff]
    %v54 = vld [vmem:[%s0 + $0x100] sm:$0xff]
    %v55 = vld [vmem:[%s0 + $0x108] sm:$0xff]
    %v56 = vld [vmem:[%s0 + $0x110] sm:$0xff]
    %v57 = vld [vmem:[%s0 + $0x118] sm:$0xff]
    %v58 = vld [vmem:[%s0 + $0x120] sm:$0xff]
    %v59 = vld [vmem:[%s0 + $0x128] sm:$0xff]
    %v60 = vld [vmem:[%s0 + $0x130] sm:$0xff]
    %v61 = vld [vmem:[%s0 + $0x138] sm:$0xff]
    %v62 = vld [vmem:[%s0 + $0x140] sm:$0xff]
    %v63 = vld [vmem:[%s0 + $0x148] sm:$0xff]
    %v64 = vld [vmem:[%s0 + $0x150] sm:$0xff]
    %v65 = vld [vmem:[%s0 + $0x158] sm:$0xff]
    %v66 = vld [vmem:[%s0 + $0x160] sm:$0xff]
    %v67 = vld [vmem:[%s0 + $0x168] sm:$0xff]
    %v68 = vld [vmem:[%s0 + $0x170] sm:$0xff]
    %v69 = vld [vmem:[%s0 + $0x178] sm:$0xff]
    %v70 = vld [vmem:[%s0 + $0x180] sm:$0xff]
    %v71 = vld [vmem:[%s0 + $0x188] sm:$0xff]
    %v72 = vld [vmem:[%s0 + $0x190] sm:$0xff]
    %v73 = vld [vmem:[%s0 + $0x198] sm:$0xff]
    %v74 = vld [vmem:[%s0 + $0x1a0] sm:$0xff]
    %v75 = vld [vmem:[%s0 + $0x1a8] sm:$0xff]
    %v76 = vld [vmem:[%s0 + $0x1b0] sm:$0xff]
    %v77 = vld [vmem:[%s0 + $0x1b8] sm:$0xff]
    %v78 = vld [vmem:[%s0 + $0x1c0] sm:$0xff]
    %v79 = vld [vmem:[%s0 + $0x1c8] sm:$0xff]
    %v80 = vld [vmem:[%s0 + $0x1d0] sm:$0xff]
    %v81 = vld [vmem:[%s0 + $0x1d8] sm:$0xff]
    %v82 = vld [vmem:[%s0 + $0x1e0] sm:$0xff]
    %v83 = vld [vmem:[%s0 + $0x1e8] sm:$0xff]
    %v84 = vld [vmem:[%s0 + $0x1f0] sm:$0xff]
    %v85 = vld [vmem:[%s0 + $0x1f8] sm:$0xff]
    %v86 = vld [vmem:[%s0 + $0x200] sm:$0xff]
    %v87 = vld [vmem:[%s0 + $0x208] sm:$0xff]
    %v88 = vld [vmem:[%s0 + $0x210] sm:$0xff]
    %v89 = vld [vmem:[%s0 + $0x218] sm:$0xff]
    %v90 = vld [vmem:[%s0 + $0x220] sm:$0xff]
    %v91 = vld [vmem:[%s0 + $0x228] sm:$0xff]
    %v92 = vld [vmem:[%s0 + $0x230] sm:$0xff]
    %v93 = vld [vmem:[%s0 + $0x238] sm:$0xff]
    %v94 = vld [vmem:[%s0 + $0x240] sm:$0xff]
    %v95 = vld [vmem:[%s0 + $0x248] sm:$0xff]
    %v96 = vld [vmem:[%s0 + $0x250] sm:$0xff]
    %v97 = vld [vmem:[%s0 + $0x258] sm:$0xff]
    %v98 = vld [vmem:[%s0 + $0x260] sm:$0xff]
    %v99 = vld [vmem:[%s0 + $0x268] sm:$0xff]
    %v100 = vld [vmem:[%s0 + $0x270] sm:$0xff]
    %v101 = vld [vmem:[%s0 + $0x278] sm:$0xff]
    %v102 = vld [vmem:[%s0 + $0x280] sm:$0xff]
    %v103 = vld [vmem:[%s0 + $0x288] sm:$0xff]
    %v104 = vld [vmem:[%s0 + $0x290] sm:$0xff]
    %v105 = vld [vmem:[%s0 + $0x298] sm:$0xff]
    %v106 = vld [vmem:[%s0 + $0x2a0] sm:$0xff]
    %v107 = vld [vmem:[%s0 + $0x2a8] sm:$0xff]
    %v108 = vld [vmem:[%s0 + $0x2b0] sm:$0xff]
    %v109 = vld [vmem:[%s0 + $0x2b8] sm:$0xff]
    %v110 = vld [vmem:[%s0 + $0x2c0] sm:$0xff]
    %v111 = vld [vmem:[%s0 + $0x2c8] sm:$0xff]
    %v112 = vld [vmem:[%s0 + $0x2d0] sm:$0xff]
    %v113 = vld [vmem:[%s0 + $0x2d8] sm:$0xff]
    %v114 = vld [vmem:[%s0 + $0x2e0] sm:$0xff]
    %v115 = vld [vmem:[%s0 + $0x2e8] sm:$0xff]
    %v116 = vld [vmem:[%s0 + $0x2f0] sm:$0xff]
    %v117 = vld [vmem:[%s0 + $0x2f8] sm:$0xff]
    %v118 = vld [vmem:[%s0 + $0x300] sm:$0xff]
    %v119 = vld [vmem:[%s0 + $0x308] sm:$0xff]
    %v120 = vld [vmem:[%s0 + $0x310] sm:$0xff]
    %v121 = vld [vmem:[%s0 + $0x318] sm:$0xff]
    %v122 = vld [vmem:[%s0 + $0x320] sm:$0xff]
    %v123 = vld [vmem:[%s0 + $0x328] sm:$0xff]
    %v124 = vld [vmem:[%s0 + $0x330] sm:$0xff]
    %v125 = vld [vmem:[%s0 + $0x338] sm:$0xff]
    %v126 = vld [vmem:[%s0 + $0x340] sm:$0xff]
    %v127 = vld [vmem:[%s0 + $0x348] sm:$0xff]
    %v128 = vld [vmem:[%s0 + $0x350] sm:$0xff]
    %v129 = vld [vmem:[%s0 + $0x358] sm:$0xff]
    %v130 = vld [vmem:[%s0 + $0x360] sm:$0xff]
    %v131 = vld [vmem:[%s0 + $0x368] sm:$0xff]
    %v132 = vld [vmem:[%s0 + $0x370] sm:$0xff]
    %v133 = vld [vmem:[%s0 + $0x378] sm:$0xff]
    %v134 = vld [vmem:[%s0 + $0x380] sm:$0xff]
    %v135 = vld [vmem:[%s0 + $0x388] sm:$0xff]
    %v136 = vld [vmem:[%s0 + $0x390] sm:$0xff]
    %v137 = vld [vmem:[%s0 + $0x398] sm:$0xff]
    %v138 = vld [vmem:[%s0 + $0x3a0] sm:$0xff]
    %v139 = vld [vmem:[%s0 + $0x3a8] sm:$0xff]
    %v140 = vld [vmem:[%s0 + $0x3b0] sm:$0xff]
    %v141 = vld [vmem:[%s0 + $0x3b8] sm:$0xff]
    %v142 = vld [vmem:[%s0 + $0x3c0] sm:$0xff]
    %v143 = vld [vmem:[%s0 + $0x3c8] sm:$0xff]
    %v144 = vld [vmem:[%s0 + $0x3d0] sm:$0xff]
    %v145 = vld [vmem:[%s0 + $0x3d8] sm:$0xff]
    %v146 = vld [vmem:[%s0 + $0x3e0] sm:$0xff]
    %v147 = vld [vmem:[%s0 + $0x3e8] sm:$0xff]
    %v148 = vld [vmem:[%s0 + $0x3f0] sm:$0xff]
    %v149 = vld [vmem:[%s0 + $0x3f8] sm:$0xff]
    %v150 = vld [vmem:[%s2] sm:$0xff]
    %v151 = vld [vmem:[%s2 + $0x8] sm:$0xff]
    %v152 = vld [vmem:[%s2 + $0x10] sm:$0xff]
    %v153 = vld [vmem:[%s2 + $0x18] sm:$0xff]
    %v154 = vld [vmem:[%s2 + $0x20] sm:$0xff]
    %v155 = vld [vmem:[%s2 + $0x28] sm:$0xff]
    %v156 = vld [vmem:[%s2 + $0x30] sm:$0xff]
    %v157 = vld [vmem:[%s2 + $0x38] sm:$0xff]
    %v158 = vld [vmem:[%s2 + $0x40] sm:$0xff]
    %v159 = vld [vmem:[%s2 + $0x48] sm:$0xff]
    %v160 = vld [vmem:[%s2 + $0x50] sm:$0xff]
    %v161 = vld [vmem:[%s2 + $0x58] sm:$0xff]
    %v162 = vld [vmem:[%s2 + $0x60] sm:$0xff]
    %v163 = vld [vmem:[%s2 + $0x68] sm:$0xff]
    %v164 = vld [vmem:[%s2 + $0x70] sm:$0xff]
    %v165 = vld [vmem:[%s2 + $0x78] sm:$0xff]
    %v166 = vld [vmem:[%s2 + $0x80] sm:$0xff]
    %v167 = vld [vmem:[%s2 + $0x88] sm:$0xff]
    %v168 = vld [vmem:[%s2 + $0x90] sm:$0xff]
    %v169 = vld [vmem:[%s2 + $0x98] sm:$0xff]
    %v170 = vld [vmem:[%s2 + $0xa0] sm:$0xff]
    %v171 = vld [vmem:[%s2 + $0xa8] sm:$0xff]
    %v172 = vld [vmem:[%s2 + $0xb0] sm:$0xff]
    %v173 = vld [vmem:[%s2 + $0xb8] sm:$0xff]
    %v174 = vld [vmem:[%s2 + $0xc0] sm:$0xff]
    %v175 = vld [vmem:[%s2 + $0xc8] sm:$0xff]
    %v176 = vld [vmem:[%s2 + $0xd0] sm:$0xff]
    %v177 = vld [vmem:[%s2 + $0xd8] sm:$0xff]
    %v178 = vld [vmem:[%s2 + $0xe0] sm:$0xff]
    %v179 = vld [vmem:[%s2 + $0xe8] sm:$0xff]
    %v180 = vld [vmem:[%s2 + $0xf0] sm:$0xff]
    %v181 = vld [vmem:[%s2 + $0xf8] sm:$0xff]
    %v182 = vld [vmem:[%s2 + $0x100] sm:$0xff]
    %v183 = vld [vmem:[%s2 + $0x108] sm:$0xff]
    %v184 = vld [vmem:[%s2 + $0x110] sm:$0xff]
    %v185 = vld [vmem:[%s2 + $0x118] sm:$0xff]
    %v186 = vld [vmem:[%s2 + $0x120] sm:$0xff]
    %v187 = vld [vmem:[%s2 + $0x128] sm:$0xff]
    %v188 = vld [vmem:[%s2 + $0x130] sm:$0xff]
    %v189 = vld [vmem:[%s2 + $0x138] sm:$0xff]
    %v190 = vld [vmem:[%s2 + $0x140] sm:$0xff]
    %v191 = vld [vmem:[%s2 + $0x148] sm:$0xff]
    %v192 = vld [vmem:[%s2 + $0x150] sm:$0xff]
    %v193 = vld [vmem:[%s2 + $0x158] sm:$0xff]
    %v194 = vld [vmem:[%s2 + $0x160] sm:$0xff]
    %v195 = vld [vmem:[%s2 + $0x168] sm:$0xff]
    %v196 = vld [vmem:[%s2 + $0x170] sm:$0xff]
    %v197 = vld [vmem:[%s2 + $0x178] sm:$0xff]
    %v198 = vld [vmem:[%s2 + $0x180] sm:$0xff]
    %v199 = vld [vmem:[%s2 + $0x188] sm:$0xff]
    %v200 = vld [vmem:[%s2 + $0x190] sm:$0xff]
    %v201 = vld [vmem:[%s2 + $0x198] sm:$0xff]
    %v202 = vld [vmem:[%s2 + $0x1a0] sm:$0xff]
    %v203 = vld [vmem:[%s2 + $0x1a8] sm:$0xff]
    %v204 = vld [vmem:[%s2 + $0x1b0] sm:$0xff]
    %v205 = vld [vmem:[%s2 + $0x1b8] sm:$0xff]
    %v206 = vld [vmem:[%s2 + $0x1c0] sm:$0xff]
    %v207 = vld [vmem:[%s2 + $0x1c8] sm:$0xff]
    %v208 = vld [vmem:[%s2 + $0x1d0] sm:$0xff]
    %v209 = vld [vmem:[%s2 + $0x1d8] sm:$0xff]
    %v210 = vld [vmem:[%s2 + $0x1e0] sm:$0xff]
    %v211 = vld [vmem:[%s2 + $0x1e8] sm:$0xff]
    %v212 = vld [vmem:[%s2 + $0x1f0] sm:$0xff]
    %v213 = vld [vmem:[%s2 + $0x1f8] sm:$0xff]
    %v214 = vpack.c.bf16 %v151, %v150
    %v215 = vpack.c.bf16 %v153, %v152
    %v216 = vpack.c.bf16 %v155, %v154
    %v217 = vpack.c.bf16 %v157, %v156
    %v218 = vpack.c.bf16 %v159, %v158
    %v219 = vpack.c.bf16 %v161, %v160
    %v220 = vpack.c.bf16 %v163, %v162
    %v221 = vpack.c.bf16 %v165, %v164
    %v222 = vpack.c.bf16 %v167, %v166
    %v223 = vpack.c.bf16 %v169, %v168
    %v224 = vpack.c.bf16 %v171, %v170
    %v225 = vpack.c.bf16 %v173, %v172
    %v226 = vpack.c.bf16 %v175, %v174
    %v227 = vpack.c.bf16 %v177, %v176
    %v228 = vpack.c.bf16 %v179, %v178
    %v229 = vpack.c.bf16 %v181, %v180
    %v230 = vpack.c.bf16 %v183, %v182
    %v231 = vpack.c.bf16 %v185, %v184
    %v232 = vpack.c.bf16 %v187, %v186
    %v233 = vpack.c.bf16 %v189, %v188
    %v234 = vpack.c.bf16 %v191, %v190
    %v235 = vpack.c.bf16 %v193, %v192
    %v236 = vpack.c.bf16 %v195, %v194
    %v237 = vpack.c.bf16 %v197, %v196
    %v238 = vpack.c.bf16 %v199, %v198
    %v239 = vpack.c.bf16 %v201, %v200
    %v240 = vpack.c.bf16 %v203, %v202
    %v241 = vpack.c.bf16 %v205, %v204
    %v242 = vpack.c.bf16 %v207, %v206
    %v243 = vpack.c.bf16 %v209, %v208
    %v244 = vpack.c.bf16 %v211, %v210
    %v245 = vpack.c.bf16 %v213, %v212
    %v374 = vunpack.c.l.b16 %v22
    %v375 = vunpack.c.h.b16 %v22
    %v376 = vunpack.c.l.b16 %v23
    %v377 = vunpack.c.h.b16 %v23
    %v378 = vunpack.c.l.b16 %v24
    %v379 = vunpack.c.h.b16 %v24
    %v380 = vunpack.c.l.b16 %v25
    %v381 = vunpack.c.h.b16 %v25
    %v382 = vunpack.c.l.b16 %v26
    %v383 = vunpack.c.h.b16 %v26
    %v384 = vunpack.c.l.b16 %v27
    %v385 = vunpack.c.h.b16 %v27
    %v386 = vunpack.c.l.b16 %v28
    %v387 = vunpack.c.h.b16 %v28
    %v388 = vunpack.c.l.b16 %v29
    %v389 = vunpack.c.h.b16 %v29
    %v390 = vunpack.c.l.b16 %v30
    %v391 = vunpack.c.h.b16 %v30
    %v392 = vunpack.c.l.b16 %v31
    %v393 = vunpack.c.h.b16 %v31
    %v394 = vunpack.c.l.b16 %v32
    %v395 = vunpack.c.h.b16 %v32
    %v396 = vunpack.c.l.b16 %v33
    %v397 = vunpack.c.h.b16 %v33
    %v398 = vunpack.c.l.b16 %v34
    %v399 = vunpack.c.h.b16 %v34
    %v400 = vunpack.c.l.b16 %v35
    %v401 = vunpack.c.h.b16 %v35
    %v402 = vunpack.c.l.b16 %v36
    %v403 = vunpack.c.h.b16 %v36
    %v404 = vunpack.c.l.b16 %v37
    %v405 = vunpack.c.h.b16 %v37
    %v406 = vunpack.c.l.b16 %v38
    %v407 = vunpack.c.h.b16 %v38
    %v408 = vunpack.c.l.b16 %v39
    %v409 = vunpack.c.h.b16 %v39
    %v410 = vunpack.c.l.b16 %v40
    %v411 = vunpack.c.h.b16 %v40
    %v412 = vunpack.c.l.b16 %v41
    %v413 = vunpack.c.h.b16 %v41
    %v414 = vunpack.c.l.b16 %v42
    %v415 = vunpack.c.h.b16 %v42
    %v416 = vunpack.c.l.b16 %v43
    %v417 = vunpack.c.h.b16 %v43
    %v418 = vunpack.c.l.b16 %v44
    %v419 = vunpack.c.h.b16 %v44
    %v420 = vunpack.c.l.b16 %v45
    %v421 = vunpack.c.h.b16 %v45
    %v422 = vunpack.c.l.b16 %v46
    %v423 = vunpack.c.h.b16 %v46
    %v424 = vunpack.c.l.b16 %v47
    %v425 = vunpack.c.h.b16 %v47
    %v426 = vunpack.c.l.b16 %v48
    %v427 = vunpack.c.h.b16 %v48
    %v428 = vunpack.c.l.b16 %v49
    %v429 = vunpack.c.h.b16 %v49
    %v430 = vunpack.c.l.b16 %v50
    %v431 = vunpack.c.h.b16 %v50
    %v432 = vunpack.c.l.b16 %v51
    %v433 = vunpack.c.h.b16 %v51
    %v434 = vunpack.c.l.b16 %v52
    %v435 = vunpack.c.h.b16 %v52
    %v436 = vunpack.c.l.b16 %v53
    %v437 = vunpack.c.h.b16 %v53
    %v438 = vunpack.c.l.b16 %v54
    %v439 = vunpack.c.h.b16 %v54
    %v440 = vunpack.c.l.b16 %v55
    %v441 = vunpack.c.h.b16 %v55
    %v442 = vunpack.c.l.b16 %v56
    %v443 = vunpack.c.h.b16 %v56
    %v444 = vunpack.c.l.b16 %v57
    %v445 = vunpack.c.h.b16 %v57
    %v446 = vunpack.c.l.b16 %v58
    %v447 = vunpack.c.h.b16 %v58
    %v448 = vunpack.c.l.b16 %v59
    %v449 = vunpack.c.h.b16 %v59
    %v450 = vunpack.c.l.b16 %v60
    %v451 = vunpack.c.h.b16 %v60
    %v452 = vunpack.c.l.b16 %v61
    %v453 = vunpack.c.h.b16 %v61
    %v454 = vunpack.c.l.b16 %v62
    %v455 = vunpack.c.h.b16 %v62
    %v456 = vunpack.c.l.b16 %v63
    %v457 = vunpack.c.h.b16 %v63
    %v458 = vunpack.c.l.b16 %v64
    %v459 = vunpack.c.h.b16 %v64
    %v460 = vunpack.c.l.b16 %v65
    %v461 = vunpack.c.h.b16 %v65
    %v462 = vunpack.c.l.b16 %v66
    %v463 = vunpack.c.h.b16 %v66
    %v464 = vunpack.c.l.b16 %v67
    %v465 = vunpack.c.h.b16 %v67
    %v466 = vunpack.c.l.b16 %v68
    %v467 = vunpack.c.h.b16 %v68
    %v468 = vunpack.c.l.b16 %v69
    %v469 = vunpack.c.h.b16 %v69
    %v470 = vunpack.c.l.b16 %v70
    %v471 = vunpack.c.h.b16 %v70
    %v472 = vunpack.c.l.b16 %v71
    %v473 = vunpack.c.h.b16 %v71
    %v474 = vunpack.c.l.b16 %v72
    %v475 = vunpack.c.h.b16 %v72
    %v476 = vunpack.c.l.b16 %v73
    %v477 = vunpack.c.h.b16 %v73
    %v478 = vunpack.c.l.b16 %v74
    %v479 = vunpack.c.h.b16 %v74
    %v480 = vunpack.c.l.b16 %v75
    %v481 = vunpack.c.h.b16 %v75
    %v482 = vunpack.c.l.b16 %v76
    %v483 = vunpack.c.h.b16 %v76
    %v484 = vunpack.c.l.b16 %v77
    %v485 = vunpack.c.h.b16 %v77
    %v486 = vunpack.c.l.b16 %v78
    %v487 = vunpack.c.h.b16 %v78
    %v488 = vunpack.c.l.b16 %v79
    %v489 = vunpack.c.h.b16 %v79
    %v490 = vunpack.c.l.b16 %v80
    %v491 = vunpack.c.h.b16 %v80
    %v492 = vunpack.c.l.b16 %v81
    %v493 = vunpack.c.h.b16 %v81
    %v494 = vunpack.c.l.b16 %v82
    %v495 = vunpack.c.h.b16 %v82
    %v496 = vunpack.c.l.b16 %v83
    %v497 = vunpack.c.h.b16 %v83
    %v498 = vunpack.c.l.b16 %v84
    %v499 = vunpack.c.h.b16 %v84
    %v500 = vunpack.c.l.b16 %v85
    %v501 = vunpack.c.h.b16 %v85
    %v502 = vunpack.c.l.b16 %v86
    %v503 = vunpack.c.h.b16 %v86
    %v504 = vunpack.c.l.b16 %v87
    %v505 = vunpack.c.h.b16 %v87
    %v506 = vunpack.c.l.b16 %v88
    %v507 = vunpack.c.h.b16 %v88
    %v508 = vunpack.c.l.b16 %v89
    %v509 = vunpack.c.h.b16 %v89
    %v510 = vunpack.c.l.b16 %v90
    %v511 = vunpack.c.h.b16 %v90
    %v512 = vunpack.c.l.b16 %v91
    %v513 = vunpack.c.h.b16 %v91
    %v514 = vunpack.c.l.b16 %v92
    %v515 = vunpack.c.h.b16 %v92
    %v516 = vunpack.c.l.b16 %v93
    %v517 = vunpack.c.h.b16 %v93
    %v518 = vunpack.c.l.b16 %v94
    %v519 = vunpack.c.h.b16 %v94
    %v520 = vunpack.c.l.b16 %v95
    %v521 = vunpack.c.h.b16 %v95
    %v522 = vunpack.c.l.b16 %v96
    %v523 = vunpack.c.h.b16 %v96
    %v524 = vunpack.c.l.b16 %v97
    %v525 = vunpack.c.h.b16 %v97
    %v526 = vunpack.c.l.b16 %v98
    %v527 = vunpack.c.h.b16 %v98
    %v528 = vunpack.c.l.b16 %v99
    %v529 = vunpack.c.h.b16 %v99
    %v530 = vunpack.c.l.b16 %v100
    %v531 = vunpack.c.h.b16 %v100
    %v532 = vunpack.c.l.b16 %v101
    %v533 = vunpack.c.h.b16 %v101
    %v534 = vunpack.c.l.b16 %v102
    %v535 = vunpack.c.h.b16 %v102
    %v536 = vunpack.c.l.b16 %v103
    %v537 = vunpack.c.h.b16 %v103
    %v538 = vunpack.c.l.b16 %v104
    %v539 = vunpack.c.h.b16 %v104
    %v540 = vunpack.c.l.b16 %v105
    %v541 = vunpack.c.h.b16 %v105
    %v542 = vunpack.c.l.b16 %v106
    %v543 = vunpack.c.h.b16 %v106
    %v544 = vunpack.c.l.b16 %v107
    %v545 = vunpack.c.h.b16 %v107
    %v546 = vunpack.c.l.b16 %v108
    %v547 = vunpack.c.h.b16 %v108
    %v548 = vunpack.c.l.b16 %v109
    %v549 = vunpack.c.h.b16 %v109
    %v550 = vunpack.c.l.b16 %v110
    %v551 = vunpack.c.h.b16 %v110
    %v552 = vunpack.c.l.b16 %v111
    %v553 = vunpack.c.h.b16 %v111
    %v554 = vunpack.c.l.b16 %v112
    %v555 = vunpack.c.h.b16 %v112
    %v556 = vunpack.c.l.b16 %v113
    %v557 = vunpack.c.h.b16 %v113
    %v558 = vunpack.c.l.b16 %v114
    %v559 = vunpack.c.h.b16 %v114
    %v560 = vunpack.c.l.b16 %v115
    %v561 = vunpack.c.h.b16 %v115
    %v562 = vunpack.c.l.b16 %v116
    %v563 = vunpack.c.h.b16 %v116
    %v564 = vunpack.c.l.b16 %v117
    %v565 = vunpack.c.h.b16 %v117
    %v566 = vunpack.c.l.b16 %v118
    %v567 = vunpack.c.h.b16 %v118
    %v568 = vunpack.c.l.b16 %v119
    %v569 = vunpack.c.h.b16 %v119
    %v570 = vunpack.c.l.b16 %v120
    %v571 = vunpack.c.h.b16 %v120
    %v572 = vunpack.c.l.b16 %v121
    %v573 = vunpack.c.h.b16 %v121
    %v574 = vunpack.c.l.b16 %v122
    %v575 = vunpack.c.h.b16 %v122
    %v576 = vunpack.c.l.b16 %v123
    %v577 = vunpack.c.h.b16 %v123
    %v578 = vunpack.c.l.b16 %v124
    %v579 = vunpack.c.h.b16 %v124
    %v580 = vunpack.c.l.b16 %v125
    %v581 = vunpack.c.h.b16 %v125
    %v582 = vunpack.c.l.b16 %v126
    %v583 = vunpack.c.h.b16 %v126
    %v584 = vunpack.c.l.b16 %v127
    %v585 = vunpack.c.h.b16 %v127
    %v586 = vunpack.c.l.b16 %v128
    %v587 = vunpack.c.h.b16 %v128
    %v588 = vunpack.c.l.b16 %v129
    %v589 = vunpack.c.h.b16 %v129
    %v590 = vunpack.c.l.b16 %v130
    %v591 = vunpack.c.h.b16 %v130
    %v592 = vunpack.c.l.b16 %v131
    %v593 = vunpack.c.h.b16 %v131
    %v594 = vunpack.c.l.b16 %v132
    %v595 = vunpack.c.h.b16 %v132
    %v596 = vunpack.c.l.b16 %v133
    %v597 = vunpack.c.h.b16 %v133
    %v598 = vunpack.c.l.b16 %v134
    %v599 = vunpack.c.h.b16 %v134
    %v600 = vunpack.c.l.b16 %v135
    %v601 = vunpack.c.h.b16 %v135
    %v602 = vunpack.c.l.b16 %v136
    %v603 = vunpack.c.h.b16 %v136
    %v604 = vunpack.c.l.b16 %v137
    %v605 = vunpack.c.h.b16 %v137
    %v606 = vunpack.c.l.b16 %v138
    %v607 = vunpack.c.h.b16 %v138
    %v608 = vunpack.c.l.b16 %v139
    %v609 = vunpack.c.h.b16 %v139
    %v610 = vunpack.c.l.b16 %v140
    %v611 = vunpack.c.h.b16 %v140
    %v612 = vunpack.c.l.b16 %v141
    %v613 = vunpack.c.h.b16 %v141
    %v614 = vunpack.c.l.b16 %v142
    %v615 = vunpack.c.h.b16 %v142
    %v616 = vunpack.c.l.b16 %v143
    %v617 = vunpack.c.h.b16 %v143
    %v618 = vunpack.c.l.b16 %v144
    %v619 = vunpack.c.h.b16 %v144
    %v620 = vunpack.c.l.b16 %v145
    %v621 = vunpack.c.h.b16 %v145
    %v622 = vunpack.c.l.b16 %v146
    %v623 = vunpack.c.h.b16 %v146
    %v624 = vunpack.c.l.b16 %v147
    %v625 = vunpack.c.h.b16 %v147
    %v626 = vunpack.c.l.b16 %v148
    %v627 = vunpack.c.h.b16 %v148
    %v628 = vunpack.c.l.b16 %v149
    %v629 = vunpack.c.h.b16 %v149
    %v630 = vpack.c.b16 %v378, %v374
    %v631 = vpack.c.b16 %v379, %v375
    %v632 = vpack.c.b16 %v380, %v376
    %v633 = vpack.c.b16 %v381, %v377
    %v634 = vpack.c.b16 %v386, %v382
    %v635 = vpack.c.b16 %v387, %v383
    %v636 = vpack.c.b16 %v388, %v384
    %v637 = vpack.c.b16 %v389, %v385
    %v638 = vpack.c.b16 %v394, %v390
    %v639 = vpack.c.b16 %v395, %v391
    %v640 = vpack.c.b16 %v396, %v392
    %v641 = vpack.c.b16 %v397, %v393
    %v642 = vpack.c.b16 %v402, %v398
    %v643 = vpack.c.b16 %v403, %v399
    %v644 = vpack.c.b16 %v404, %v400
    %v645 = vpack.c.b16 %v405, %v401
    %v646 = vpack.c.b16 %v410, %v406
    %v647 = vpack.c.b16 %v411, %v407
    %v648 = vpack.c.b16 %v412, %v408
    %v649 = vpack.c.b16 %v413, %v409
    %v650 = vpack.c.b16 %v418, %v414
    %v651 = vpack.c.b16 %v419, %v415
    %v652 = vpack.c.b16 %v420, %v416
    %v653 = vpack.c.b16 %v421, %v417
    %v654 = vpack.c.b16 %v426, %v422
    %v655 = vpack.c.b16 %v427, %v423
    %v656 = vpack.c.b16 %v428, %v424
    %v657 = vpack.c.b16 %v429, %v425
    %v658 = vpack.c.b16 %v434, %v430
    %v659 = vpack.c.b16 %v435, %v431
    %v660 = vpack.c.b16 %v436, %v432
    %v661 = vpack.c.b16 %v437, %v433
    %v662 = vpack.c.b16 %v442, %v438
    %v663 = vpack.c.b16 %v443, %v439
    %v664 = vpack.c.b16 %v444, %v440
    %v665 = vpack.c.b16 %v445, %v441
    %v666 = vpack.c.b16 %v450, %v446
    %v667 = vpack.c.b16 %v451, %v447
    %v668 = vpack.c.b16 %v452, %v448
    %v669 = vpack.c.b16 %v453, %v449
    %v670 = vpack.c.b16 %v458, %v454
    %v671 = vpack.c.b16 %v459, %v455
    %v672 = vpack.c.b16 %v460, %v456
    %v673 = vpack.c.b16 %v461, %v457
    %v674 = vpack.c.b16 %v466, %v462
    %v675 = vpack.c.b16 %v467, %v463
    %v676 = vpack.c.b16 %v468, %v464
    %v677 = vpack.c.b16 %v469, %v465
    %v678 = vpack.c.b16 %v474, %v470
    %v679 = vpack.c.b16 %v475, %v471
    %v680 = vpack.c.b16 %v476, %v472
    %v681 = vpack.c.b16 %v477, %v473
    %v682 = vpack.c.b16 %v482, %v478
    %v683 = vpack.c.b16 %v483, %v479
    %v684 = vpack.c.b16 %v484, %v480
    %v685 = vpack.c.b16 %v485, %v481
    %v686 = vpack.c.b16 %v490, %v486
    %v687 = vpack.c.b16 %v491, %v487
    %v688 = vpack.c.b16 %v492, %v488
    %v689 = vpack.c.b16 %v493, %v489
    %v690 = vpack.c.b16 %v498, %v494
    %v691 = vpack.c.b16 %v499, %v495
    %v692 = vpack.c.b16 %v500, %v496
    %v693 = vpack.c.b16 %v501, %v497
    %v694 = vpack.c.b16 %v506, %v502
    %v695 = vpack.c.b16 %v507, %v503
    %v696 = vpack.c.b16 %v508, %v504
    %v697 = vpack.c.b16 %v509, %v505
    %v698 = vpack.c.b16 %v514, %v510
    %v699 = vpack.c.b16 %v515, %v511
    %v700 = vpack.c.b16 %v516, %v512
    %v701 = vpack.c.b16 %v517, %v513
    %v702 = vpack.c.b16 %v522, %v518
    %v703 = vpack.c.b16 %v523, %v519
    %v704 = vpack.c.b16 %v524, %v520
    %v705 = vpack.c.b16 %v525, %v521
    %v706 = vpack.c.b16 %v530, %v526
    %v707 = vpack.c.b16 %v531, %v527
    %v708 = vpack.c.b16 %v532, %v528
    %v709 = vpack.c.b16 %v533, %v529
    %v710 = vpack.c.b16 %v538, %v534
    %v711 = vpack.c.b16 %v539, %v535
    %v712 = vpack.c.b16 %v540, %v536
    %v713 = vpack.c.b16 %v541, %v537
    %v714 = vpack.c.b16 %v546, %v542
    %v715 = vpack.c.b16 %v547, %v543
    %v716 = vpack.c.b16 %v548, %v544
    %v717 = vpack.c.b16 %v549, %v545
    %v718 = vpack.c.b16 %v554, %v550
    %v719 = vpack.c.b16 %v555, %v551
    %v720 = vpack.c.b16 %v556, %v552
    %v721 = vpack.c.b16 %v557, %v553
    %v722 = vpack.c.b16 %v562, %v558
    %v723 = vpack.c.b16 %v563, %v559
    %v724 = vpack.c.b16 %v564, %v560
    %v725 = vpack.c.b16 %v565, %v561
    %v726 = vpack.c.b16 %v570, %v566
    %v727 = vpack.c.b16 %v571, %v567
    %v728 = vpack.c.b16 %v572, %v568
    %v729 = vpack.c.b16 %v573, %v569
    %v730 = vpack.c.b16 %v578, %v574
    %v731 = vpack.c.b16 %v579, %v575
    %v732 = vpack.c.b16 %v580, %v576
    %v733 = vpack.c.b16 %v581, %v577
    %v734 = vpack.c.b16 %v586, %v582
    %v735 = vpack.c.b16 %v587, %v583
    %v736 = vpack.c.b16 %v588, %v584
    %v737 = vpack.c.b16 %v589, %v585
    %v738 = vpack.c.b16 %v594, %v590
    %v739 = vpack.c.b16 %v595, %v591
    %v740 = vpack.c.b16 %v596, %v592
    %v741 = vpack.c.b16 %v597, %v593
    %v742 = vpack.c.b16 %v602, %v598
    %v743 = vpack.c.b16 %v603, %v599
    %v744 = vpack.c.b16 %v604, %v600
    %v745 = vpack.c.b16 %v605, %v601
    %v746 = vpack.c.b16 %v610, %v606
    %v747 = vpack.c.b16 %v611, %v607
    %v748 = vpack.c.b16 %v612, %v608
    %v749 = vpack.c.b16 %v613, %v609
    %v750 = vpack.c.b16 %v618, %v614
    %v751 = vpack.c.b16 %v619, %v615
    %v752 = vpack.c.b16 %v620, %v616
    %v753 = vpack.c.b16 %v621, %v617
    %v754 = vpack.c.b16 %v626, %v622
    %v755 = vpack.c.b16 %v627, %v623
    %v756 = vpack.c.b16 %v628, %v624
    %v757 = vpack.c.b16 %v629, %v625
    %886 = vmatpush.bf16.msra.mxu0 %v221
    %887 = vmatpush.bf16.msra.mxu0 %v220
    %888 = vmatpush.bf16.msra.mxu0 %v219
    %889 = vmatpush.bf16.msra.mxu0 %v218
    %890 = vmatpush.bf16.msra.mxu0 %v217
    %891 = vmatpush.bf16.msra.mxu0 %v216
    %892 = vmatpush.bf16.msra.mxu0 %v215
    %893 = vmatpush.bf16.msra.mxu0 %v214
    %894 = vmatmul.bf16.gmra.mxu0 %v630
    %v895 = vpop.f32.mrf.mxu0
    %v896 = vadd.f32 0.0, %v895
    %v897 = vpop.f32.mrf.mxu0
    %v898 = vadd.f32 0.0, %v897
    %899 = vmatmul.bf16.gmra.mxu0 %v634
    %v900 = vpop.f32.mrf.mxu0
    %v901 = vadd.f32 0.0, %v900
    %v902 = vpop.f32.mrf.mxu0
    %v903 = vadd.f32 0.0, %v902
    %904 = vmatmul.bf16.gmra.mxu0 %v638
    %v905 = vpop.f32.mrf.mxu0
    %v906 = vadd.f32 0.0, %v905
    %v907 = vpop.f32.mrf.mxu0
    %v908 = vadd.f32 0.0, %v907
    %909 = vmatmul.bf16.gmra.mxu0 %v642
    %v910 = vpop.f32.mrf.mxu0
    %v911 = vadd.f32 0.0, %v910
    %v912 = vpop.f32.mrf.mxu0
    %v913 = vadd.f32 0.0, %v912
    %914 = vmatmul.bf16.gmra.mxu0 %v646
    %v915 = vpop.f32.mrf.mxu0
    %v916 = vadd.f32 0.0, %v915
    %v917 = vpop.f32.mrf.mxu0
    %v918 = vadd.f32 0.0, %v917
    %919 = vmatmul.bf16.gmra.mxu0 %v650
    %v920 = vpop.f32.mrf.mxu0
    %v921 = vadd.f32 0.0, %v920
    %v922 = vpop.f32.mrf.mxu0
    %v923 = vadd.f32 0.0, %v922
    %924 = vmatmul.bf16.gmra.mxu0 %v654
    %v925 = vpop.f32.mrf.mxu0
    %v926 = vadd.f32 0.0, %v925
    %v927 = vpop.f32.mrf.mxu0
    %v928 = vadd.f32 0.0, %v927
    %929 = vmatmul.bf16.gmra.mxu0 %v658
    %v930 = vpop.f32.mrf.mxu0
    %v931 = vadd.f32 0.0, %v930
    %v932 = vpop.f32.mrf.mxu0
    %v933 = vadd.f32 0.0, %v932
    %934 = vmatmul.bf16.gmra.mxu0 %v662
    %v935 = vpop.f32.mrf.mxu0
    %v936 = vadd.f32 0.0, %v935
    %v937 = vpop.f32.mrf.mxu0
    %v938 = vadd.f32 0.0, %v937
    %939 = vmatmul.bf16.gmra.mxu0 %v666
    %v940 = vpop.f32.mrf.mxu0
    %v941 = vadd.f32 0.0, %v940
    %v942 = vpop.f32.mrf.mxu0
    %v943 = vadd.f32 0.0, %v942
    %944 = vmatmul.bf16.gmra.mxu0 %v670
    %v945 = vpop.f32.mrf.mxu0
    %v946 = vadd.f32 0.0, %v945
    %v947 = vpop.f32.mrf.mxu0
    %v948 = vadd.f32 0.0, %v947
    %949 = vmatmul.bf16.gmra.mxu0 %v674
    %v950 = vpop.f32.mrf.mxu0
    %v951 = vadd.f32 0.0, %v950
    %v952 = vpop.f32.mrf.mxu0
    %v953 = vadd.f32 0.0, %v952
    %954 = vmatmul.bf16.gmra.mxu0 %v678
    %v955 = vpop.f32.mrf.mxu0
    %v956 = vadd.f32 0.0, %v955
    %v957 = vpop.f32.mrf.mxu0
    %v958 = vadd.f32 0.0, %v957
    %959 = vmatmul.bf16.gmra.mxu0 %v682
    %v960 = vpop.f32.mrf.mxu0
    %v961 = vadd.f32 0.0, %v960
    %v962 = vpop.f32.mrf.mxu0
    %v963 = vadd.f32 0.0, %v962
    %964 = vmatmul.bf16.gmra.mxu0 %v686
    %v965 = vpop.f32.mrf.mxu0
    %v966 = vadd.f32 0.0, %v965
    %v967 = vpop.f32.mrf.mxu0
    %v968 = vadd.f32 0.0, %v967
    %969 = vmatmul.bf16.gmra.mxu0 %v690
    %v970 = vpop.f32.mrf.mxu0
    %v971 = vadd.f32 0.0, %v970
    %v972 = vpop.f32.mrf.mxu0
    %v973 = vadd.f32 0.0, %v972
    %974 = vmatmul.bf16.gmra.mxu0 %v694
    %v975 = vpop.f32.mrf.mxu0
    %v976 = vadd.f32 0.0, %v975
    %v977 = vpop.f32.mrf.mxu0
    %v978 = vadd.f32 0.0, %v977
    %979 = vmatmul.bf16.gmra.mxu0 %v698
    %v980 = vpop.f32.mrf.mxu0
    %v981 = vadd.f32 0.0, %v980
    %v982 = vpop.f32.mrf.mxu0
    %v983 = vadd.f32 0.0, %v982
    %984 = vmatmul.bf16.gmra.mxu0 %v702
    %v985 = vpop.f32.mrf.mxu0
    %v986 = vadd.f32 0.0, %v985
    %v987 = vpop.f32.mrf.mxu0
    %v988 = vadd.f32 0.0, %v987
    %989 = vmatmul.bf16.gmra.mxu0 %v706
    %v990 = vpop.f32.mrf.mxu0
    %v991 = vadd.f32 0.0, %v990
    %v992 = vpop.f32.mrf.mxu0
    %v993 = vadd.f32 0.0, %v992
    %994 = vmatmul.bf16.gmra.mxu0 %v710
    %v995 = vpop.f32.mrf.mxu0
    %v996 = vadd.f32 0.0, %v995
    %v997 = vpop.f32.mrf.mxu0
    %v998 = vadd.f32 0.0, %v997
    %999 = vmatmul.bf16.gmra.mxu0 %v714
    %v1000 = vpop.f32.mrf.mxu0
    %v1001 = vadd.f32 0.0, %v1000
    %v1002 = vpop.f32.mrf.mxu0
    %v1003 = vadd.f32 0.0, %v1002
    %1004 = vmatmul.bf16.gmra.mxu0 %v718
    %v1005 = vpop.f32.mrf.mxu0
    %v1006 = vadd.f32 0.0, %v1005
    %v1007 = vpop.f32.mrf.mxu0
    %v1008 = vadd.f32 0.0, %v1007
    %1009 = vmatmul.bf16.gmra.mxu0 %v722
    %v1010 = vpop.f32.mrf.mxu0
    %v1011 = vadd.f32 0.0, %v1010
    %v1012 = vpop.f32.mrf.mxu0
    %v1013 = vadd.f32 0.0, %v1012
    %1014 = vmatmul.bf16.gmra.mxu0 %v726
    %v1015 = vpop.f32.mrf.mxu0
    %v1016 = vadd.f32 0.0, %v1015
    %v1017 = vpop.f32.mrf.mxu0
    %v1018 = vadd.f32 0.0, %v1017
    %1019 = vmatmul.bf16.gmra.mxu0 %v730
    %v1020 = vpop.f32.mrf.mxu0
    %v1021 = vadd.f32 0.0, %v1020
    %v1022 = vpop.f32.mrf.mxu0
    %v1023 = vadd.f32 0.0, %v1022
    %1024 = vmatmul.bf16.gmra.mxu0 %v734
    %v1025 = vpop.f32.mrf.mxu0
    %v1026 = vadd.f32 0.0, %v1025
    %v1027 = vpop.f32.mrf.mxu0
    %v1028 = vadd.f32 0.0, %v1027
    %1029 = vmatmul.bf16.gmra.mxu0 %v738
    %v1030 = vpop.f32.mrf.mxu0
    %v1031 = vadd.f32 0.0, %v1030
    %v1032 = vpop.f32.mrf.mxu0
    %v1033 = vadd.f32 0.0, %v1032
    %1034 = vmatmul.bf16.gmra.mxu0 %v742
    %v1035 = vpop.f32.mrf.mxu0
    %v1036 = vadd.f32 0.0, %v1035
    %v1037 = vpop.f32.mrf.mxu0
    %v1038 = vadd.f32 0.0, %v1037
    %1039 = vmatmul.bf16.gmra.mxu0 %v746
    %v1040 = vpop.f32.mrf.mxu0
    %v1041 = vadd.f32 0.0, %v1040
    %v1042 = vpop.f32.mrf.mxu0
    %v1043 = vadd.f32 0.0, %v1042
    %1044 = vmatmul.bf16.gmra.mxu0 %v750
    %v1045 = vpop.f32.mrf.mxu0
    %v1046 = vadd.f32 0.0, %v1045
    %v1047 = vpop.f32.mrf.mxu0
    %v1048 = vadd.f32 0.0, %v1047
    %1049 = vmatmul.bf16.gmra.mxu0 %v754
    %v1050 = vpop.f32.mrf.mxu0
    %v1051 = vadd.f32 0.0, %v1050
    %v1052 = vpop.f32.mrf.mxu0
    %v1053 = vadd.f32 0.0, %v1052
    %1054 = vdwg.mxu0
    %1055 = vmatpush.bf16.msra.mxu0 %v229
    %1056 = vmatpush.bf16.msra.mxu0 %v228
    %1057 = vmatpush.bf16.msra.mxu0 %v227
    %1058 = vmatpush.bf16.msra.mxu0 %v226
    %1059 = vmatpush.bf16.msra.mxu0 %v225
    %1060 = vmatpush.bf16.msra.mxu0 %v224
    %1061 = vmatpush.bf16.msra.mxu0 %v223
    %1062 = vmatpush.bf16.msra.mxu0 %v222
    %1063 = vmatmul.bf16.gmra.mxu0 %v631
    %v1064 = vpop.f32.mrf.mxu0
    %v1065 = vadd.f32 %v896, %v1064
    %v1066 = vpop.f32.mrf.mxu0
    %v1067 = vadd.f32 %v898, %v1066
    %1068 = vmatmul.bf16.gmra.mxu0 %v635
    %v1069 = vpop.f32.mrf.mxu0
    %v1070 = vadd.f32 %v901, %v1069
    %v1071 = vpop.f32.mrf.mxu0
    %v1072 = vadd.f32 %v903, %v1071
    %1073 = vmatmul.bf16.gmra.mxu0 %v639
    %v1074 = vpop.f32.mrf.mxu0
    %v1075 = vadd.f32 %v906, %v1074
    %v1076 = vpop.f32.mrf.mxu0
    %v1077 = vadd.f32 %v908, %v1076
    %1078 = vmatmul.bf16.gmra.mxu0 %v643
    %v1079 = vpop.f32.mrf.mxu0
    %v1080 = vadd.f32 %v911, %v1079
    %v1081 = vpop.f32.mrf.mxu0
    %v1082 = vadd.f32 %v913, %v1081
    %1083 = vmatmul.bf16.gmra.mxu0 %v647
    %v1084 = vpop.f32.mrf.mxu0
    %v1085 = vadd.f32 %v916, %v1084
    %v1086 = vpop.f32.mrf.mxu0
    %v1087 = vadd.f32 %v918, %v1086
    %1088 = vmatmul.bf16.gmra.mxu0 %v651
    %v1089 = vpop.f32.mrf.mxu0
    %v1090 = vadd.f32 %v921, %v1089
    %v1091 = vpop.f32.mrf.mxu0
    %v1092 = vadd.f32 %v923, %v1091
    %1093 = vmatmul.bf16.gmra.mxu0 %v655
    %v1094 = vpop.f32.mrf.mxu0
    %v1095 = vadd.f32 %v926, %v1094
    %v1096 = vpop.f32.mrf.mxu0
    %v1097 = vadd.f32 %v928, %v1096
    %1098 = vmatmul.bf16.gmra.mxu0 %v659
    %v1099 = vpop.f32.mrf.mxu0
    %v1100 = vadd.f32 %v931, %v1099
    %v1101 = vpop.f32.mrf.mxu0
    %v1102 = vadd.f32 %v933, %v1101
    %1103 = vmatmul.bf16.gmra.mxu0 %v663
    %v1104 = vpop.f32.mrf.mxu0
    %v1105 = vadd.f32 %v936, %v1104
    %v1106 = vpop.f32.mrf.mxu0
    %v1107 = vadd.f32 %v938, %v1106
    %1108 = vmatmul.bf16.gmra.mxu0 %v667
    %v1109 = vpop.f32.mrf.mxu0
    %v1110 = vadd.f32 %v941, %v1109
    %v1111 = vpop.f32.mrf.mxu0
    %v1112 = vadd.f32 %v943, %v1111
    %1113 = vmatmul.bf16.gmra.mxu0 %v671
    %v1114 = vpop.f32.mrf.mxu0
    %v1115 = vadd.f32 %v946, %v1114
    %v1116 = vpop.f32.mrf.mxu0
    %v1117 = vadd.f32 %v948, %v1116
    %1118 = vmatmul.bf16.gmra.mxu0 %v675
    %v1119 = vpop.f32.mrf.mxu0
    %v1120 = vadd.f32 %v951, %v1119
    %v1121 = vpop.f32.mrf.mxu0
    %v1122 = vadd.f32 %v953, %v1121
    %1123 = vmatmul.bf16.gmra.mxu0 %v679
    %v1124 = vpop.f32.mrf.mxu0
    %v1125 = vadd.f32 %v956, %v1124
    %v1126 = vpop.f32.mrf.mxu0
    %v1127 = vadd.f32 %v958, %v1126
    %1128 = vmatmul.bf16.gmra.mxu0 %v683
    %v1129 = vpop.f32.mrf.mxu0
    %v1130 = vadd.f32 %v961, %v1129
    %v1131 = vpop.f32.mrf.mxu0
    %v1132 = vadd.f32 %v963, %v1131
    %1133 = vmatmul.bf16.gmra.mxu0 %v687
    %v1134 = vpop.f32.mrf.mxu0
    %v1135 = vadd.f32 %v966, %v1134
    %v1136 = vpop.f32.mrf.mxu0
    %v1137 = vadd.f32 %v968, %v1136
    %1138 = vmatmul.bf16.gmra.mxu0 %v691
    %v1139 = vpop.f32.mrf.mxu0
    %v1140 = vadd.f32 %v971, %v1139
    %v1141 = vpop.f32.mrf.mxu0
    %v1142 = vadd.f32 %v973, %v1141
    %1143 = vmatmul.bf16.gmra.mxu0 %v695
    %v1144 = vpop.f32.mrf.mxu0
    %v1145 = vadd.f32 %v976, %v1144
    %v1146 = vpop.f32.mrf.mxu0
    %v1147 = vadd.f32 %v978, %v1146
    %1148 = vmatmul.bf16.gmra.mxu0 %v699
    %v1149 = vpop.f32.mrf.mxu0
    %v1150 = vadd.f32 %v981, %v1149
    %v1151 = vpop.f32.mrf.mxu0
    %v1152 = vadd.f32 %v983, %v1151
    %1153 = vmatmul.bf16.gmra.mxu0 %v703
    %v1154 = vpop.f32.mrf.mxu0
    %v1155 = vadd.f32 %v986, %v1154
    %v1156 = vpop.f32.mrf.mxu0
    %v1157 = vadd.f32 %v988, %v1156
    %1158 = vmatmul.bf16.gmra.mxu0 %v707
    %v1159 = vpop.f32.mrf.mxu0
    %v1160 = vadd.f32 %v991, %v1159
    %v1161 = vpop.f32.mrf.mxu0
    %v1162 = vadd.f32 %v993, %v1161
    %1163 = vmatmul.bf16.gmra.mxu0 %v711
    %v1164 = vpop.f32.mrf.mxu0
    %v1165 = vadd.f32 %v996, %v1164
    %v1166 = vpop.f32.mrf.mxu0
    %v1167 = vadd.f32 %v998, %v1166
    %1168 = vmatmul.bf16.gmra.mxu0 %v715
    %v1169 = vpop.f32.mrf.mxu0
    %v1170 = vadd.f32 %v1001, %v1169
    %v1171 = vpop.f32.mrf.mxu0
    %v1172 = vadd.f32 %v1003, %v1171
    %1173 = vmatmul.bf16.gmra.mxu0 %v719
    %v1174 = vpop.f32.mrf.mxu0
    %v1175 = vadd.f32 %v1006, %v1174
    %v1176 = vpop.f32.mrf.mxu0
    %v1177 = vadd.f32 %v1008, %v1176
    %1178 = vmatmul.bf16.gmra.mxu0 %v723
    %v1179 = vpop.f32.mrf.mxu0
    %v1180 = vadd.f32 %v1011, %v1179
    %v1181 = vpop.f32.mrf.mxu0
    %v1182 = vadd.f32 %v1013, %v1181
    %1183 = vmatmul.bf16.gmra.mxu0 %v727
    %v1184 = vpop.f32.mrf.mxu0
    %v1185 = vadd.f32 %v1016, %v1184
    %v1186 = vpop.f32.mrf.mxu0
    %v1187 = vadd.f32 %v1018, %v1186
    %1188 = vmatmul.bf16.gmra.mxu0 %v731
    %v1189 = vpop.f32.mrf.mxu0
    %v1190 = vadd.f32 %v1021, %v1189
    %v1191 = vpop.f32.mrf.mxu0
    %v1192 = vadd.f32 %v1023, %v1191
    %1193 = vmatmul.bf16.gmra.mxu0 %v735
    %v1194 = vpop.f32.mrf.mxu0
    %v1195 = vadd.f32 %v1026, %v1194
    %v1196 = vpop.f32.mrf.mxu0
    %v1197 = vadd.f32 %v1028, %v1196
    %1198 = vmatmul.bf16.gmra.mxu0 %v739
    %v1199 = vpop.f32.mrf.mxu0
    %v1200 = vadd.f32 %v1031, %v1199
    %v1201 = vpop.f32.mrf.mxu0
    %v1202 = vadd.f32 %v1033, %v1201
    %1203 = vmatmul.bf16.gmra.mxu0 %v743
    %v1204 = vpop.f32.mrf.mxu0
    %v1205 = vadd.f32 %v1036, %v1204
    %v1206 = vpop.f32.mrf.mxu0
    %v1207 = vadd.f32 %v1038, %v1206
    %1208 = vmatmul.bf16.gmra.mxu0 %v747
    %v1209 = vpop.f32.mrf.mxu0
    %v1210 = vadd.f32 %v1041, %v1209
    %v1211 = vpop.f32.mrf.mxu0
    %v1212 = vadd.f32 %v1043, %v1211
    %1213 = vmatmul.bf16.gmra.mxu0 %v751
    %v1214 = vpop.f32.mrf.mxu0
    %v1215 = vadd.f32 %v1046, %v1214
    %v1216 = vpop.f32.mrf.mxu0
    %v1217 = vadd.f32 %v1048, %v1216
    %1218 = vmatmul.bf16.gmra.mxu0 %v755
    %v1219 = vpop.f32.mrf.mxu0
    %v1220 = vadd.f32 %v1051, %v1219
    %v1221 = vpop.f32.mrf.mxu0
    %v1222 = vadd.f32 %v1053, %v1221
    %1223 = vdwg.mxu0
    %1224 = vmatpush.bf16.msra.mxu0 %v237
    %1225 = vmatpush.bf16.msra.mxu0 %v236
    %1226 = vmatpush.bf16.msra.mxu0 %v235
    %1227 = vmatpush.bf16.msra.mxu0 %v234
    %1228 = vmatpush.bf16.msra.mxu0 %v233
    %1229 = vmatpush.bf16.msra.mxu0 %v232
    %1230 = vmatpush.bf16.msra.mxu0 %v231
    %1231 = vmatpush.bf16.msra.mxu0 %v230
    %1232 = vmatmul.bf16.gmra.mxu0 %v632
    %v1233 = vpop.f32.mrf.mxu0
    %v1234 = vadd.f32 %v1065, %v1233
    %v1235 = vpop.f32.mrf.mxu0
    %v1236 = vadd.f32 %v1067, %v1235
    %1237 = vmatmul.bf16.gmra.mxu0 %v636
    %v1238 = vpop.f32.mrf.mxu0
    %v1239 = vadd.f32 %v1070, %v1238
    %v1240 = vpop.f32.mrf.mxu0
    %v1241 = vadd.f32 %v1072, %v1240
    %1242 = vmatmul.bf16.gmra.mxu0 %v640
    %v1243 = vpop.f32.mrf.mxu0
    %v1244 = vadd.f32 %v1075, %v1243
    %v1245 = vpop.f32.mrf.mxu0
    %v1246 = vadd.f32 %v1077, %v1245
    %1247 = vmatmul.bf16.gmra.mxu0 %v644
    %v1248 = vpop.f32.mrf.mxu0
    %v1249 = vadd.f32 %v1080, %v1248
    %v1250 = vpop.f32.mrf.mxu0
    %v1251 = vadd.f32 %v1082, %v1250
    %1252 = vmatmul.bf16.gmra.mxu0 %v648
    %v1253 = vpop.f32.mrf.mxu0
    %v1254 = vadd.f32 %v1085, %v1253
    %v1255 = vpop.f32.mrf.mxu0
    %v1256 = vadd.f32 %v1087, %v1255
    %1257 = vmatmul.bf16.gmra.mxu0 %v652
    %v1258 = vpop.f32.mrf.mxu0
    %v1259 = vadd.f32 %v1090, %v1258
    %v1260 = vpop.f32.mrf.mxu0
    %v1261 = vadd.f32 %v1092, %v1260
    %1262 = vmatmul.bf16.gmra.mxu0 %v656
    %v1263 = vpop.f32.mrf.mxu0
    %v1264 = vadd.f32 %v1095, %v1263
    %v1265 = vpop.f32.mrf.mxu0
    %v1266 = vadd.f32 %v1097, %v1265
    %1267 = vmatmul.bf16.gmra.mxu0 %v660
    %v1268 = vpop.f32.mrf.mxu0
    %v1269 = vadd.f32 %v1100, %v1268
    %v1270 = vpop.f32.mrf.mxu0
    %v1271 = vadd.f32 %v1102, %v1270
    %1272 = vmatmul.bf16.gmra.mxu0 %v664
    %v1273 = vpop.f32.mrf.mxu0
    %v1274 = vadd.f32 %v1105, %v1273
    %v1275 = vpop.f32.mrf.mxu0
    %v1276 = vadd.f32 %v1107, %v1275
    %1277 = vmatmul.bf16.gmra.mxu0 %v668
    %v1278 = vpop.f32.mrf.mxu0
    %v1279 = vadd.f32 %v1110, %v1278
    %v1280 = vpop.f32.mrf.mxu0
    %v1281 = vadd.f32 %v1112, %v1280
    %1282 = vmatmul.bf16.gmra.mxu0 %v672
    %v1283 = vpop.f32.mrf.mxu0
    %v1284 = vadd.f32 %v1115, %v1283
    %v1285 = vpop.f32.mrf.mxu0
    %v1286 = vadd.f32 %v1117, %v1285
    %1287 = vmatmul.bf16.gmra.mxu0 %v676
    %v1288 = vpop.f32.mrf.mxu0
    %v1289 = vadd.f32 %v1120, %v1288
    %v1290 = vpop.f32.mrf.mxu0
    %v1291 = vadd.f32 %v1122, %v1290
    %1292 = vmatmul.bf16.gmra.mxu0 %v680
    %v1293 = vpop.f32.mrf.mxu0
    %v1294 = vadd.f32 %v1125, %v1293
    %v1295 = vpop.f32.mrf.mxu0
    %v1296 = vadd.f32 %v1127, %v1295
    %1297 = vmatmul.bf16.gmra.mxu0 %v684
    %v1298 = vpop.f32.mrf.mxu0
    %v1299 = vadd.f32 %v1130, %v1298
    %v1300 = vpop.f32.mrf.mxu0
    %v1301 = vadd.f32 %v1132, %v1300
    %1302 = vmatmul.bf16.gmra.mxu0 %v688
    %v1303 = vpop.f32.mrf.mxu0
    %v1304 = vadd.f32 %v1135, %v1303
    %v1305 = vpop.f32.mrf.mxu0
    %v1306 = vadd.f32 %v1137, %v1305
    %1307 = vmatmul.bf16.gmra.mxu0 %v692
    %v1308 = vpop.f32.mrf.mxu0
    %v1309 = vadd.f32 %v1140, %v1308
    %v1310 = vpop.f32.mrf.mxu0
    %v1311 = vadd.f32 %v1142, %v1310
    %1312 = vmatmul.bf16.gmra.mxu0 %v696
    %v1313 = vpop.f32.mrf.mxu0
    %v1314 = vadd.f32 %v1145, %v1313
    %v1315 = vpop.f32.mrf.mxu0
    %v1316 = vadd.f32 %v1147, %v1315
    %1317 = vmatmul.bf16.gmra.mxu0 %v700
    %v1318 = vpop.f32.mrf.mxu0
    %v1319 = vadd.f32 %v1150, %v1318
    %v1320 = vpop.f32.mrf.mxu0
    %v1321 = vadd.f32 %v1152, %v1320
    %1322 = vmatmul.bf16.gmra.mxu0 %v704
    %v1323 = vpop.f32.mrf.mxu0
    %v1324 = vadd.f32 %v1155, %v1323
    %v1325 = vpop.f32.mrf.mxu0
    %v1326 = vadd.f32 %v1157, %v1325
    %1327 = vmatmul.bf16.gmra.mxu0 %v708
    %v1328 = vpop.f32.mrf.mxu0
    %v1329 = vadd.f32 %v1160, %v1328
    %v1330 = vpop.f32.mrf.mxu0
    %v1331 = vadd.f32 %v1162, %v1330
    %1332 = vmatmul.bf16.gmra.mxu0 %v712
    %v1333 = vpop.f32.mrf.mxu0
    %v1334 = vadd.f32 %v1165, %v1333
    %v1335 = vpop.f32.mrf.mxu0
    %v1336 = vadd.f32 %v1167, %v1335
    %1337 = vmatmul.bf16.gmra.mxu0 %v716
    %v1338 = vpop.f32.mrf.mxu0
    %v1339 = vadd.f32 %v1170, %v1338
    %v1340 = vpop.f32.mrf.mxu0
    %v1341 = vadd.f32 %v1172, %v1340
    %1342 = vmatmul.bf16.gmra.mxu0 %v720
    %v1343 = vpop.f32.mrf.mxu0
    %v1344 = vadd.f32 %v1175, %v1343
    %v1345 = vpop.f32.mrf.mxu0
    %v1346 = vadd.f32 %v1177, %v1345
    %1347 = vmatmul.bf16.gmra.mxu0 %v724
    %v1348 = vpop.f32.mrf.mxu0
    %v1349 = vadd.f32 %v1180, %v1348
    %v1350 = vpop.f32.mrf.mxu0
    %v1351 = vadd.f32 %v1182, %v1350
    %1352 = vmatmul.bf16.gmra.mxu0 %v728
    %v1353 = vpop.f32.mrf.mxu0
    %v1354 = vadd.f32 %v1185, %v1353
    %v1355 = vpop.f32.mrf.mxu0
    %v1356 = vadd.f32 %v1187, %v1355
    %1357 = vmatmul.bf16.gmra.mxu0 %v732
    %v1358 = vpop.f32.mrf.mxu0
    %v1359 = vadd.f32 %v1190, %v1358
    %v1360 = vpop.f32.mrf.mxu0
    %v1361 = vadd.f32 %v1192, %v1360
    %1362 = vmatmul.bf16.gmra.mxu0 %v736
    %v1363 = vpop.f32.mrf.mxu0
    %v1364 = vadd.f32 %v1195, %v1363
    %v1365 = vpop.f32.mrf.mxu0
    %v1366 = vadd.f32 %v1197, %v1365
    %1367 = vmatmul.bf16.gmra.mxu0 %v740
    %v1368 = vpop.f32.mrf.mxu0
    %v1369 = vadd.f32 %v1200, %v1368
    %v1370 = vpop.f32.mrf.mxu0
    %v1371 = vadd.f32 %v1202, %v1370
    %1372 = vmatmul.bf16.gmra.mxu0 %v744
    %v1373 = vpop.f32.mrf.mxu0
    %v1374 = vadd.f32 %v1205, %v1373
    %v1375 = vpop.f32.mrf.mxu0
    %v1376 = vadd.f32 %v1207, %v1375
    %1377 = vmatmul.bf16.gmra.mxu0 %v748
    %v1378 = vpop.f32.mrf.mxu0
    %v1379 = vadd.f32 %v1210, %v1378
    %v1380 = vpop.f32.mrf.mxu0
    %v1381 = vadd.f32 %v1212, %v1380
    %1382 = vmatmul.bf16.gmra.mxu0 %v752
    %v1383 = vpop.f32.mrf.mxu0
    %v1384 = vadd.f32 %v1215, %v1383
    %v1385 = vpop.f32.mrf.mxu0
    %v1386 = vadd.f32 %v1217, %v1385
    %1387 = vmatmul.bf16.gmra.mxu0 %v756
    %v1388 = vpop.f32.mrf.mxu0
    %v1389 = vadd.f32 %v1220, %v1388
    %v1390 = vpop.f32.mrf.mxu0
    %v1391 = vadd.f32 %v1222, %v1390
    %1392 = vdwg.mxu0
    %1393 = vmatpush.bf16.msra.mxu0 %v245
    %1394 = vmatpush.bf16.msra.mxu0 %v244
    %1395 = vmatpush.bf16.msra.mxu0 %v243
    %1396 = vmatpush.bf16.msra.mxu0 %v242
    %1397 = vmatpush.bf16.msra.mxu0 %v241
    %1398 = vmatpush.bf16.msra.mxu0 %v240
    %1399 = vmatpush.bf16.msra.mxu0 %v239
    %1400 = vmatpush.bf16.msra.mxu0 %v238
    %1401 = vmatmul.bf16.gmra.mxu0 %v633
    %v1402 = vpop.f32.mrf.mxu0
    %v1403 = vadd.f32 %v1234, %v1402
    %v1404 = vpop.f32.mrf.mxu0
    %v1405 = vadd.f32 %v1236, %v1404
    %1406 = vmatmul.bf16.gmra.mxu0 %v637
    %v1407 = vpop.f32.mrf.mxu0
    %v1408 = vadd.f32 %v1239, %v1407
    %v1409 = vpop.f32.mrf.mxu0
    %v1410 = vadd.f32 %v1241, %v1409
    %1411 = vmatmul.bf16.gmra.mxu0 %v641
    %v1412 = vpop.f32.mrf.mxu0
    %v1413 = vadd.f32 %v1244, %v1412
    %v1414 = vpop.f32.mrf.mxu0
    %v1415 = vadd.f32 %v1246, %v1414
    %1416 = vmatmul.bf16.gmra.mxu0 %v645
    %v1417 = vpop.f32.mrf.mxu0
    %v1418 = vadd.f32 %v1249, %v1417
    %v1419 = vpop.f32.mrf.mxu0
    %v1420 = vadd.f32 %v1251, %v1419
    %1421 = vmatmul.bf16.gmra.mxu0 %v649
    %v1422 = vpop.f32.mrf.mxu0
    %v1423 = vadd.f32 %v1254, %v1422
    %v1424 = vpop.f32.mrf.mxu0
    %v1425 = vadd.f32 %v1256, %v1424
    %1426 = vmatmul.bf16.gmra.mxu0 %v653
    %v1427 = vpop.f32.mrf.mxu0
    %v1428 = vadd.f32 %v1259, %v1427
    %v1429 = vpop.f32.mrf.mxu0
    %v1430 = vadd.f32 %v1261, %v1429
    %1431 = vmatmul.bf16.gmra.mxu0 %v657
    %v1432 = vpop.f32.mrf.mxu0
    %v1433 = vadd.f32 %v1264, %v1432
    %v1434 = vpop.f32.mrf.mxu0
    %v1435 = vadd.f32 %v1266, %v1434
    %1436 = vmatmul.bf16.gmra.mxu0 %v661
    %v1437 = vpop.f32.mrf.mxu0
    %v1438 = vadd.f32 %v1269, %v1437
    %v1439 = vpop.f32.mrf.mxu0
    %v1440 = vadd.f32 %v1271, %v1439
    %1441 = vmatmul.bf16.gmra.mxu0 %v665
    %v1442 = vpop.f32.mrf.mxu0
    %v1443 = vadd.f32 %v1274, %v1442
    %v1444 = vpop.f32.mrf.mxu0
    %v1445 = vadd.f32 %v1276, %v1444
    %1446 = vmatmul.bf16.gmra.mxu0 %v669
    %v1447 = vpop.f32.mrf.mxu0
    %v1448 = vadd.f32 %v1279, %v1447
    %v1449 = vpop.f32.mrf.mxu0
    %v1450 = vadd.f32 %v1281, %v1449
    %1451 = vmatmul.bf16.gmra.mxu0 %v673
    %v1452 = vpop.f32.mrf.mxu0
    %v1453 = vadd.f32 %v1284, %v1452
    %v1454 = vpop.f32.mrf.mxu0
    %v1455 = vadd.f32 %v1286, %v1454
    %1456 = vmatmul.bf16.gmra.mxu0 %v677
    %v1457 = vpop.f32.mrf.mxu0
    %v1458 = vadd.f32 %v1289, %v1457
    %v1459 = vpop.f32.mrf.mxu0
    %v1460 = vadd.f32 %v1291, %v1459
    %1461 = vmatmul.bf16.gmra.mxu0 %v681
    %v1462 = vpop.f32.mrf.mxu0
    %v1463 = vadd.f32 %v1294, %v1462
    %v1464 = vpop.f32.mrf.mxu0
    %v1465 = vadd.f32 %v1296, %v1464
    %1466 = vmatmul.bf16.gmra.mxu0 %v685
    %v1467 = vpop.f32.mrf.mxu0
    %v1468 = vadd.f32 %v1299, %v1467
    %v1469 = vpop.f32.mrf.mxu0
    %v1470 = vadd.f32 %v1301, %v1469
    %1471 = vmatmul.bf16.gmra.mxu0 %v689
    %v1472 = vpop.f32.mrf.mxu0
    %v1473 = vadd.f32 %v1304, %v1472
    %v1474 = vpop.f32.mrf.mxu0
    %v1475 = vadd.f32 %v1306, %v1474
    %1476 = vmatmul.bf16.gmra.mxu0 %v693
    %v1477 = vpop.f32.mrf.mxu0
    %v1478 = vadd.f32 %v1309, %v1477
    %v1479 = vpop.f32.mrf.mxu0
    %v1480 = vadd.f32 %v1311, %v1479
    %1481 = vmatmul.bf16.gmra.mxu0 %v697
    %v1482 = vpop.f32.mrf.mxu0
    %v1483 = vadd.f32 %v1314, %v1482
    %v1484 = vpop.f32.mrf.mxu0
    %v1485 = vadd.f32 %v1316, %v1484
    %1486 = vmatmul.bf16.gmra.mxu0 %v701
    %v1487 = vpop.f32.mrf.mxu0
    %v1488 = vadd.f32 %v1319, %v1487
    %v1489 = vpop.f32.mrf.mxu0
    %v1490 = vadd.f32 %v1321, %v1489
    %1491 = vmatmul.bf16.gmra.mxu0 %v705
    %v1492 = vpop.f32.mrf.mxu0
    %v1493 = vadd.f32 %v1324, %v1492
    %v1494 = vpop.f32.mrf.mxu0
    %v1495 = vadd.f32 %v1326, %v1494
    %1496 = vmatmul.bf16.gmra.mxu0 %v709
    %v1497 = vpop.f32.mrf.mxu0
    %v1498 = vadd.f32 %v1329, %v1497
    %v1499 = vpop.f32.mrf.mxu0
    %v1500 = vadd.f32 %v1331, %v1499
    %1501 = vmatmul.bf16.gmra.mxu0 %v713
    %v1502 = vpop.f32.mrf.mxu0
    %v1503 = vadd.f32 %v1334, %v1502
    %v1504 = vpop.f32.mrf.mxu0
    %v1505 = vadd.f32 %v1336, %v1504
    %1506 = vmatmul.bf16.gmra.mxu0 %v717
    %v1507 = vpop.f32.mrf.mxu0
    %v1508 = vadd.f32 %v1339, %v1507
    %v1509 = vpop.f32.mrf.mxu0
    %v1510 = vadd.f32 %v1341, %v1509
    %1511 = vmatmul.bf16.gmra.mxu0 %v721
    %v1512 = vpop.f32.mrf.mxu0
    %v1513 = vadd.f32 %v1344, %v1512
    %v1514 = vpop.f32.mrf.mxu0
    %v1515 = vadd.f32 %v1346, %v1514
    %1516 = vmatmul.bf16.gmra.mxu0 %v725
    %v1517 = vpop.f32.mrf.mxu0
    %v1518 = vadd.f32 %v1349, %v1517
    %v1519 = vpop.f32.mrf.mxu0
    %v1520 = vadd.f32 %v1351, %v1519
    %1521 = vmatmul.bf16.gmra.mxu0 %v729
    %v1522 = vpop.f32.mrf.mxu0
    %v1523 = vadd.f32 %v1354, %v1522
    %v1524 = vpop.f32.mrf.mxu0
    %v1525 = vadd.f32 %v1356, %v1524
    %1526 = vmatmul.bf16.gmra.mxu0 %v733
    %v1527 = vpop.f32.mrf.mxu0
    %v1528 = vadd.f32 %v1359, %v1527
    %v1529 = vpop.f32.mrf.mxu0
    %v1530 = vadd.f32 %v1361, %v1529
    %1531 = vmatmul.bf16.gmra.mxu0 %v737
    %v1532 = vpop.f32.mrf.mxu0
    %v1533 = vadd.f32 %v1364, %v1532
    %v1534 = vpop.f32.mrf.mxu0
    %v1535 = vadd.f32 %v1366, %v1534
    %1536 = vmatmul.bf16.gmra.mxu0 %v741
    %v1537 = vpop.f32.mrf.mxu0
    %v1538 = vadd.f32 %v1369, %v1537
    %v1539 = vpop.f32.mrf.mxu0
    %v1540 = vadd.f32 %v1371, %v1539
    %1541 = vmatmul.bf16.gmra.mxu0 %v745
    %v1542 = vpop.f32.mrf.mxu0
    %v1543 = vadd.f32 %v1374, %v1542
    %v1544 = vpop.f32.mrf.mxu0
    %v1545 = vadd.f32 %v1376, %v1544
    %1546 = vmatmul.bf16.gmra.mxu0 %v749
    %v1547 = vpop.f32.mrf.mxu0
    %v1548 = vadd.f32 %v1379, %v1547
    %v1549 = vpop.f32.mrf.mxu0
    %v1550 = vadd.f32 %v1381, %v1549
    %1551 = vmatmul.bf16.gmra.mxu0 %v753
    %v1552 = vpop.f32.mrf.mxu0
    %v1553 = vadd.f32 %v1384, %v1552
    %v1554 = vpop.f32.mrf.mxu0
    %v1555 = vadd.f32 %v1386, %v1554
    %1556 = vmatmul.bf16.gmra.mxu0 %v757
    %v1557 = vpop.f32.mrf.mxu0
    %v1558 = vadd.f32 %v1389, %v1557
    %v1559 = vpop.f32.mrf.mxu0
    %v1560 = vadd.f32 %v1391, %v1559
    %1561 = vdwg.mxu0
    %v1562 = vld [vmem:[%s1] sm:$0xff]
    %v1563 = vld [vmem:[%s1 + $0x8] sm:$0xff]
    %v1564 = vld [vmem:[%s1 + $0x10] sm:$0xff]
    %v1565 = vld [vmem:[%s1 + $0x18] sm:$0xff]
    %v1566 = vld [vmem:[%s1 + $0x20] sm:$0xff]
    %v1567 = vld [vmem:[%s1 + $0x28] sm:$0xff]
    %v1568 = vld [vmem:[%s1 + $0x30] sm:$0xff]
    %v1569 = vld [vmem:[%s1 + $0x38] sm:$0xff]
    %v1570 = vld [vmem:[%s1 + $0x40] sm:$0xff]
    %v1571 = vld [vmem:[%s1 + $0x48] sm:$0xff]
    %v1572 = vld [vmem:[%s1 + $0x50] sm:$0xff]
    %v1573 = vld [vmem:[%s1 + $0x58] sm:$0xff]
    %v1574 = vld [vmem:[%s1 + $0x60] sm:$0xff]
    %v1575 = vld [vmem:[%s1 + $0x68] sm:$0xff]
    %v1576 = vld [vmem:[%s1 + $0x70] sm:$0xff]
    %v1577 = vld [vmem:[%s1 + $0x78] sm:$0xff]
    %v1578 = vld [vmem:[%s1 + $0x80] sm:$0xff]
    %v1579 = vld [vmem:[%s1 + $0x88] sm:$0xff]
    %v1580 = vld [vmem:[%s1 + $0x90] sm:$0xff]
    %v1581 = vld [vmem:[%s1 + $0x98] sm:$0xff]
    %v1582 = vld [vmem:[%s1 + $0xa0] sm:$0xff]
    %v1583 = vld [vmem:[%s1 + $0xa8] sm:$0xff]
    %v1584 = vld [vmem:[%s1 + $0xb0] sm:$0xff]
    %v1585 = vld [vmem:[%s1 + $0xb8] sm:$0xff]
    %v1586 = vld [vmem:[%s1 + $0xc0] sm:$0xff]
    %v1587 = vld [vmem:[%s1 + $0xc8] sm:$0xff]
    %v1588 = vld [vmem:[%s1 + $0xd0] sm:$0xff]
    %v1589 = vld [vmem:[%s1 + $0xd8] sm:$0xff]
    %v1590 = vld [vmem:[%s1 + $0xe0] sm:$0xff]
    %v1591 = vld [vmem:[%s1 + $0xe8] sm:$0xff]
    %v1592 = vld [vmem:[%s1 + $0xf0] sm:$0xff]
    %v1593 = vld [vmem:[%s1 + $0xf8] sm:$0xff]
    %v1594 = vld [vmem:[%s1 + $0x100] sm:$0xff]
    %v1595 = vld [vmem:[%s1 + $0x108] sm:$0xff]
    %v1596 = vld [vmem:[%s1 + $0x110] sm:$0xff]
    %v1597 = vld [vmem:[%s1 + $0x118] sm:$0xff]
    %v1598 = vld [vmem:[%s1 + $0x120] sm:$0xff]
    %v1599 = vld [vmem:[%s1 + $0x128] sm:$0xff]
    %v1600 = vld [vmem:[%s1 + $0x130] sm:$0xff]
    %v1601 = vld [vmem:[%s1 + $0x138] sm:$0xff]
    %v1602 = vld [vmem:[%s1 + $0x140] sm:$0xff]
    %v1603 = vld [vmem:[%s1 + $0x148] sm:$0xff]
    %v1604 = vld [vmem:[%s1 + $0x150] sm:$0xff]
    %v1605 = vld [vmem:[%s1 + $0x158] sm:$0xff]
    %v1606 = vld [vmem:[%s1 + $0x160] sm:$0xff]
    %v1607 = vld [vmem:[%s1 + $0x168] sm:$0xff]
    %v1608 = vld [vmem:[%s1 + $0x170] sm:$0xff]
    %v1609 = vld [vmem:[%s1 + $0x178] sm:$0xff]
    %v1610 = vld [vmem:[%s1 + $0x180] sm:$0xff]
    %v1611 = vld [vmem:[%s1 + $0x188] sm:$0xff]
    %v1612 = vld [vmem:[%s1 + $0x190] sm:$0xff]
    %v1613 = vld [vmem:[%s1 + $0x198] sm:$0xff]
    %v1614 = vld [vmem:[%s1 + $0x1a0] sm:$0xff]
    %v1615 = vld [vmem:[%s1 + $0x1a8] sm:$0xff]
    %v1616 = vld [vmem:[%s1 + $0x1b0] sm:$0xff]
    %v1617 = vld [vmem:[%s1 + $0x1b8] sm:$0xff]
    %v1618 = vld [vmem:[%s1 + $0x1c0] sm:$0xff]
    %v1619 = vld [vmem:[%s1 + $0x1c8] sm:$0xff]
    %v1620 = vld [vmem:[%s1 + $0x1d0] sm:$0xff]
    %v1621 = vld [vmem:[%s1 + $0x1d8] sm:$0xff]
    %v1622 = vld [vmem:[%s1 + $0x1e0] sm:$0xff]
    %v1623 = vld [vmem:[%s1 + $0x1e8] sm:$0xff]
    %v1624 = vld [vmem:[%s1 + $0x1f0] sm:$0xff]
    %v1625 = vld [vmem:[%s1 + $0x1f8] sm:$0xff]
    %1627 = vset.pattern.permute.xlu0 0
    %1628 = vperm.xlu0 %1627, %v1562
    %v1629 = vpop.permute.xlu0 %1628
    %1632 = vset.pattern.permute.xlu0 0
    %1633 = vperm.xlu0 %1632, %v1563
    %v1634 = vpop.permute.xlu0 %1633
    %1637 = vset.pattern.permute.xlu0 0
    %1638 = vperm.xlu0 %1637, %v1564
    %v1639 = vpop.permute.xlu0 %1638
    %1642 = vset.pattern.permute.xlu0 0
    %1643 = vperm.xlu0 %1642, %v1565
    %v1644 = vpop.permute.xlu0 %1643
    %1647 = vset.pattern.permute.xlu0 0
    %1648 = vperm.xlu0 %1647, %v1566
    %v1649 = vpop.permute.xlu0 %1648
    %1652 = vset.pattern.permute.xlu0 0
    %1653 = vperm.xlu0 %1652, %v1567
    %v1654 = vpop.permute.xlu0 %1653
    %1657 = vset.pattern.permute.xlu0 0
    %1658 = vperm.xlu0 %1657, %v1568
    %v1659 = vpop.permute.xlu0 %1658
    %1662 = vset.pattern.permute.xlu0 0
    %1663 = vperm.xlu0 %1662, %v1569
    %v1664 = vpop.permute.xlu0 %1663
    %1667 = vset.pattern.permute.xlu0 0
    %1668 = vperm.xlu0 %1667, %v1570
    %v1669 = vpop.permute.xlu0 %1668
    %1672 = vset.pattern.permute.xlu0 0
    %1673 = vperm.xlu0 %1672, %v1571
    %v1674 = vpop.permute.xlu0 %1673
    %1677 = vset.pattern.permute.xlu0 0
    %1678 = vperm.xlu0 %1677, %v1572
    %v1679 = vpop.permute.xlu0 %1678
    %1682 = vset.pattern.permute.xlu0 0
    %1683 = vperm.xlu0 %1682, %v1573
    %v1684 = vpop.permute.xlu0 %1683
    %1687 = vset.pattern.permute.xlu0 0
    %1688 = vperm.xlu0 %1687, %v1574
    %v1689 = vpop.permute.xlu0 %1688
    %1692 = vset.pattern.permute.xlu0 0
    %1693 = vperm.xlu0 %1692, %v1575
    %v1694 = vpop.permute.xlu0 %1693
    %1697 = vset.pattern.permute.xlu0 0
    %1698 = vperm.xlu0 %1697, %v1576
    %v1699 = vpop.permute.xlu0 %1698
    %1702 = vset.pattern.permute.xlu0 0
    %1703 = vperm.xlu0 %1702, %v1577
    %v1704 = vpop.permute.xlu0 %1703
    %1707 = vset.pattern.permute.xlu0 0
    %1708 = vperm.xlu0 %1707, %v1578
    %v1709 = vpop.permute.xlu0 %1708
    %1712 = vset.pattern.permute.xlu0 0
    %1713 = vperm.xlu0 %1712, %v1579
    %v1714 = vpop.permute.xlu0 %1713
    %1717 = vset.pattern.permute.xlu0 0
    %1718 = vperm.xlu0 %1717, %v1580
    %v1719 = vpop.permute.xlu0 %1718
    %1722 = vset.pattern.permute.xlu0 0
    %1723 = vperm.xlu0 %1722, %v1581
    %v1724 = vpop.permute.xlu0 %1723
    %1727 = vset.pattern.permute.xlu0 0
    %1728 = vperm.xlu0 %1727, %v1582
    %v1729 = vpop.permute.xlu0 %1728
    %1732 = vset.pattern.permute.xlu0 0
    %1733 = vperm.xlu0 %1732, %v1583
    %v1734 = vpop.permute.xlu0 %1733
    %1737 = vset.pattern.permute.xlu0 0
    %1738 = vperm.xlu0 %1737, %v1584
    %v1739 = vpop.permute.xlu0 %1738
    %1742 = vset.pattern.permute.xlu0 0
    %1743 = vperm.xlu0 %1742, %v1585
    %v1744 = vpop.permute.xlu0 %1743
    %1747 = vset.pattern.permute.xlu0 0
    %1748 = vperm.xlu0 %1747, %v1586
    %v1749 = vpop.permute.xlu0 %1748
    %1752 = vset.pattern.permute.xlu0 0
    %1753 = vperm.xlu0 %1752, %v1587
    %v1754 = vpop.permute.xlu0 %1753
    %1757 = vset.pattern.permute.xlu0 0
    %1758 = vperm.xlu0 %1757, %v1588
    %v1759 = vpop.permute.xlu0 %1758
    %1762 = vset.pattern.permute.xlu0 0
    %1763 = vperm.xlu0 %1762, %v1589
    %v1764 = vpop.permute.xlu0 %1763
    %1767 = vset.pattern.permute.xlu0 0
    %1768 = vperm.xlu0 %1767, %v1590
    %v1769 = vpop.permute.xlu0 %1768
    %1772 = vset.pattern.permute.xlu0 0
    %1773 = vperm.xlu0 %1772, %v1591
    %v1774 = vpop.permute.xlu0 %1773
    %1777 = vset.pattern.permute.xlu0 0
    %1778 = vperm.xlu0 %1777, %v1592
    %v1779 = vpop.permute.xlu0 %1778
    %1782 = vset.pattern.permute.xlu0 0
    %1783 = vperm.xlu0 %1782, %v1593
    %v1784 = vpop.permute.xlu0 %1783
    %1787 = vset.pattern.permute.xlu0 0
    %1788 = vperm.xlu0 %1787, %v1594
    %v1789 = vpop.permute.xlu0 %1788
    %1792 = vset.pattern.permute.xlu0 0
    %1793 = vperm.xlu0 %1792, %v1595
    %v1794 = vpop.permute.xlu0 %1793
    %1797 = vset.pattern.permute.xlu0 0
    %1798 = vperm.xlu0 %1797, %v1596
    %v1799 = vpop.permute.xlu0 %1798
    %1802 = vset.pattern.permute.xlu0 0
    %1803 = vperm.xlu0 %1802, %v1597
    %v1804 = vpop.permute.xlu0 %1803
    %1807 = vset.pattern.permute.xlu0 0
    %1808 = vperm.xlu0 %1807, %v1598
    %v1809 = vpop.permute.xlu0 %1808
    %1812 = vset.pattern.permute.xlu0 0
    %1813 = vperm.xlu0 %1812, %v1599
    %v1814 = vpop.permute.xlu0 %1813
    %1817 = vset.pattern.permute.xlu0 0
    %1818 = vperm.xlu0 %1817, %v1600
    %v1819 = vpop.permute.xlu0 %1818
    %1822 = vset.pattern.permute.xlu0 0
    %1823 = vperm.xlu0 %1822, %v1601
    %v1824 = vpop.permute.xlu0 %1823
    %1827 = vset.pattern.permute.xlu0 0
    %1828 = vperm.xlu0 %1827, %v1602
    %v1829 = vpop.permute.xlu0 %1828
    %1832 = vset.pattern.permute.xlu0 0
    %1833 = vperm.xlu0 %1832, %v1603
    %v1834 = vpop.permute.xlu0 %1833
    %1837 = vset.pattern.permute.xlu0 0
    %1838 = vperm.xlu0 %1837, %v1604
    %v1839 = vpop.permute.xlu0 %1838
    %1842 = vset.pattern.permute.xlu0 0
    %1843 = vperm.xlu0 %1842, %v1605
    %v1844 = vpop.permute.xlu0 %1843
    %1847 = vset.pattern.permute.xlu0 0
    %1848 = vperm.xlu0 %1847, %v1606
    %v1849 = vpop.permute.xlu0 %1848
    %1852 = vset.pattern.permute.xlu0 0
    %1853 = vperm.xlu0 %1852, %v1607
    %v1854 = vpop.permute.xlu0 %1853
    %1857 = vset.pattern.permute.xlu0 0
    %1858 = vperm.xlu0 %1857, %v1608
    %v1859 = vpop.permute.xlu0 %1858
    %1862 = vset.pattern.permute.xlu0 0
    %1863 = vperm.xlu0 %1862, %v1609
    %v1864 = vpop.permute.xlu0 %1863
    %1867 = vset.pattern.permute.xlu0 0
    %1868 = vperm.xlu0 %1867, %v1610
    %v1869 = vpop.permute.xlu0 %1868
    %1872 = vset.pattern.permute.xlu0 0
    %1873 = vperm.xlu0 %1872, %v1611
    %v1874 = vpop.permute.xlu0 %1873
    %1877 = vset.pattern.permute.xlu0 0
    %1878 = vperm.xlu0 %1877, %v1612
    %v1879 = vpop.permute.xlu0 %1878
    %1882 = vset.pattern.permute.xlu0 0
    %1883 = vperm.xlu0 %1882, %v1613
    %v1884 = vpop.permute.xlu0 %1883
    %1887 = vset.pattern.permute.xlu0 0
    %1888 = vperm.xlu0 %1887, %v1614
    %v1889 = vpop.permute.xlu0 %1888
    %1892 = vset.pattern.permute.xlu0 0
    %1893 = vperm.xlu0 %1892, %v1615
    %v1894 = vpop.permute.xlu0 %1893
    %1897 = vset.pattern.permute.xlu0 0
    %1898 = vperm.xlu0 %1897, %v1616
    %v1899 = vpop.permute.xlu0 %1898
    %1902 = vset.pattern.permute.xlu0 0
    %1903 = vperm.xlu0 %1902, %v1617
    %v1904 = vpop.permute.xlu0 %1903
    %1907 = vset.pattern.permute.xlu0 0
    %1908 = vperm.xlu0 %1907, %v1618
    %v1909 = vpop.permute.xlu0 %1908
    %1912 = vset.pattern.permute.xlu0 0
    %1913 = vperm.xlu0 %1912, %v1619
    %v1914 = vpop.permute.xlu0 %1913
    %1917 = vset.pattern.permute.xlu0 0
    %1918 = vperm.xlu0 %1917, %v1620
    %v1919 = vpop.permute.xlu0 %1918
    %1922 = vset.pattern.permute.xlu0 0
    %1923 = vperm.xlu0 %1922, %v1621
    %v1924 = vpop.permute.xlu0 %1923
    %1927 = vset.pattern.permute.xlu0 0
    %1928 = vperm.xlu0 %1927, %v1622
    %v1929 = vpop.permute.xlu0 %1928
    %1932 = vset.pattern.permute.xlu0 0
    %1933 = vperm.xlu0 %1932, %v1623
    %v1934 = vpop.permute.xlu0 %1933
    %1937 = vset.pattern.permute.xlu0 0
    %1938 = vperm.xlu0 %1937, %v1624
    %v1939 = vpop.permute.xlu0 %1938
    %1942 = vset.pattern.permute.xlu0 0
    %1943 = vperm.xlu0 %1942, %v1625
    %v1944 = vpop.permute.xlu0 %1943
    %v1946 = vmul.f32 %v1403, %v1629
    %v1947 = vmul.f32 %v1405, %v1634
    %v1948 = vmul.f32 %v1408, %v1639
    %v1949 = vmul.f32 %v1410, %v1644
    %v1950 = vmul.f32 %v1413, %v1649
    %v1951 = vmul.f32 %v1415, %v1654
    %v1952 = vmul.f32 %v1418, %v1659
    %v1953 = vmul.f32 %v1420, %v1664
    %v1954 = vmul.f32 %v1423, %v1669
    %v1955 = vmul.f32 %v1425, %v1674
    %v1956 = vmul.f32 %v1428, %v1679
    %v1957 = vmul.f32 %v1430, %v1684
    %v1958 = vmul.f32 %v1433, %v1689
    %v1959 = vmul.f32 %v1435, %v1694
    %v1960 = vmul.f32 %v1438, %v1699
    %v1961 = vmul.f32 %v1440, %v1704
    %v1962 = vmul.f32 %v1443, %v1709
    %v1963 = vmul.f32 %v1445, %v1714
    %v1964 = vmul.f32 %v1448, %v1719
    %v1965 = vmul.f32 %v1450, %v1724
    %v1966 = vmul.f32 %v1453, %v1729
    %v1967 = vmul.f32 %v1455, %v1734
    %v1968 = vmul.f32 %v1458, %v1739
    %v1969 = vmul.f32 %v1460, %v1744
    %v1970 = vmul.f32 %v1463, %v1749
    %v1971 = vmul.f32 %v1465, %v1754
    %v1972 = vmul.f32 %v1468, %v1759
    %v1973 = vmul.f32 %v1470, %v1764
    %v1974 = vmul.f32 %v1473, %v1769
    %v1975 = vmul.f32 %v1475, %v1774
    %v1976 = vmul.f32 %v1478, %v1779
    %v1977 = vmul.f32 %v1480, %v1784
    %v1978 = vmul.f32 %v1483, %v1789
    %v1979 = vmul.f32 %v1485, %v1794
    %v1980 = vmul.f32 %v1488, %v1799
    %v1981 = vmul.f32 %v1490, %v1804
    %v1982 = vmul.f32 %v1493, %v1809
    %v1983 = vmul.f32 %v1495, %v1814
    %v1984 = vmul.f32 %v1498, %v1819
    %v1985 = vmul.f32 %v1500, %v1824
    %v1986 = vmul.f32 %v1503, %v1829
    %v1987 = vmul.f32 %v1505, %v1834
    %v1988 = vmul.f32 %v1508, %v1839
    %v1989 = vmul.f32 %v1510, %v1844
    %v1990 = vmul.f32 %v1513, %v1849
    %v1991 = vmul.f32 %v1515, %v1854
    %v1992 = vmul.f32 %v1518, %v1859
    %v1993 = vmul.f32 %v1520, %v1864
    %v1994 = vmul.f32 %v1523, %v1869
    %v1995 = vmul.f32 %v1525, %v1874
    %v1996 = vmul.f32 %v1528, %v1879
    %v1997 = vmul.f32 %v1530, %v1884
    %v1998 = vmul.f32 %v1533, %v1889
    %v1999 = vmul.f32 %v1535, %v1894
    %v2000 = vmul.f32 %v1538, %v1899
    %v2001 = vmul.f32 %v1540, %v1904
    %v2002 = vmul.f32 %v1543, %v1909
    %v2003 = vmul.f32 %v1545, %v1914
    %v2004 = vmul.f32 %v1548, %v1919
    %v2005 = vmul.f32 %v1550, %v1924
    %v2006 = vmul.f32 %v1553, %v1929
    %v2007 = vmul.f32 %v1555, %v1934
    %v2008 = vmul.f32 %v1558, %v1939
    %v2009 = vmul.f32 %v1560, %v1944
    %s2010 = scalar_lea.vmem %s2, %s21
    %v2011 = vld [vmem:[%s2010] sm:$0xff]
    %v2012 = vld [vmem:[%s2010 + $0x8] sm:$0xff]
    %v2013 = vld [vmem:[%s2010 + $0x10] sm:$0xff]
    %v2014 = vld [vmem:[%s2010 + $0x18] sm:$0xff]
    %v2015 = vld [vmem:[%s2010 + $0x20] sm:$0xff]
    %v2016 = vld [vmem:[%s2010 + $0x28] sm:$0xff]
    %v2017 = vld [vmem:[%s2010 + $0x30] sm:$0xff]
    %v2018 = vld [vmem:[%s2010 + $0x38] sm:$0xff]
    %v2019 = vld [vmem:[%s2010 + $0x40] sm:$0xff]
    %v2020 = vld [vmem:[%s2010 + $0x48] sm:$0xff]
    %v2021 = vld [vmem:[%s2010 + $0x50] sm:$0xff]
    %v2022 = vld [vmem:[%s2010 + $0x58] sm:$0xff]
    %v2023 = vld [vmem:[%s2010 + $0x60] sm:$0xff]
    %v2024 = vld [vmem:[%s2010 + $0x68] sm:$0xff]
    %v2025 = vld [vmem:[%s2010 + $0x70] sm:$0xff]
    %v2026 = vld [vmem:[%s2010 + $0x78] sm:$0xff]
    %v2027 = vld [vmem:[%s2010 + $0x80] sm:$0xff]
    %v2028 = vld [vmem:[%s2010 + $0x88] sm:$0xff]
    %v2029 = vld [vmem:[%s2010 + $0x90] sm:$0xff]
    %v2030 = vld [vmem:[%s2010 + $0x98] sm:$0xff]
    %v2031 = vld [vmem:[%s2010 + $0xa0] sm:$0xff]
    %v2032 = vld [vmem:[%s2010 + $0xa8] sm:$0xff]
    %v2033 = vld [vmem:[%s2010 + $0xb0] sm:$0xff]
    %v2034 = vld [vmem:[%s2010 + $0xb8] sm:$0xff]
    %v2035 = vld [vmem:[%s2010 + $0xc0] sm:$0xff]
    %v2036 = vld [vmem:[%s2010 + $0xc8] sm:$0xff]
    %v2037 = vld [vmem:[%s2010 + $0xd0] sm:$0xff]
    %v2038 = vld [vmem:[%s2010 + $0xd8] sm:$0xff]
    %v2039 = vld [vmem:[%s2010 + $0xe0] sm:$0xff]
    %v2040 = vld [vmem:[%s2010 + $0xe8] sm:$0xff]
    %v2041 = vld [vmem:[%s2010 + $0xf0] sm:$0xff]
    %v2042 = vld [vmem:[%s2010 + $0xf8] sm:$0xff]
    %v2043 = vld [vmem:[%s2010 + $0x100] sm:$0xff]
    %v2044 = vld [vmem:[%s2010 + $0x108] sm:$0xff]
    %v2045 = vld [vmem:[%s2010 + $0x110] sm:$0xff]
    %v2046 = vld [vmem:[%s2010 + $0x118] sm:$0xff]
    %v2047 = vld [vmem:[%s2010 + $0x120] sm:$0xff]
    %v2048 = vld [vmem:[%s2010 + $0x128] sm:$0xff]
    %v2049 = vld [vmem:[%s2010 + $0x130] sm:$0xff]
    %v2050 = vld [vmem:[%s2010 + $0x138] sm:$0xff]
    %v2051 = vld [vmem:[%s2010 + $0x140] sm:$0xff]
    %v2052 = vld [vmem:[%s2010 + $0x148] sm:$0xff]
    %v2053 = vld [vmem:[%s2010 + $0x150] sm:$0xff]
    %v2054 = vld [vmem:[%s2010 + $0x158] sm:$0xff]
    %v2055 = vld [vmem:[%s2010 + $0x160] sm:$0xff]
    %v2056 = vld [vmem:[%s2010 + $0x168] sm:$0xff]
    %v2057 = vld [vmem:[%s2010 + $0x170] sm:$0xff]
    %v2058 = vld [vmem:[%s2010 + $0x178] sm:$0xff]
    %v2059 = vld [vmem:[%s2010 + $0x180] sm:$0xff]
    %v2060 = vld [vmem:[%s2010 + $0x188] sm:$0xff]
    %v2061 = vld [vmem:[%s2010 + $0x190] sm:$0xff]
    %v2062 = vld [vmem:[%s2010 + $0x198] sm:$0xff]
    %v2063 = vld [vmem:[%s2010 + $0x1a0] sm:$0xff]
    %v2064 = vld [vmem:[%s2010 + $0x1a8] sm:$0xff]
    %v2065 = vld [vmem:[%s2010 + $0x1b0] sm:$0xff]
    %v2066 = vld [vmem:[%s2010 + $0x1b8] sm:$0xff]
    %v2067 = vld [vmem:[%s2010 + $0x1c0] sm:$0xff]
    %v2068 = vld [vmem:[%s2010 + $0x1c8] sm:$0xff]
    %v2069 = vld [vmem:[%s2010 + $0x1d0] sm:$0xff]
    %v2070 = vld [vmem:[%s2010 + $0x1d8] sm:$0xff]
    %v2071 = vld [vmem:[%s2010 + $0x1e0] sm:$0xff]
    %v2072 = vld [vmem:[%s2010 + $0x1e8] sm:$0xff]
    %v2073 = vld [vmem:[%s2010 + $0x1f0] sm:$0xff]
    %v2074 = vld [vmem:[%s2010 + $0x1f8] sm:$0xff]
    %2139 = vrot.lane.b32.xlu0 %v2011, 16
    %v2140 = vpop.permute.xlu0 %2139
    %2141 = vrot.lane.b32.xlu0 %v2012, 16
    %v2142 = vpop.permute.xlu0 %2141
    %2143 = vrot.lane.b32.xlu0 %v2013, 16
    %v2144 = vpop.permute.xlu0 %2143
    %2145 = vrot.lane.b32.xlu0 %v2014, 16
    %v2146 = vpop.permute.xlu0 %2145
    %2147 = vrot.lane.b32.xlu0 %v2015, 16
    %v2148 = vpop.permute.xlu0 %2147
    %2149 = vrot.lane.b32.xlu0 %v2016, 16
    %v2150 = vpop.permute.xlu0 %2149
    %2151 = vrot.lane.b32.xlu0 %v2017, 16
    %v2152 = vpop.permute.xlu0 %2151
    %2153 = vrot.lane.b32.xlu0 %v2018, 16
    %v2154 = vpop.permute.xlu0 %2153
    %2155 = vrot.lane.b32.xlu0 %v2019, 16
    %v2156 = vpop.permute.xlu0 %2155
    %2157 = vrot.lane.b32.xlu0 %v2020, 16
    %v2158 = vpop.permute.xlu0 %2157
    %2159 = vrot.lane.b32.xlu0 %v2021, 16
    %v2160 = vpop.permute.xlu0 %2159
    %2161 = vrot.lane.b32.xlu0 %v2022, 16
    %v2162 = vpop.permute.xlu0 %2161
    %2163 = vrot.lane.b32.xlu0 %v2023, 16
    %v2164 = vpop.permute.xlu0 %2163
    %2165 = vrot.lane.b32.xlu0 %v2024, 16
    %v2166 = vpop.permute.xlu0 %2165
    %2167 = vrot.lane.b32.xlu0 %v2025, 16
    %v2168 = vpop.permute.xlu0 %2167
    %2169 = vrot.lane.b32.xlu0 %v2026, 16
    %v2170 = vpop.permute.xlu0 %2169
    %2171 = vrot.lane.b32.xlu0 %v2027, 16
    %v2172 = vpop.permute.xlu0 %2171
    %2173 = vrot.lane.b32.xlu0 %v2028, 16
    %v2174 = vpop.permute.xlu0 %2173
    %2175 = vrot.lane.b32.xlu0 %v2029, 16
    %v2176 = vpop.permute.xlu0 %2175
    %2177 = vrot.lane.b32.xlu0 %v2030, 16
    %v2178 = vpop.permute.xlu0 %2177
    %2179 = vrot.lane.b32.xlu0 %v2031, 16
    %v2180 = vpop.permute.xlu0 %2179
    %2181 = vrot.lane.b32.xlu0 %v2032, 16
    %v2182 = vpop.permute.xlu0 %2181
    %2183 = vrot.lane.b32.xlu0 %v2033, 16
    %v2184 = vpop.permute.xlu0 %2183
    %2185 = vrot.lane.b32.xlu0 %v2034, 16
    %v2186 = vpop.permute.xlu0 %2185
    %2187 = vrot.lane.b32.xlu0 %v2035, 16
    %v2188 = vpop.permute.xlu0 %2187
    %2189 = vrot.lane.b32.xlu0 %v2036, 16
    %v2190 = vpop.permute.xlu0 %2189
    %2191 = vrot.lane.b32.xlu0 %v2037, 16
    %v2192 = vpop.permute.xlu0 %2191
    %2193 = vrot.lane.b32.xlu0 %v2038, 16
    %v2194 = vpop.permute.xlu0 %2193
    %2195 = vrot.lane.b32.xlu0 %v2039, 16
    %v2196 = vpop.permute.xlu0 %2195
    %2197 = vrot.lane.b32.xlu0 %v2040, 16
    %v2198 = vpop.permute.xlu0 %2197
    %2199 = vrot.lane.b32.xlu0 %v2041, 16
    %v2200 = vpop.permute.xlu0 %2199
    %2201 = vrot.lane.b32.xlu0 %v2042, 16
    %v2202 = vpop.permute.xlu0 %2201
    %2203 = vrot.lane.b32.xlu0 %v2043, 16
    %v2204 = vpop.permute.xlu0 %2203
    %2205 = vrot.lane.b32.xlu0 %v2044, 16
    %v2206 = vpop.permute.xlu0 %2205
    %2207 = vrot.lane.b32.xlu0 %v2045, 16
    %v2208 = vpop.permute.xlu0 %2207
    %2209 = vrot.lane.b32.xlu0 %v2046, 16
    %v2210 = vpop.permute.xlu0 %2209
    %2211 = vrot.lane.b32.xlu0 %v2047, 16
    %v2212 = vpop.permute.xlu0 %2211
    %2213 = vrot.lane.b32.xlu0 %v2048, 16
    %v2214 = vpop.permute.xlu0 %2213
    %2215 = vrot.lane.b32.xlu0 %v2049, 16
    %v2216 = vpop.permute.xlu0 %2215
    %2217 = vrot.lane.b32.xlu0 %v2050, 16
    %v2218 = vpop.permute.xlu0 %2217
    %2219 = vrot.lane.b32.xlu0 %v2051, 16
    %v2220 = vpop.permute.xlu0 %2219
    %2221 = vrot.lane.b32.xlu0 %v2052, 16
    %v2222 = vpop.permute.xlu0 %2221
    %2223 = vrot.lane.b32.xlu0 %v2053, 16
    %v2224 = vpop.permute.xlu0 %2223
    %2225 = vrot.lane.b32.xlu0 %v2054, 16
    %v2226 = vpop.permute.xlu0 %2225
    %2227 = vrot.lane.b32.xlu0 %v2055, 16
    %v2228 = vpop.permute.xlu0 %2227
    %2229 = vrot.lane.b32.xlu0 %v2056, 16
    %v2230 = vpop.permute.xlu0 %2229
    %2231 = vrot.lane.b32.xlu0 %v2057, 16
    %v2232 = vpop.permute.xlu0 %2231
    %2233 = vrot.lane.b32.xlu0 %v2058, 16
    %v2234 = vpop.permute.xlu0 %2233
    %2235 = vrot.lane.b32.xlu0 %v2059, 16
    %v2236 = vpop.permute.xlu0 %2235
    %2237 = vrot.lane.b32.xlu0 %v2060, 16
    %v2238 = vpop.permute.xlu0 %2237
    %2239 = vrot.lane.b32.xlu0 %v2061, 16
    %v2240 = vpop.permute.xlu0 %2239
    %2241 = vrot.lane.b32.xlu0 %v2062, 16
    %v2242 = vpop.permute.xlu0 %2241
    %2243 = vrot.lane.b32.xlu0 %v2063, 16
    %v2244 = vpop.permute.xlu0 %2243
    %2245 = vrot.lane.b32.xlu0 %v2064, 16
    %v2246 = vpop.permute.xlu0 %2245
    %2247 = vrot.lane.b32.xlu0 %v2065, 16
    %v2248 = vpop.permute.xlu0 %2247
    %2249 = vrot.lane.b32.xlu0 %v2066, 16
    %v2250 = vpop.permute.xlu0 %2249
    %2251 = vrot.lane.b32.xlu0 %v2067, 16
    %v2252 = vpop.permute.xlu0 %2251
    %2253 = vrot.lane.b32.xlu0 %v2068, 16
    %v2254 = vpop.permute.xlu0 %2253
    %2255 = vrot.lane.b32.xlu0 %v2069, 16
    %v2256 = vpop.permute.xlu0 %2255
    %2257 = vrot.lane.b32.xlu0 %v2070, 16
    %v2258 = vpop.permute.xlu0 %2257
    %2259 = vrot.lane.b32.xlu0 %v2071, 16
    %v2260 = vpop.permute.xlu0 %2259
    %2261 = vrot.lane.b32.xlu0 %v2072, 16
    %v2262 = vpop.permute.xlu0 %2261
    %2263 = vrot.lane.b32.xlu0 %v2073, 16
    %v2264 = vpop.permute.xlu0 %2263
    %2265 = vrot.lane.b32.xlu0 %v2074, 16
    %v2266 = vpop.permute.xlu0 %2265
    %vm2331 = vcmask 130048
    %v2332 = vsel %vm2331, %v1946, %v2140
    %v2333 = vsel %vm2331, %v1947, %v2142
    %v2334 = vsel %vm2331, %v1948, %v2144
    %v2335 = vsel %vm2331, %v1949, %v2146
    %v2336 = vsel %vm2331, %v1950, %v2148
    %v2337 = vsel %vm2331, %v1951, %v2150
    %v2338 = vsel %vm2331, %v1952, %v2152
    %v2339 = vsel %vm2331, %v1953, %v2154
    %v2340 = vsel %vm2331, %v1954, %v2156
    %v2341 = vsel %vm2331, %v1955, %v2158
    %v2342 = vsel %vm2331, %v1956, %v2160
    %v2343 = vsel %vm2331, %v1957, %v2162
    %v2344 = vsel %vm2331, %v1958, %v2164
    %v2345 = vsel %vm2331, %v1959, %v2166
    %v2346 = vsel %vm2331, %v1960, %v2168
    %v2347 = vsel %vm2331, %v1961, %v2170
    %v2348 = vsel %vm2331, %v1962, %v2172
    %v2349 = vsel %vm2331, %v1963, %v2174
    %v2350 = vsel %vm2331, %v1964, %v2176
    %v2351 = vsel %vm2331, %v1965, %v2178
    %v2352 = vsel %vm2331, %v1966, %v2180
    %v2353 = vsel %vm2331, %v1967, %v2182
    %v2354 = vsel %vm2331, %v1968, %v2184
    %v2355 = vsel %vm2331, %v1969, %v2186
    %v2356 = vsel %vm2331, %v1970, %v2188
    %v2357 = vsel %vm2331, %v1971, %v2190
    %v2358 = vsel %vm2331, %v1972, %v2192
    %v2359 = vsel %vm2331, %v1973, %v2194
    %v2360 = vsel %vm2331, %v1974, %v2196
    %v2361 = vsel %vm2331, %v1975, %v2198
    %v2362 = vsel %vm2331, %v1976, %v2200
    %v2363 = vsel %vm2331, %v1977, %v2202
    %v2364 = vsel %vm2331, %v1978, %v2204
    %v2365 = vsel %vm2331, %v1979, %v2206
    %v2366 = vsel %vm2331, %v1980, %v2208
    %v2367 = vsel %vm2331, %v1981, %v2210
    %v2368 = vsel %vm2331, %v1982, %v2212
    %v2369 = vsel %vm2331, %v1983, %v2214
    %v2370 = vsel %vm2331, %v1984, %v2216
    %v2371 = vsel %vm2331, %v1985, %v2218
    %v2372 = vsel %vm2331, %v1986, %v2220
    %v2373 = vsel %vm2331, %v1987, %v2222
    %v2374 = vsel %vm2331, %v1988, %v2224
    %v2375 = vsel %vm2331, %v1989, %v2226
    %v2376 = vsel %vm2331, %v1990, %v2228
    %v2377 = vsel %vm2331, %v1991, %v2230
    %v2378 = vsel %vm2331, %v1992, %v2232
    %v2379 = vsel %vm2331, %v1993, %v2234
    %v2380 = vsel %vm2331, %v1994, %v2236
    %v2381 = vsel %vm2331, %v1995, %v2238
    %v2382 = vsel %vm2331, %v1996, %v2240
    %v2383 = vsel %vm2331, %v1997, %v2242
    %v2384 = vsel %vm2331, %v1998, %v2244
    %v2385 = vsel %vm2331, %v1999, %v2246
    %v2386 = vsel %vm2331, %v2000, %v2248
    %v2387 = vsel %vm2331, %v2001, %v2250
    %v2388 = vsel %vm2331, %v2002, %v2252
    %v2389 = vsel %vm2331, %v2003, %v2254
    %v2390 = vsel %vm2331, %v2004, %v2256
    %v2391 = vsel %vm2331, %v2005, %v2258
    %v2392 = vsel %vm2331, %v2006, %v2260
    %v2393 = vsel %vm2331, %v2007, %v2262
    %v2394 = vsel %vm2331, %v2008, %v2264
    %v2395 = vsel %vm2331, %v2009, %v2266
    %v2396 = vld [vmem:[%s3] sm:$0xff]
    %v2397 = vld [vmem:[%s3 + $0x8] sm:$0xff]
    %v2398 = vld [vmem:[%s3 + $0x10] sm:$0xff]
    %v2399 = vld [vmem:[%s3 + $0x18] sm:$0xff]
    %v2400 = vld [vmem:[%s4] sm:$0x1]
    %v2402 = vperm.slane %v2400, 0
    %vm2404 = vcmask 261120
    %v2406 = vsel %vm2404, %v2332, 0
    %v2409 = vsel %vm2404, %v2333, 0
    %v2412 = vsel %vm2404, %v2334, 0
    %v2415 = vsel %vm2404, %v2335, 0
    %v2418 = vsel %vm2404, %v2336, 0
    %v2421 = vsel %vm2404, %v2337, 0
    %v2424 = vsel %vm2404, %v2338, 0
    %v2427 = vsel %vm2404, %v2339, 0
    %v2430 = vsel %vm2404, %v2340, 0
    %v2433 = vsel %vm2404, %v2341, 0
    %v2436 = vsel %vm2404, %v2342, 0
    %v2439 = vsel %vm2404, %v2343, 0
    %v2442 = vsel %vm2404, %v2344, 0
    %v2445 = vsel %vm2404, %v2345, 0
    %v2448 = vsel %vm2404, %v2346, 0
    %v2451 = vsel %vm2404, %v2347, 0
    %v2454 = vsel %vm2404, %v2348, 0
    %v2457 = vsel %vm2404, %v2349, 0
    %v2460 = vsel %vm2404, %v2350, 0
    %v2463 = vsel %vm2404, %v2351, 0
    %v2466 = vsel %vm2404, %v2352, 0
    %v2469 = vsel %vm2404, %v2353, 0
    %v2472 = vsel %vm2404, %v2354, 0
    %v2475 = vsel %vm2404, %v2355, 0
    %v2478 = vsel %vm2404, %v2356, 0
    %v2481 = vsel %vm2404, %v2357, 0
    %v2484 = vsel %vm2404, %v2358, 0
    %v2487 = vsel %vm2404, %v2359, 0
    %v2490 = vsel %vm2404, %v2360, 0
    %v2493 = vsel %vm2404, %v2361, 0
    %v2496 = vsel %vm2404, %v2362, 0
    %v2499 = vsel %vm2404, %v2363, 0
    %v2502 = vsel %vm2404, %v2364, 0
    %v2505 = vsel %vm2404, %v2365, 0
    %v2508 = vsel %vm2404, %v2366, 0
    %v2511 = vsel %vm2404, %v2367, 0
    %v2514 = vsel %vm2404, %v2368, 0
    %v2517 = vsel %vm2404, %v2369, 0
    %v2520 = vsel %vm2404, %v2370, 0
    %v2523 = vsel %vm2404, %v2371, 0
    %v2526 = vsel %vm2404, %v2372, 0
    %v2529 = vsel %vm2404, %v2373, 0
    %v2532 = vsel %vm2404, %v2374, 0
    %v2535 = vsel %vm2404, %v2375, 0
    %v2538 = vsel %vm2404, %v2376, 0
    %v2541 = vsel %vm2404, %v2377, 0
    %v2544 = vsel %vm2404, %v2378, 0
    %v2547 = vsel %vm2404, %v2379, 0
    %v2550 = vsel %vm2404, %v2380, 0
    %v2553 = vsel %vm2404, %v2381, 0
    %v2556 = vsel %vm2404, %v2382, 0
    %v2559 = vsel %vm2404, %v2383, 0
    %v2562 = vsel %vm2404, %v2384, 0
    %v2565 = vsel %vm2404, %v2385, 0
    %v2568 = vsel %vm2404, %v2386, 0
    %v2571 = vsel %vm2404, %v2387, 0
    %v2574 = vsel %vm2404, %v2388, 0
    %v2577 = vsel %vm2404, %v2389, 0
    %v2580 = vsel %vm2404, %v2390, 0
    %v2583 = vsel %vm2404, %v2391, 0
    %v2586 = vsel %vm2404, %v2392, 0
    %v2589 = vsel %vm2404, %v2393, 0
    %v2592 = vsel %vm2404, %v2394, 0
    %v2595 = vsel %vm2404, %v2395, 0
    %2597 = vmatpush.msra.mxu0 0.0
    %2598 = vmatpush.msra.mxu0 0.0
    %2599 = vmatpush.msra.mxu0 0.0
    %2600 = vmatpush.msra.mxu0 0.0
    %2601 = vmatpush.msra.mxu0 0.0
    %2602 = vmatpush.msra.mxu0 0.0
    %2603 = vmatpush.msra.mxu0 0.0
    %2604 = vmatpush.msra.mxu0 0.0
    %2605 = vmatpush.msra.mxu0 0.0
    %2606 = vmatpush.msra.mxu0 0.0
    %2607 = vmatpush.msra.mxu0 0.0
    %2608 = vmatpush.msra.mxu0 0.0
    %2609 = vmatpush.msra.mxu0 %v2399
    %2610 = vmatpush.msra.mxu0 %v2398
    %2611 = vmatpush.msra.mxu0 %v2397
    %2612 = vmatpush.msra.mxu0 %v2396
    %2613 = vmatmul.f32.gmra.mxu0 %v2406
    %v2614 = vpop.f32.mrf.mxu0
    %v2615 = vadd.f32 %v2402, %v2614
    %2616 = vmatmul.f32.gmra.mxu0 %v2409
    %v2617 = vpop.f32.mrf.mxu0
    %v2618 = vadd.f32 %v2402, %v2617
    %2619 = vmatmul.f32.gmra.mxu0 %v2412
    %v2620 = vpop.f32.mrf.mxu0
    %v2621 = vadd.f32 %v2402, %v2620
    %2622 = vmatmul.f32.gmra.mxu0 %v2415
    %v2623 = vpop.f32.mrf.mxu0
    %v2624 = vadd.f32 %v2402, %v2623
    %2625 = vmatmul.f32.gmra.mxu0 %v2418
    %v2626 = vpop.f32.mrf.mxu0
    %v2627 = vadd.f32 %v2402, %v2626
    %2628 = vmatmul.f32.gmra.mxu0 %v2421
    %v2629 = vpop.f32.mrf.mxu0
    %v2630 = vadd.f32 %v2402, %v2629
    %2631 = vmatmul.f32.gmra.mxu0 %v2424
    %v2632 = vpop.f32.mrf.mxu0
    %v2633 = vadd.f32 %v2402, %v2632
    %2634 = vmatmul.f32.gmra.mxu0 %v2427
    %v2635 = vpop.f32.mrf.mxu0
    %v2636 = vadd.f32 %v2402, %v2635
    %2637 = vmatmul.f32.gmra.mxu0 %v2430
    %v2638 = vpop.f32.mrf.mxu0
    %v2639 = vadd.f32 %v2402, %v2638
    %2640 = vmatmul.f32.gmra.mxu0 %v2433
    %v2641 = vpop.f32.mrf.mxu0
    %v2642 = vadd.f32 %v2402, %v2641
    %2643 = vmatmul.f32.gmra.mxu0 %v2436
    %v2644 = vpop.f32.mrf.mxu0
    %v2645 = vadd.f32 %v2402, %v2644
    %2646 = vmatmul.f32.gmra.mxu0 %v2439
    %v2647 = vpop.f32.mrf.mxu0
    %v2648 = vadd.f32 %v2402, %v2647
    %2649 = vmatmul.f32.gmra.mxu0 %v2442
    %v2650 = vpop.f32.mrf.mxu0
    %v2651 = vadd.f32 %v2402, %v2650
    %2652 = vmatmul.f32.gmra.mxu0 %v2445
    %v2653 = vpop.f32.mrf.mxu0
    %v2654 = vadd.f32 %v2402, %v2653
    %2655 = vmatmul.f32.gmra.mxu0 %v2448
    %v2656 = vpop.f32.mrf.mxu0
    %v2657 = vadd.f32 %v2402, %v2656
    %2658 = vmatmul.f32.gmra.mxu0 %v2451
    %v2659 = vpop.f32.mrf.mxu0
    %v2660 = vadd.f32 %v2402, %v2659
    %2661 = vmatmul.f32.gmra.mxu0 %v2454
    %v2662 = vpop.f32.mrf.mxu0
    %v2663 = vadd.f32 %v2402, %v2662
    %2664 = vmatmul.f32.gmra.mxu0 %v2457
    %v2665 = vpop.f32.mrf.mxu0
    %v2666 = vadd.f32 %v2402, %v2665
    %2667 = vmatmul.f32.gmra.mxu0 %v2460
    %v2668 = vpop.f32.mrf.mxu0
    %v2669 = vadd.f32 %v2402, %v2668
    %2670 = vmatmul.f32.gmra.mxu0 %v2463
    %v2671 = vpop.f32.mrf.mxu0
    %v2672 = vadd.f32 %v2402, %v2671
    %2673 = vmatmul.f32.gmra.mxu0 %v2466
    %v2674 = vpop.f32.mrf.mxu0
    %v2675 = vadd.f32 %v2402, %v2674
    %2676 = vmatmul.f32.gmra.mxu0 %v2469
    %v2677 = vpop.f32.mrf.mxu0
    %v2678 = vadd.f32 %v2402, %v2677
    %2679 = vmatmul.f32.gmra.mxu0 %v2472
    %v2680 = vpop.f32.mrf.mxu0
    %v2681 = vadd.f32 %v2402, %v2680
    %2682 = vmatmul.f32.gmra.mxu0 %v2475
    %v2683 = vpop.f32.mrf.mxu0
    %v2684 = vadd.f32 %v2402, %v2683
    %2685 = vmatmul.f32.gmra.mxu0 %v2478
    %v2686 = vpop.f32.mrf.mxu0
    %v2687 = vadd.f32 %v2402, %v2686
    %2688 = vmatmul.f32.gmra.mxu0 %v2481
    %v2689 = vpop.f32.mrf.mxu0
    %v2690 = vadd.f32 %v2402, %v2689
    %2691 = vmatmul.f32.gmra.mxu0 %v2484
    %v2692 = vpop.f32.mrf.mxu0
    %v2693 = vadd.f32 %v2402, %v2692
    %2694 = vmatmul.f32.gmra.mxu0 %v2487
    %v2695 = vpop.f32.mrf.mxu0
    %v2696 = vadd.f32 %v2402, %v2695
    %2697 = vmatmul.f32.gmra.mxu0 %v2490
    %v2698 = vpop.f32.mrf.mxu0
    %v2699 = vadd.f32 %v2402, %v2698
    %2700 = vmatmul.f32.gmra.mxu0 %v2493
    %v2701 = vpop.f32.mrf.mxu0
    %v2702 = vadd.f32 %v2402, %v2701
    %2703 = vmatmul.f32.gmra.mxu0 %v2496
    %v2704 = vpop.f32.mrf.mxu0
    %v2705 = vadd.f32 %v2402, %v2704
    %2706 = vmatmul.f32.gmra.mxu0 %v2499
    %v2707 = vpop.f32.mrf.mxu0
    %v2708 = vadd.f32 %v2402, %v2707
    %2709 = vmatmul.f32.gmra.mxu0 %v2502
    %v2710 = vpop.f32.mrf.mxu0
    %v2711 = vadd.f32 %v2402, %v2710
    %2712 = vmatmul.f32.gmra.mxu0 %v2505
    %v2713 = vpop.f32.mrf.mxu0
    %v2714 = vadd.f32 %v2402, %v2713
    %2715 = vmatmul.f32.gmra.mxu0 %v2508
    %v2716 = vpop.f32.mrf.mxu0
    %v2717 = vadd.f32 %v2402, %v2716
    %2718 = vmatmul.f32.gmra.mxu0 %v2511
    %v2719 = vpop.f32.mrf.mxu0
    %v2720 = vadd.f32 %v2402, %v2719
    %2721 = vmatmul.f32.gmra.mxu0 %v2514
    %v2722 = vpop.f32.mrf.mxu0
    %v2723 = vadd.f32 %v2402, %v2722
    %2724 = vmatmul.f32.gmra.mxu0 %v2517
    %v2725 = vpop.f32.mrf.mxu0
    %v2726 = vadd.f32 %v2402, %v2725
    %2727 = vmatmul.f32.gmra.mxu0 %v2520
    %v2728 = vpop.f32.mrf.mxu0
    %v2729 = vadd.f32 %v2402, %v2728
    %2730 = vmatmul.f32.gmra.mxu0 %v2523
    %v2731 = vpop.f32.mrf.mxu0
    %v2732 = vadd.f32 %v2402, %v2731
    %2733 = vmatmul.f32.gmra.mxu0 %v2526
    %v2734 = vpop.f32.mrf.mxu0
    %v2735 = vadd.f32 %v2402, %v2734
    %2736 = vmatmul.f32.gmra.mxu0 %v2529
    %v2737 = vpop.f32.mrf.mxu0
    %v2738 = vadd.f32 %v2402, %v2737
    %2739 = vmatmul.f32.gmra.mxu0 %v2532
    %v2740 = vpop.f32.mrf.mxu0
    %v2741 = vadd.f32 %v2402, %v2740
    %2742 = vmatmul.f32.gmra.mxu0 %v2535
    %v2743 = vpop.f32.mrf.mxu0
    %v2744 = vadd.f32 %v2402, %v2743
    %2745 = vmatmul.f32.gmra.mxu0 %v2538
    %v2746 = vpop.f32.mrf.mxu0
    %v2747 = vadd.f32 %v2402, %v2746
    %2748 = vmatmul.f32.gmra.mxu0 %v2541
    %v2749 = vpop.f32.mrf.mxu0
    %v2750 = vadd.f32 %v2402, %v2749
    %2751 = vmatmul.f32.gmra.mxu0 %v2544
    %v2752 = vpop.f32.mrf.mxu0
    %v2753 = vadd.f32 %v2402, %v2752
    %2754 = vmatmul.f32.gmra.mxu0 %v2547
    %v2755 = vpop.f32.mrf.mxu0
    %v2756 = vadd.f32 %v2402, %v2755
    %2757 = vmatmul.f32.gmra.mxu0 %v2550
    %v2758 = vpop.f32.mrf.mxu0
    %v2759 = vadd.f32 %v2402, %v2758
    %2760 = vmatmul.f32.gmra.mxu0 %v2553
    %v2761 = vpop.f32.mrf.mxu0
    %v2762 = vadd.f32 %v2402, %v2761
    %2763 = vmatmul.f32.gmra.mxu0 %v2556
    %v2764 = vpop.f32.mrf.mxu0
    %v2765 = vadd.f32 %v2402, %v2764
    %2766 = vmatmul.f32.gmra.mxu0 %v2559
    %v2767 = vpop.f32.mrf.mxu0
    %v2768 = vadd.f32 %v2402, %v2767
    %2769 = vmatmul.f32.gmra.mxu0 %v2562
    %v2770 = vpop.f32.mrf.mxu0
    %v2771 = vadd.f32 %v2402, %v2770
    %2772 = vmatmul.f32.gmra.mxu0 %v2565
    %v2773 = vpop.f32.mrf.mxu0
    %v2774 = vadd.f32 %v2402, %v2773
    %2775 = vmatmul.f32.gmra.mxu0 %v2568
    %v2776 = vpop.f32.mrf.mxu0
    %v2777 = vadd.f32 %v2402, %v2776
    %2778 = vmatmul.f32.gmra.mxu0 %v2571
    %v2779 = vpop.f32.mrf.mxu0
    %v2780 = vadd.f32 %v2402, %v2779
    %2781 = vmatmul.f32.gmra.mxu0 %v2574
    %v2782 = vpop.f32.mrf.mxu0
    %v2783 = vadd.f32 %v2402, %v2782
    %2784 = vmatmul.f32.gmra.mxu0 %v2577
    %v2785 = vpop.f32.mrf.mxu0
    %v2786 = vadd.f32 %v2402, %v2785
    %2787 = vmatmul.f32.gmra.mxu0 %v2580
    %v2788 = vpop.f32.mrf.mxu0
    %v2789 = vadd.f32 %v2402, %v2788
    %2790 = vmatmul.f32.gmra.mxu0 %v2583
    %v2791 = vpop.f32.mrf.mxu0
    %v2792 = vadd.f32 %v2402, %v2791
    %2793 = vmatmul.f32.gmra.mxu0 %v2586
    %v2794 = vpop.f32.mrf.mxu0
    %v2795 = vadd.f32 %v2402, %v2794
    %2796 = vmatmul.f32.gmra.mxu0 %v2589
    %v2797 = vpop.f32.mrf.mxu0
    %v2798 = vadd.f32 %v2402, %v2797
    %2799 = vmatmul.f32.gmra.mxu0 %v2592
    %v2800 = vpop.f32.mrf.mxu0
    %v2801 = vadd.f32 %v2402, %v2800
    %2802 = vmatmul.f32.gmra.mxu0 %v2595
    %v2803 = vpop.f32.mrf.mxu0
    %v2804 = vadd.f32 %v2402, %v2803
    %2805 = vdwg.mxu0
    %v2806 = vmax.f32 %v2615, 0.0
    %v2807 = vmax.f32 %v2618, 0.0
    %v2808 = vmax.f32 %v2621, 0.0
    %v2809 = vmax.f32 %v2624, 0.0
    %v2810 = vmax.f32 %v2627, 0.0
    %v2811 = vmax.f32 %v2630, 0.0
    %v2812 = vmax.f32 %v2633, 0.0
    %v2813 = vmax.f32 %v2636, 0.0
    %v2814 = vmax.f32 %v2639, 0.0
    %v2815 = vmax.f32 %v2642, 0.0
    %v2816 = vmax.f32 %v2645, 0.0
    %v2817 = vmax.f32 %v2648, 0.0
    %v2818 = vmax.f32 %v2651, 0.0
    %v2819 = vmax.f32 %v2654, 0.0
    %v2820 = vmax.f32 %v2657, 0.0
    %v2821 = vmax.f32 %v2660, 0.0
    %v2822 = vmax.f32 %v2663, 0.0
    %v2823 = vmax.f32 %v2666, 0.0
    %v2824 = vmax.f32 %v2669, 0.0
    %v2825 = vmax.f32 %v2672, 0.0
    %v2826 = vmax.f32 %v2675, 0.0
    %v2827 = vmax.f32 %v2678, 0.0
    %v2828 = vmax.f32 %v2681, 0.0
    %v2829 = vmax.f32 %v2684, 0.0
    %v2830 = vmax.f32 %v2687, 0.0
    %v2831 = vmax.f32 %v2690, 0.0
    %v2832 = vmax.f32 %v2693, 0.0
    %v2833 = vmax.f32 %v2696, 0.0
    %v2834 = vmax.f32 %v2699, 0.0
    %v2835 = vmax.f32 %v2702, 0.0
    %v2836 = vmax.f32 %v2705, 0.0
    %v2837 = vmax.f32 %v2708, 0.0
    %v2838 = vmax.f32 %v2711, 0.0
    %v2839 = vmax.f32 %v2714, 0.0
    %v2840 = vmax.f32 %v2717, 0.0
    %v2841 = vmax.f32 %v2720, 0.0
    %v2842 = vmax.f32 %v2723, 0.0
    %v2843 = vmax.f32 %v2726, 0.0
    %v2844 = vmax.f32 %v2729, 0.0
    %v2845 = vmax.f32 %v2732, 0.0
    %v2846 = vmax.f32 %v2735, 0.0
    %v2847 = vmax.f32 %v2738, 0.0
    %v2848 = vmax.f32 %v2741, 0.0
    %v2849 = vmax.f32 %v2744, 0.0
    %v2850 = vmax.f32 %v2747, 0.0
    %v2851 = vmax.f32 %v2750, 0.0
    %v2852 = vmax.f32 %v2753, 0.0
    %v2853 = vmax.f32 %v2756, 0.0
    %v2854 = vmax.f32 %v2759, 0.0
    %v2855 = vmax.f32 %v2762, 0.0
    %v2856 = vmax.f32 %v2765, 0.0
    %v2857 = vmax.f32 %v2768, 0.0
    %v2858 = vmax.f32 %v2771, 0.0
    %v2859 = vmax.f32 %v2774, 0.0
    %v2860 = vmax.f32 %v2777, 0.0
    %v2861 = vmax.f32 %v2780, 0.0
    %v2862 = vmax.f32 %v2783, 0.0
    %v2863 = vmax.f32 %v2786, 0.0
    %v2864 = vmax.f32 %v2789, 0.0
    %v2865 = vmax.f32 %v2792, 0.0
    %v2866 = vmax.f32 %v2795, 0.0
    %v2867 = vmax.f32 %v2798, 0.0
    %v2868 = vmax.f32 %v2801, 0.0
    %v2869 = vmax.f32 %v2804, 0.0
    %2870 = vst [vmem:[#allocation2] sm:$0xff] %v2806
    %2871 = vst [vmem:[#allocation2 + $0x8] sm:$0xff] %v2807
    %2872 = vst [vmem:[#allocation2 + $0x10] sm:$0xff] %v2808
    %2873 = vst [vmem:[#allocation2 + $0x18] sm:$0xff] %v2809
    %2874 = vst [vmem:[#allocation2 + $0x20] sm:$0xff] %v2810
    %2875 = vst [vmem:[#allocation2 + $0x28] sm:$0xff] %v2811
    %2876 = vst [vmem:[#allocation2 + $0x30] sm:$0xff] %v2812
    %2877 = vst [vmem:[#allocation2 + $0x38] sm:$0xff] %v2813
    %2878 = vst [vmem:[#allocation2 + $0x40] sm:$0xff] %v2814
    %2879 = vst [vmem:[#allocation2 + $0x48] sm:$0xff] %v2815
    %2880 = vst [vmem:[#allocation2 + $0x50] sm:$0xff] %v2816
    %2881 = vst [vmem:[#allocation2 + $0x58] sm:$0xff] %v2817
    %2882 = vst [vmem:[#allocation2 + $0x60] sm:$0xff] %v2818
    %2883 = vst [vmem:[#allocation2 + $0x68] sm:$0xff] %v2819
    %2884 = vst [vmem:[#allocation2 + $0x70] sm:$0xff] %v2820
    %2885 = vst [vmem:[#allocation2 + $0x78] sm:$0xff] %v2821
    %2886 = vst [vmem:[#allocation2 + $0x80] sm:$0xff] %v2822
    %2887 = vst [vmem:[#allocation2 + $0x88] sm:$0xff] %v2823
    %2888 = vst [vmem:[#allocation2 + $0x90] sm:$0xff] %v2824
    %2889 = vst [vmem:[#allocation2 + $0x98] sm:$0xff] %v2825
    %2890 = vst [vmem:[#allocation2 + $0xa0] sm:$0xff] %v2826
    %2891 = vst [vmem:[#allocation2 + $0xa8] sm:$0xff] %v2827
    %2892 = vst [vmem:[#allocation2 + $0xb0] sm:$0xff] %v2828
    %2893 = vst [vmem:[#allocation2 + $0xb8] sm:$0xff] %v2829
    %2894 = vst [vmem:[#allocation2 + $0xc0] sm:$0xff] %v2830
    %2895 = vst [vmem:[#allocation2 + $0xc8] sm:$0xff] %v2831
    %2896 = vst [vmem:[#allocation2 + $0xd0] sm:$0xff] %v2832
    %2897 = vst [vmem:[#allocation2 + $0xd8] sm:$0xff] %v2833
    %2898 = vst [vmem:[#allocation2 + $0xe0] sm:$0xff] %v2834
    %2899 = vst [vmem:[#allocation2 + $0xe8] sm:$0xff] %v2835
    %2900 = vst [vmem:[#allocation2 + $0xf0] sm:$0xff] %v2836
    %2901 = vst [vmem:[#allocation2 + $0xf8] sm:$0xff] %v2837
    %2902 = vst [vmem:[#allocation2 + $0x100] sm:$0xff] %v2838
    %2903 = vst [vmem:[#allocation2 + $0x108] sm:$0xff] %v2839
    %2904 = vst [vmem:[#allocation2 + $0x110] sm:$0xff] %v2840
    %2905 = vst [vmem:[#allocation2 + $0x118] sm:$0xff] %v2841
    %2906 = vst [vmem:[#allocation2 + $0x120] sm:$0xff] %v2842
    %2907 = vst [vmem:[#allocation2 + $0x128] sm:$0xff] %v2843
    %2908 = vst [vmem:[#allocation2 + $0x130] sm:$0xff] %v2844
    %2909 = vst [vmem:[#allocation2 + $0x138] sm:$0xff] %v2845
    %2910 = vst [vmem:[#allocation2 + $0x140] sm:$0xff] %v2846
    %2911 = vst [vmem:[#allocation2 + $0x148] sm:$0xff] %v2847
    %2912 = vst [vmem:[#allocation2 + $0x150] sm:$0xff] %v2848
    %2913 = vst [vmem:[#allocation2 + $0x158] sm:$0xff] %v2849
    %2914 = vst [vmem:[#allocation2 + $0x160] sm:$0xff] %v2850
    %2915 = vst [vmem:[#allocation2 + $0x168] sm:$0xff] %v2851
    %2916 = vst [vmem:[#allocation2 + $0x170] sm:$0xff] %v2852
    %2917 = vst [vmem:[#allocation2 + $0x178] sm:$0xff] %v2853
    %2918 = vst [vmem:[#allocation2 + $0x180] sm:$0xff] %v2854
    %2919 = vst [vmem:[#allocation2 + $0x188] sm:$0xff] %v2855
    %2920 = vst [vmem:[#allocation2 + $0x190] sm:$0xff] %v2856
    %2921 = vst [vmem:[#allocation2 + $0x198] sm:$0xff] %v2857
    %2922 = vst [vmem:[#allocation2 + $0x1a0] sm:$0xff] %v2858
    %2923 = vst [vmem:[#allocation2 + $0x1a8] sm:$0xff] %v2859
    %2924 = vst [vmem:[#allocation2 + $0x1b0] sm:$0xff] %v2860
    %2925 = vst [vmem:[#allocation2 + $0x1b8] sm:$0xff] %v2861
    %2926 = vst [vmem:[#allocation2 + $0x1c0] sm:$0xff] %v2862
    %2927 = vst [vmem:[#allocation2 + $0x1c8] sm:$0xff] %v2863
    %2928 = vst [vmem:[#allocation2 + $0x1d0] sm:$0xff] %v2864
    %2929 = vst [vmem:[#allocation2 + $0x1d8] sm:$0xff] %v2865
    %2930 = vst [vmem:[#allocation2 + $0x1e0] sm:$0xff] %v2866
    %2931 = vst [vmem:[#allocation2 + $0x1e8] sm:$0xff] %v2867
    %2932 = vst [vmem:[#allocation2 + $0x1f0] sm:$0xff] %v2868
    %2933 = vst [vmem:[#allocation2 + $0x1f8] sm:$0xff] %v2869
    // Predicated region
    $region22: #{tpu_custom_call.1} parent=1 // pred_check
      _
    $region23: #{tpu_custom_call.1} parent=1 // pred_check_branch
      %2935 = sbr.rel (0) target = $region25
    $region24: #{tpu_custom_call.1} parent=1 // pred_region
      %2937 = vsyncadd [#allocation3], 0
      %s2938 = sshll.u32 [#allocation2], 4
      %s2939 = int_to_ptr.vmem [resolvable:$true] %s2938
      %s2940 = sshll.u32 %s5, 4
      %s2941 = int_to_ptr.hbm [resolvable:$true] %s2940
      %2946 = dma.vmem_to_hbm [thread:$0]  %s2939, 8192, %s2941, [#allocation3], 128, 128, 8
    $region25: #{tpu_custom_call.1} parent=1 // pred_fallthru
      _
    // Predicated region
    $region26: #{tpu_custom_call.1} parent=1 // pred_check
      _
    $region27: #{tpu_custom_call.1} parent=1 // pred_check_branch
      %2948 = sbr.rel (0) target = $region29
    $region28: #{tpu_custom_call.1} parent=1 // pred_region
      %2950 = dma.done [#allocation3], 8192
    $region29: #{tpu_custom_call.1} parent=1 // pred_fallthru
      _
    %2951 = vsyncpa [#allocation3], 1

// kernel: tpu_custom_call.1
$region0: #{tpu_custom_call.1}
  #allocation0 [shape = 'u32[]', space=smem, size = 0x4, offset = 0x4, fixed_abs, tag = 'smem constant byte address 0x4 - core index']
  #allocation1 [shape = 'u32[72,128]{1,0:T(1,128)}', space=vmem, size = 0x9000, scoped, tag = 'internal scratch']
  %s0 = inlined_call_operand.vmem [shape: bf16[512,512], index: 0, kind: input, shape index: {}]
  %s1 = inlined_call_operand.vmem [shape: f32[512,1], index: 1, kind: input, shape index: {}]
  %s2 = inlined_call_operand.vmem [shape: f32[512,16], index: 2, kind: input, shape index: {}]
  %s3 = inlined_call_operand.vmem [shape: f32[32,128], index: 3, kind: input, shape index: {}]
  %s4 = inlined_call_operand.vmem [shape: f32[1,128], index: 4, kind: input, shape index: {}]
  %s5 = inlined_call_operand.hbm [shape: f32[512,128], index: 5, kind: output, shape index: {}]
  %s6 = sld [smem:[#allocation0]]
  $region30: #{tpu_custom_call.1} parent=0
    _
  %s8 = ssub.s32 1, %s6
  %s9 = scalar_select 0, %s8, %s6
  $region1: #{tpu_custom_call.1} parent=0
    #allocation2 [shape = 'u8[262144]{0}', space=vmem, size = 0x40000, scoped, tag = 'output window, operand 0, single buffered']
    #allocation3 [shape = 's32[1]{0}', space=sflag, size = 0x4, scoped, tag = 'scoped memory for tpu_custom_call.1']
    %10 = vsyncpa [#allocation3], 0
    // Predicated region
    $region2: #{tpu_custom_call.1} parent=1 // pred_check
      _
    $region3: #{tpu_custom_call.1} parent=1 // pred_check_branch
      %12 = sbr.rel (0) target = $region5
    $region4: #{tpu_custom_call.1} parent=1 // pred_region
      _
    $region5: #{tpu_custom_call.1} parent=1 // pred_fallthru
      _
    // Predicated region
    $region6: #{tpu_custom_call.1} parent=1 // pred_check
      _
    $region7: #{tpu_custom_call.1} parent=1 // pred_check_branch
      %14 = sbr.rel (0) target = $region9
    $region8: #{tpu_custom_call.1} parent=1 // pred_region
      _
    $region9: #{tpu_custom_call.1} parent=1 // pred_fallthru
      _
    // Predicated region
    $region10: #{tpu_custom_call.1} parent=1 // pred_check
      _
    $region11: #{tpu_custom_call.1} parent=1 // pred_check_branch
      %16 = sbr.rel (0) target = $region13
    $region12: #{tpu_custom_call.1} parent=1 // pred_region
      _
    $region13: #{tpu_custom_call.1} parent=1 // pred_fallthru
      _
    // Predicated region
    $region14: #{tpu_custom_call.1} parent=1 // pred_check
      _
    $region15: #{tpu_custom_call.1} parent=1 // pred_check_branch
      %18 = sbr.rel (0) target = $region17
    $region16: #{tpu_custom_call.1} parent=1 // pred_region
      _
    $region17: #{tpu_custom_call.1} parent=1 // pred_fallthru
      _
    // Predicated region
    $region18: #{tpu_custom_call.1} parent=1 // pred_check
      _
    $region19: #{tpu_custom_call.1} parent=1 // pred_check_branch
      %20 = sbr.rel (0) target = $region21
    $region20: #{tpu_custom_call.1} parent=1 // pred_region
      _
    $region21: #{tpu_custom_call.1} parent=1 // pred_fallthru
      _
    %s21 = smul.u32 0, 512
    %v22 = vld [vmem:[%s0] sm:$0xff]
    %v23 = vld [vmem:[%s0 + $0x8] sm:$0xff]
    %v24 = vld [vmem:[%s0 + $0x10] sm:$0xff]
    %v25 = vld [vmem:[%s0 + $0x18] sm:$0xff]
    %v26 = vld [vmem:[%s0 + $0x20] sm:$0xff]
    %v27 = vld [vmem:[%s0 + $0x28] sm:$0xff]
    %v28 = vld [vmem:[%s0 + $0x30] sm:$0xff]
    %v29 = vld [vmem:[%s0 + $0x38] sm:$0xff]
    %v30 = vld [vmem:[%s0 + $0x40] sm:$0xff]
    %v31 = vld [vmem:[%s0 + $0x48] sm:$0xff]
    %v32 = vld [vmem:[%s0 + $0x50] sm:$0xff]
    %v33 = vld [vmem:[%s0 + $0x58] sm:$0xff]
    %v34 = vld [vmem:[%s0 + $0x60] sm:$0xff]
    %v35 = vld [vmem:[%s0 + $0x68] sm:$0xff]
    %v36 = vld [vmem:[%s0 + $0x70] sm:$0xff]
    %v37 = vld [vmem:[%s0 + $0x78] sm:$0xff]
    %v38 = vld [vmem:[%s0 + $0x80] sm:$0xff]
    %v39 = vld [vmem:[%s0 + $0x88] sm:$0xff]
    %v40 = vld [vmem:[%s0 + $0x90] sm:$0xff]
    %v41 = vld [vmem:[%s0 + $0x98] sm:$0xff]
    %v42 = vld [vmem:[%s0 + $0xa0] sm:$0xff]
    %v43 = vld [vmem:[%s0 + $0xa8] sm:$0xff]
    %v44 = vld [vmem:[%s0 + $0xb0] sm:$0xff]
    %v45 = vld [vmem:[%s0 + $0xb8] sm:$0xff]
    %v46 = vld [vmem:[%s0 + $0xc0] sm:$0xff]
    %v47 = vld [vmem:[%s0 + $0xc8] sm:$0xff]
    %v48 = vld [vmem:[%s0 + $0xd0] sm:$0xff]
    %v49 = vld [vmem:[%s0 + $0xd8] sm:$0xff]
    %v50 = vld [vmem:[%s0 + $0xe0] sm:$0xff]
    %v51 = vld [vmem:[%s0 + $0xe8] sm:$0xff]
    %v52 = vld [vmem:[%s0 + $0xf0] sm:$0xff]
    %v53 = vld [vmem:[%s0 + $0xf8] sm:$0xff]
    %v54 = vld [vmem:[%s0 + $0x100] sm:$0xff]
    %v55 = vld [vmem:[%s0 + $0x108] sm:$0xff]
    %v56 = vld [vmem:[%s0 + $0x110] sm:$0xff]
    %v57 = vld [vmem:[%s0 + $0x118] sm:$0xff]
    %v58 = vld [vmem:[%s0 + $0x120] sm:$0xff]
    %v59 = vld [vmem:[%s0 + $0x128] sm:$0xff]
    %v60 = vld [vmem:[%s0 + $0x130] sm:$0xff]
    %v61 = vld [vmem:[%s0 + $0x138] sm:$0xff]
    %v62 = vld [vmem:[%s0 + $0x140] sm:$0xff]
    %v63 = vld [vmem:[%s0 + $0x148] sm:$0xff]
    %v64 = vld [vmem:[%s0 + $0x150] sm:$0xff]
    %v65 = vld [vmem:[%s0 + $0x158] sm:$0xff]
    %v66 = vld [vmem:[%s0 + $0x160] sm:$0xff]
    %v67 = vld [vmem:[%s0 + $0x168] sm:$0xff]
    %v68 = vld [vmem:[%s0 + $0x170] sm:$0xff]
    %v69 = vld [vmem:[%s0 + $0x178] sm:$0xff]
    %v70 = vld [vmem:[%s0 + $0x180] sm:$0xff]
    %v71 = vld [vmem:[%s0 + $0x188] sm:$0xff]
    %v72 = vld [vmem:[%s0 + $0x190] sm:$0xff]
    %v73 = vld [vmem:[%s0 + $0x198] sm:$0xff]
    %v74 = vld [vmem:[%s0 + $0x1a0] sm:$0xff]
    %v75 = vld [vmem:[%s0 + $0x1a8] sm:$0xff]
    %v76 = vld [vmem:[%s0 + $0x1b0] sm:$0xff]
    %v77 = vld [vmem:[%s0 + $0x1b8] sm:$0xff]
    %v78 = vld [vmem:[%s0 + $0x1c0] sm:$0xff]
    %v79 = vld [vmem:[%s0 + $0x1c8] sm:$0xff]
    %v80 = vld [vmem:[%s0 + $0x1d0] sm:$0xff]
    %v81 = vld [vmem:[%s0 + $0x1d8] sm:$0xff]
    %v82 = vld [vmem:[%s0 + $0x1e0] sm:$0xff]
    %v83 = vld [vmem:[%s0 + $0x1e8] sm:$0xff]
    %v84 = vld [vmem:[%s0 + $0x1f0] sm:$0xff]
    %v85 = vld [vmem:[%s0 + $0x1f8] sm:$0xff]
    %v86 = vld [vmem:[%s0 + $0x200] sm:$0xff]
    %v87 = vld [vmem:[%s0 + $0x208] sm:$0xff]
    %v88 = vld [vmem:[%s0 + $0x210] sm:$0xff]
    %v89 = vld [vmem:[%s0 + $0x218] sm:$0xff]
    %v90 = vld [vmem:[%s0 + $0x220] sm:$0xff]
    %v91 = vld [vmem:[%s0 + $0x228] sm:$0xff]
    %v92 = vld [vmem:[%s0 + $0x230] sm:$0xff]
    %v93 = vld [vmem:[%s0 + $0x238] sm:$0xff]
    %v94 = vld [vmem:[%s0 + $0x240] sm:$0xff]
    %v95 = vld [vmem:[%s0 + $0x248] sm:$0xff]
    %v96 = vld [vmem:[%s0 + $0x250] sm:$0xff]
    %v97 = vld [vmem:[%s0 + $0x258] sm:$0xff]
    %v98 = vld [vmem:[%s0 + $0x260] sm:$0xff]
    %v99 = vld [vmem:[%s0 + $0x268] sm:$0xff]
    %v100 = vld [vmem:[%s0 + $0x270] sm:$0xff]
    %v101 = vld [vmem:[%s0 + $0x278] sm:$0xff]
    %v102 = vld [vmem:[%s0 + $0x280] sm:$0xff]
    %v103 = vld [vmem:[%s0 + $0x288] sm:$0xff]
    %v104 = vld [vmem:[%s0 + $0x290] sm:$0xff]
    %v105 = vld [vmem:[%s0 + $0x298] sm:$0xff]
    %v106 = vld [vmem:[%s0 + $0x2a0] sm:$0xff]
    %v107 = vld [vmem:[%s0 + $0x2a8] sm:$0xff]
    %v108 = vld [vmem:[%s0 + $0x2b0] sm:$0xff]
    %v109 = vld [vmem:[%s0 + $0x2b8] sm:$0xff]
    %v110 = vld [vmem:[%s0 + $0x2c0] sm:$0xff]
    %v111 = vld [vmem:[%s0 + $0x2c8] sm:$0xff]
    %v112 = vld [vmem:[%s0 + $0x2d0] sm:$0xff]
    %v113 = vld [vmem:[%s0 + $0x2d8] sm:$0xff]
    %v114 = vld [vmem:[%s0 + $0x2e0] sm:$0xff]
    %v115 = vld [vmem:[%s0 + $0x2e8] sm:$0xff]
    %v116 = vld [vmem:[%s0 + $0x2f0] sm:$0xff]
    %v117 = vld [vmem:[%s0 + $0x2f8] sm:$0xff]
    %v118 = vld [vmem:[%s0 + $0x300] sm:$0xff]
    %v119 = vld [vmem:[%s0 + $0x308] sm:$0xff]
    %v120 = vld [vmem:[%s0 + $0x310] sm:$0xff]
    %v121 = vld [vmem:[%s0 + $0x318] sm:$0xff]
    %v122 = vld [vmem:[%s0 + $0x320] sm:$0xff]
    %v123 = vld [vmem:[%s0 + $0x328] sm:$0xff]
    %v124 = vld [vmem:[%s0 + $0x330] sm:$0xff]
    %v125 = vld [vmem:[%s0 + $0x338] sm:$0xff]
    %v126 = vld [vmem:[%s0 + $0x340] sm:$0xff]
    %v127 = vld [vmem:[%s0 + $0x348] sm:$0xff]
    %v128 = vld [vmem:[%s0 + $0x350] sm:$0xff]
    %v129 = vld [vmem:[%s0 + $0x358] sm:$0xff]
    %v130 = vld [vmem:[%s0 + $0x360] sm:$0xff]
    %v131 = vld [vmem:[%s0 + $0x368] sm:$0xff]
    %v132 = vld [vmem:[%s0 + $0x370] sm:$0xff]
    %v133 = vld [vmem:[%s0 + $0x378] sm:$0xff]
    %v134 = vld [vmem:[%s0 + $0x380] sm:$0xff]
    %v135 = vld [vmem:[%s0 + $0x388] sm:$0xff]
    %v136 = vld [vmem:[%s0 + $0x390] sm:$0xff]
    %v137 = vld [vmem:[%s0 + $0x398] sm:$0xff]
    %v138 = vld [vmem:[%s0 + $0x3a0] sm:$0xff]
    %v139 = vld [vmem:[%s0 + $0x3a8] sm:$0xff]
    %v140 = vld [vmem:[%s0 + $0x3b0] sm:$0xff]
    %v141 = vld [vmem:[%s0 + $0x3b8] sm:$0xff]
    %v142 = vld [vmem:[%s0 + $0x3c0] sm:$0xff]
    %v143 = vld [vmem:[%s0 + $0x3c8] sm:$0xff]
    %v144 = vld [vmem:[%s0 + $0x3d0] sm:$0xff]
    %v145 = vld [vmem:[%s0 + $0x3d8] sm:$0xff]
    %v146 = vld [vmem:[%s0 + $0x3e0] sm:$0xff]
    %v147 = vld [vmem:[%s0 + $0x3e8] sm:$0xff]
    %v148 = vld [vmem:[%s0 + $0x3f0] sm:$0xff]
    %v149 = vld [vmem:[%s0 + $0x3f8] sm:$0xff]
    %v150 = vld [vmem:[%s2] sm:$0xff]
    %v151 = vld [vmem:[%s2 + $0x8] sm:$0xff]
    %v152 = vld [vmem:[%s2 + $0x10] sm:$0xff]
    %v153 = vld [vmem:[%s2 + $0x18] sm:$0xff]
    %v154 = vld [vmem:[%s2 + $0x20] sm:$0xff]
    %v155 = vld [vmem:[%s2 + $0x28] sm:$0xff]
    %v156 = vld [vmem:[%s2 + $0x30] sm:$0xff]
    %v157 = vld [vmem:[%s2 + $0x38] sm:$0xff]
    %v158 = vld [vmem:[%s2 + $0x40] sm:$0xff]
    %v159 = vld [vmem:[%s2 + $0x48] sm:$0xff]
    %v160 = vld [vmem:[%s2 + $0x50] sm:$0xff]
    %v161 = vld [vmem:[%s2 + $0x58] sm:$0xff]
    %v162 = vld [vmem:[%s2 + $0x60] sm:$0xff]
    %v163 = vld [vmem:[%s2 + $0x68] sm:$0xff]
    %v164 = vld [vmem:[%s2 + $0x70] sm:$0xff]
    %v165 = vld [vmem:[%s2 + $0x78] sm:$0xff]
    %v166 = vld [vmem:[%s2 + $0x80] sm:$0xff]
    %v167 = vld [vmem:[%s2 + $0x88] sm:$0xff]
    %v168 = vld [vmem:[%s2 + $0x90] sm:$0xff]
    %v169 = vld [vmem:[%s2 + $0x98] sm:$0xff]
    %v170 = vld [vmem:[%s2 + $0xa0] sm:$0xff]
    %v171 = vld [vmem:[%s2 + $0xa8] sm:$0xff]
    %v172 = vld [vmem:[%s2 + $0xb0] sm:$0xff]
    %v173 = vld [vmem:[%s2 + $0xb8] sm:$0xff]
    %v174 = vld [vmem:[%s2 + $0xc0] sm:$0xff]
    %v175 = vld [vmem:[%s2 + $0xc8] sm:$0xff]
    %v176 = vld [vmem:[%s2 + $0xd0] sm:$0xff]
    %v177 = vld [vmem:[%s2 + $0xd8] sm:$0xff]
    %v178 = vld [vmem:[%s2 + $0xe0] sm:$0xff]
    %v179 = vld [vmem:[%s2 + $0xe8] sm:$0xff]
    %v180 = vld [vmem:[%s2 + $0xf0] sm:$0xff]
    %v181 = vld [vmem:[%s2 + $0xf8] sm:$0xff]
    %v182 = vld [vmem:[%s2 + $0x100] sm:$0xff]
    %v183 = vld [vmem:[%s2 + $0x108] sm:$0xff]
    %v184 = vld [vmem:[%s2 + $0x110] sm:$0xff]
    %v185 = vld [vmem:[%s2 + $0x118] sm:$0xff]
    %v186 = vld [vmem:[%s2 + $0x120] sm:$0xff]
    %v187 = vld [vmem:[%s2 + $0x128] sm:$0xff]
    %v188 = vld [vmem:[%s2 + $0x130] sm:$0xff]
    %v189 = vld [vmem:[%s2 + $0x138] sm:$0xff]
    %v190 = vld [vmem:[%s2 + $0x140] sm:$0xff]
    %v191 = vld [vmem:[%s2 + $0x148] sm:$0xff]
    %v192 = vld [vmem:[%s2 + $0x150] sm:$0xff]
    %v193 = vld [vmem:[%s2 + $0x158] sm:$0xff]
    %v194 = vld [vmem:[%s2 + $0x160] sm:$0xff]
    %v195 = vld [vmem:[%s2 + $0x168] sm:$0xff]
    %v196 = vld [vmem:[%s2 + $0x170] sm:$0xff]
    %v197 = vld [vmem:[%s2 + $0x178] sm:$0xff]
    %v198 = vld [vmem:[%s2 + $0x180] sm:$0xff]
    %v199 = vld [vmem:[%s2 + $0x188] sm:$0xff]
    %v200 = vld [vmem:[%s2 + $0x190] sm:$0xff]
    %v201 = vld [vmem:[%s2 + $0x198] sm:$0xff]
    %v202 = vld [vmem:[%s2 + $0x1a0] sm:$0xff]
    %v203 = vld [vmem:[%s2 + $0x1a8] sm:$0xff]
    %v204 = vld [vmem:[%s2 + $0x1b0] sm:$0xff]
    %v205 = vld [vmem:[%s2 + $0x1b8] sm:$0xff]
    %v206 = vld [vmem:[%s2 + $0x1c0] sm:$0xff]
    %v207 = vld [vmem:[%s2 + $0x1c8] sm:$0xff]
    %v208 = vld [vmem:[%s2 + $0x1d0] sm:$0xff]
    %v209 = vld [vmem:[%s2 + $0x1d8] sm:$0xff]
    %v210 = vld [vmem:[%s2 + $0x1e0] sm:$0xff]
    %v211 = vld [vmem:[%s2 + $0x1e8] sm:$0xff]
    %v212 = vld [vmem:[%s2 + $0x1f0] sm:$0xff]
    %v213 = vld [vmem:[%s2 + $0x1f8] sm:$0xff]
    %v214 = vpack.c.bf16 %v151, %v150
    %v215 = vpack.c.bf16 %v153, %v152
    %v216 = vpack.c.bf16 %v155, %v154
    %v217 = vpack.c.bf16 %v157, %v156
    %v218 = vpack.c.bf16 %v159, %v158
    %v219 = vpack.c.bf16 %v161, %v160
    %v220 = vpack.c.bf16 %v163, %v162
    %v221 = vpack.c.bf16 %v165, %v164
    %v222 = vpack.c.bf16 %v167, %v166
    %v223 = vpack.c.bf16 %v169, %v168
    %v224 = vpack.c.bf16 %v171, %v170
    %v225 = vpack.c.bf16 %v173, %v172
    %v226 = vpack.c.bf16 %v175, %v174
    %v227 = vpack.c.bf16 %v177, %v176
    %v228 = vpack.c.bf16 %v179, %v178
    %v229 = vpack.c.bf16 %v181, %v180
    %v230 = vpack.c.bf16 %v183, %v182
    %v231 = vpack.c.bf16 %v185, %v184
    %v232 = vpack.c.bf16 %v187, %v186
    %v233 = vpack.c.bf16 %v189, %v188
    %v234 = vpack.c.bf16 %v191, %v190
    %v235 = vpack.c.bf16 %v193, %v192
    %v236 = vpack.c.bf16 %v195, %v194
    %v237 = vpack.c.bf16 %v197, %v196
    %v238 = vpack.c.bf16 %v199, %v198
    %v239 = vpack.c.bf16 %v201, %v200
    %v240 = vpack.c.bf16 %v203, %v202
    %v241 = vpack.c.bf16 %v205, %v204
    %v242 = vpack.c.bf16 %v207, %v206
    %v243 = vpack.c.bf16 %v209, %v208
    %v244 = vpack.c.bf16 %v211, %v210
    %v245 = vpack.c.bf16 %v213, %v212
    %v374 = vunpack.c.l.b16 %v22
    %v375 = vunpack.c.h.b16 %v22
    %v376 = vunpack.c.l.b16 %v23
    %v377 = vunpack.c.h.b16 %v23
    %v378 = vunpack.c.l.b16 %v24
    %v379 = vunpack.c.h.b16 %v24
    %v380 = vunpack.c.l.b16 %v25
    %v381 = vunpack.c.h.b16 %v25
    %v382 = vunpack.c.l.b16 %v26
    %v383 = vunpack.c.h.b16 %v26
    %v384 = vunpack.c.l.b16 %v27
    %v385 = vunpack.c.h.b16 %v27
    %v386 = vunpack.c.l.b16 %v28
    %v387 = vunpack.c.h.b16 %v28
    %v388 = vunpack.c.l.b16 %v29
    %v389 = vunpack.c.h.b16 %v29
    %v390 = vunpack.c.l.b16 %v30
    %v391 = vunpack.c.h.b16 %v30
    %v392 = vunpack.c.l.b16 %v31
    %v393 = vunpack.c.h.b16 %v31
    %v394 = vunpack.c.l.b16 %v32
    %v395 = vunpack.c.h.b16 %v32
    %v396 = vunpack.c.l.b16 %v33
    %v397 = vunpack.c.h.b16 %v33
    %v398 = vunpack.c.l.b16 %v34
    %v399 = vunpack.c.h.b16 %v34
    %v400 = vunpack.c.l.b16 %v35
    %v401 = vunpack.c.h.b16 %v35
    %v402 = vunpack.c.l.b16 %v36
    %v403 = vunpack.c.h.b16 %v36
    %v404 = vunpack.c.l.b16 %v37
    %v405 = vunpack.c.h.b16 %v37
    %v406 = vunpack.c.l.b16 %v38
    %v407 = vunpack.c.h.b16 %v38
    %v408 = vunpack.c.l.b16 %v39
    %v409 = vunpack.c.h.b16 %v39
    %v410 = vunpack.c.l.b16 %v40
    %v411 = vunpack.c.h.b16 %v40
    %v412 = vunpack.c.l.b16 %v41
    %v413 = vunpack.c.h.b16 %v41
    %v414 = vunpack.c.l.b16 %v42
    %v415 = vunpack.c.h.b16 %v42
    %v416 = vunpack.c.l.b16 %v43
    %v417 = vunpack.c.h.b16 %v43
    %v418 = vunpack.c.l.b16 %v44
    %v419 = vunpack.c.h.b16 %v44
    %v420 = vunpack.c.l.b16 %v45
    %v421 = vunpack.c.h.b16 %v45
    %v422 = vunpack.c.l.b16 %v46
    %v423 = vunpack.c.h.b16 %v46
    %v424 = vunpack.c.l.b16 %v47
    %v425 = vunpack.c.h.b16 %v47
    %v426 = vunpack.c.l.b16 %v48
    %v427 = vunpack.c.h.b16 %v48
    %v428 = vunpack.c.l.b16 %v49
    %v429 = vunpack.c.h.b16 %v49
    %v430 = vunpack.c.l.b16 %v50
    %v431 = vunpack.c.h.b16 %v50
    %v432 = vunpack.c.l.b16 %v51
    %v433 = vunpack.c.h.b16 %v51
    %v434 = vunpack.c.l.b16 %v52
    %v435 = vunpack.c.h.b16 %v52
    %v436 = vunpack.c.l.b16 %v53
    %v437 = vunpack.c.h.b16 %v53
    %v438 = vunpack.c.l.b16 %v54
    %v439 = vunpack.c.h.b16 %v54
    %v440 = vunpack.c.l.b16 %v55
    %v441 = vunpack.c.h.b16 %v55
    %v442 = vunpack.c.l.b16 %v56
    %v443 = vunpack.c.h.b16 %v56
    %v444 = vunpack.c.l.b16 %v57
    %v445 = vunpack.c.h.b16 %v57
    %v446 = vunpack.c.l.b16 %v58
    %v447 = vunpack.c.h.b16 %v58
    %v448 = vunpack.c.l.b16 %v59
    %v449 = vunpack.c.h.b16 %v59
    %v450 = vunpack.c.l.b16 %v60
    %v451 = vunpack.c.h.b16 %v60
    %v452 = vunpack.c.l.b16 %v61
    %v453 = vunpack.c.h.b16 %v61
    %v454 = vunpack.c.l.b16 %v62
    %v455 = vunpack.c.h.b16 %v62
    %v456 = vunpack.c.l.b16 %v63
    %v457 = vunpack.c.h.b16 %v63
    %v458 = vunpack.c.l.b16 %v64
    %v459 = vunpack.c.h.b16 %v64
    %v460 = vunpack.c.l.b16 %v65
    %v461 = vunpack.c.h.b16 %v65
    %v462 = vunpack.c.l.b16 %v66
    %v463 = vunpack.c.h.b16 %v66
    %v464 = vunpack.c.l.b16 %v67
    %v465 = vunpack.c.h.b16 %v67
    %v466 = vunpack.c.l.b16 %v68
    %v467 = vunpack.c.h.b16 %v68
    %v468 = vunpack.c.l.b16 %v69
    %v469 = vunpack.c.h.b16 %v69
    %v470 = vunpack.c.l.b16 %v70
    %v471 = vunpack.c.h.b16 %v70
    %v472 = vunpack.c.l.b16 %v71
    %v473 = vunpack.c.h.b16 %v71
    %v474 = vunpack.c.l.b16 %v72
    %v475 = vunpack.c.h.b16 %v72
    %v476 = vunpack.c.l.b16 %v73
    %v477 = vunpack.c.h.b16 %v73
    %v478 = vunpack.c.l.b16 %v74
    %v479 = vunpack.c.h.b16 %v74
    %v480 = vunpack.c.l.b16 %v75
    %v481 = vunpack.c.h.b16 %v75
    %v482 = vunpack.c.l.b16 %v76
    %v483 = vunpack.c.h.b16 %v76
    %v484 = vunpack.c.l.b16 %v77
    %v485 = vunpack.c.h.b16 %v77
    %v486 = vunpack.c.l.b16 %v78
    %v487 = vunpack.c.h.b16 %v78
    %v488 = vunpack.c.l.b16 %v79
    %v489 = vunpack.c.h.b16 %v79
    %v490 = vunpack.c.l.b16 %v80
    %v491 = vunpack.c.h.b16 %v80
    %v492 = vunpack.c.l.b16 %v81
    %v493 = vunpack.c.h.b16 %v81
    %v494 = vunpack.c.l.b16 %v82
    %v495 = vunpack.c.h.b16 %v82
    %v496 = vunpack.c.l.b16 %v83
    %v497 = vunpack.c.h.b16 %v83
    %v498 = vunpack.c.l.b16 %v84
    %v499 = vunpack.c.h.b16 %v84
    %v500 = vunpack.c.l.b16 %v85
    %v501 = vunpack.c.h.b16 %v85
    %v502 = vunpack.c.l.b16 %v86
    %v503 = vunpack.c.h.b16 %v86
    %v504 = vunpack.c.l.b16 %v87
    %v505 = vunpack.c.h.b16 %v87
    %v506 = vunpack.c.l.b16 %v88
    %v507 = vunpack.c.h.b16 %v88
    %v508 = vunpack.c.l.b16 %v89
    %v509 = vunpack.c.h.b16 %v89
    %v510 = vunpack.c.l.b16 %v90
    %v511 = vunpack.c.h.b16 %v90
    %v512 = vunpack.c.l.b16 %v91
    %v513 = vunpack.c.h.b16 %v91
    %v514 = vunpack.c.l.b16 %v92
    %v515 = vunpack.c.h.b16 %v92
    %v516 = vunpack.c.l.b16 %v93
    %v517 = vunpack.c.h.b16 %v93
    %v518 = vunpack.c.l.b16 %v94
    %v519 = vunpack.c.h.b16 %v94
    %v520 = vunpack.c.l.b16 %v95
    %v521 = vunpack.c.h.b16 %v95
    %v522 = vunpack.c.l.b16 %v96
    %v523 = vunpack.c.h.b16 %v96
    %v524 = vunpack.c.l.b16 %v97
    %v525 = vunpack.c.h.b16 %v97
    %v526 = vunpack.c.l.b16 %v98
    %v527 = vunpack.c.h.b16 %v98
    %v528 = vunpack.c.l.b16 %v99
    %v529 = vunpack.c.h.b16 %v99
    %v530 = vunpack.c.l.b16 %v100
    %v531 = vunpack.c.h.b16 %v100
    %v532 = vunpack.c.l.b16 %v101
    %v533 = vunpack.c.h.b16 %v101
    %v534 = vunpack.c.l.b16 %v102
    %v535 = vunpack.c.h.b16 %v102
    %v536 = vunpack.c.l.b16 %v103
    %v537 = vunpack.c.h.b16 %v103
    %v538 = vunpack.c.l.b16 %v104
    %v539 = vunpack.c.h.b16 %v104
    %v540 = vunpack.c.l.b16 %v105
    %v541 = vunpack.c.h.b16 %v105
    %v542 = vunpack.c.l.b16 %v106
    %v543 = vunpack.c.h.b16 %v106
    %v544 = vunpack.c.l.b16 %v107
    %v545 = vunpack.c.h.b16 %v107
    %v546 = vunpack.c.l.b16 %v108
    %v547 = vunpack.c.h.b16 %v108
    %v548 = vunpack.c.l.b16 %v109
    %v549 = vunpack.c.h.b16 %v109
    %v550 = vunpack.c.l.b16 %v110
    %v551 = vunpack.c.h.b16 %v110
    %v552 = vunpack.c.l.b16 %v111
    %v553 = vunpack.c.h.b16 %v111
    %v554 = vunpack.c.l.b16 %v112
    %v555 = vunpack.c.h.b16 %v112
    %v556 = vunpack.c.l.b16 %v113
    %v557 = vunpack.c.h.b16 %v113
    %v558 = vunpack.c.l.b16 %v114
    %v559 = vunpack.c.h.b16 %v114
    %v560 = vunpack.c.l.b16 %v115
    %v561 = vunpack.c.h.b16 %v115
    %v562 = vunpack.c.l.b16 %v116
    %v563 = vunpack.c.h.b16 %v116
    %v564 = vunpack.c.l.b16 %v117
    %v565 = vunpack.c.h.b16 %v117
    %v566 = vunpack.c.l.b16 %v118
    %v567 = vunpack.c.h.b16 %v118
    %v568 = vunpack.c.l.b16 %v119
    %v569 = vunpack.c.h.b16 %v119
    %v570 = vunpack.c.l.b16 %v120
    %v571 = vunpack.c.h.b16 %v120
    %v572 = vunpack.c.l.b16 %v121
    %v573 = vunpack.c.h.b16 %v121
    %v574 = vunpack.c.l.b16 %v122
    %v575 = vunpack.c.h.b16 %v122
    %v576 = vunpack.c.l.b16 %v123
    %v577 = vunpack.c.h.b16 %v123
    %v578 = vunpack.c.l.b16 %v124
    %v579 = vunpack.c.h.b16 %v124
    %v580 = vunpack.c.l.b16 %v125
    %v581 = vunpack.c.h.b16 %v125
    %v582 = vunpack.c.l.b16 %v126
    %v583 = vunpack.c.h.b16 %v126
    %v584 = vunpack.c.l.b16 %v127
    %v585 = vunpack.c.h.b16 %v127
    %v586 = vunpack.c.l.b16 %v128
    %v587 = vunpack.c.h.b16 %v128
    %v588 = vunpack.c.l.b16 %v129
    %v589 = vunpack.c.h.b16 %v129
    %v590 = vunpack.c.l.b16 %v130
    %v591 = vunpack.c.h.b16 %v130
    %v592 = vunpack.c.l.b16 %v131
    %v593 = vunpack.c.h.b16 %v131
    %v594 = vunpack.c.l.b16 %v132
    %v595 = vunpack.c.h.b16 %v132
    %v596 = vunpack.c.l.b16 %v133
    %v597 = vunpack.c.h.b16 %v133
    %v598 = vunpack.c.l.b16 %v134
    %v599 = vunpack.c.h.b16 %v134
    %v600 = vunpack.c.l.b16 %v135
    %v601 = vunpack.c.h.b16 %v135
    %v602 = vunpack.c.l.b16 %v136
    %v603 = vunpack.c.h.b16 %v136
    %v604 = vunpack.c.l.b16 %v137
    %v605 = vunpack.c.h.b16 %v137
    %v606 = vunpack.c.l.b16 %v138
    %v607 = vunpack.c.h.b16 %v138
    %v608 = vunpack.c.l.b16 %v139
    %v609 = vunpack.c.h.b16 %v139
    %v610 = vunpack.c.l.b16 %v140
    %v611 = vunpack.c.h.b16 %v140
    %v612 = vunpack.c.l.b16 %v141
    %v613 = vunpack.c.h.b16 %v141
    %v614 = vunpack.c.l.b16 %v142
    %v615 = vunpack.c.h.b16 %v142
    %v616 = vunpack.c.l.b16 %v143
    %v617 = vunpack.c.h.b16 %v143
    %v618 = vunpack.c.l.b16 %v144
    %v619 = vunpack.c.h.b16 %v144
    %v620 = vunpack.c.l.b16 %v145
    %v621 = vunpack.c.h.b16 %v145
    %v622 = vunpack.c.l.b16 %v146
    %v623 = vunpack.c.h.b16 %v146
    %v624 = vunpack.c.l.b16 %v147
    %v625 = vunpack.c.h.b16 %v147
    %v626 = vunpack.c.l.b16 %v148
    %v627 = vunpack.c.h.b16 %v148
    %v628 = vunpack.c.l.b16 %v149
    %v629 = vunpack.c.h.b16 %v149
    %v630 = vpack.c.b16 %v378, %v374
    %v631 = vpack.c.b16 %v379, %v375
    %v632 = vpack.c.b16 %v380, %v376
    %v633 = vpack.c.b16 %v381, %v377
    %v634 = vpack.c.b16 %v386, %v382
    %v635 = vpack.c.b16 %v387, %v383
    %v636 = vpack.c.b16 %v388, %v384
    %v637 = vpack.c.b16 %v389, %v385
    %v638 = vpack.c.b16 %v394, %v390
    %v639 = vpack.c.b16 %v395, %v391
    %v640 = vpack.c.b16 %v396, %v392
    %v641 = vpack.c.b16 %v397, %v393
    %v642 = vpack.c.b16 %v402, %v398
    %v643 = vpack.c.b16 %v403, %v399
    %v644 = vpack.c.b16 %v404, %v400
    %v645 = vpack.c.b16 %v405, %v401
    %v646 = vpack.c.b16 %v410, %v406
    %v647 = vpack.c.b16 %v411, %v407
    %v648 = vpack.c.b16 %v412, %v408
    %v649 = vpack.c.b16 %v413, %v409
    %v650 = vpack.c.b16 %v418, %v414
    %v651 = vpack.c.b16 %v419, %v415
    %v652 = vpack.c.b16 %v420, %v416
    %v653 = vpack.c.b16 %v421, %v417
    %v654 = vpack.c.b16 %v426, %v422
    %v655 = vpack.c.b16 %v427, %v423
    %v656 = vpack.c.b16 %v428, %v424
    %v657 = vpack.c.b16 %v429, %v425
    %v658 = vpack.c.b16 %v434, %v430
    %v659 = vpack.c.b16 %v435, %v431
    %v660 = vpack.c.b16 %v436, %v432
    %v661 = vpack.c.b16 %v437, %v433
    %v662 = vpack.c.b16 %v442, %v438
    %v663 = vpack.c.b16 %v443, %v439
    %v664 = vpack.c.b16 %v444, %v440
    %v665 = vpack.c.b16 %v445, %v441
    %v666 = vpack.c.b16 %v450, %v446
    %v667 = vpack.c.b16 %v451, %v447
    %v668 = vpack.c.b16 %v452, %v448
    %v669 = vpack.c.b16 %v453, %v449
    %v670 = vpack.c.b16 %v458, %v454
    %v671 = vpack.c.b16 %v459, %v455
    %v672 = vpack.c.b16 %v460, %v456
    %v673 = vpack.c.b16 %v461, %v457
    %v674 = vpack.c.b16 %v466, %v462
    %v675 = vpack.c.b16 %v467, %v463
    %v676 = vpack.c.b16 %v468, %v464
    %v677 = vpack.c.b16 %v469, %v465
    %v678 = vpack.c.b16 %v474, %v470
    %v679 = vpack.c.b16 %v475, %v471
    %v680 = vpack.c.b16 %v476, %v472
    %v681 = vpack.c.b16 %v477, %v473
    %v682 = vpack.c.b16 %v482, %v478
    %v683 = vpack.c.b16 %v483, %v479
    %v684 = vpack.c.b16 %v484, %v480
    %v685 = vpack.c.b16 %v485, %v481
    %v686 = vpack.c.b16 %v490, %v486
    %v687 = vpack.c.b16 %v491, %v487
    %v688 = vpack.c.b16 %v492, %v488
    %v689 = vpack.c.b16 %v493, %v489
    %v690 = vpack.c.b16 %v498, %v494
    %v691 = vpack.c.b16 %v499, %v495
    %v692 = vpack.c.b16 %v500, %v496
    %v693 = vpack.c.b16 %v501, %v497
    %v694 = vpack.c.b16 %v506, %v502
    %v695 = vpack.c.b16 %v507, %v503
    %v696 = vpack.c.b16 %v508, %v504
    %v697 = vpack.c.b16 %v509, %v505
    %v698 = vpack.c.b16 %v514, %v510
    %v699 = vpack.c.b16 %v515, %v511
    %v700 = vpack.c.b16 %v516, %v512
    %v701 = vpack.c.b16 %v517, %v513
    %v702 = vpack.c.b16 %v522, %v518
    %v703 = vpack.c.b16 %v523, %v519
    %v704 = vpack.c.b16 %v524, %v520
    %v705 = vpack.c.b16 %v525, %v521
    %v706 = vpack.c.b16 %v530, %v526
    %v707 = vpack.c.b16 %v531, %v527
    %v708 = vpack.c.b16 %v532, %v528
    %v709 = vpack.c.b16 %v533, %v529
    %v710 = vpack.c.b16 %v538, %v534
    %v711 = vpack.c.b16 %v539, %v535
    %v712 = vpack.c.b16 %v540, %v536
    %v713 = vpack.c.b16 %v541, %v537
    %v714 = vpack.c.b16 %v546, %v542
    %v715 = vpack.c.b16 %v547, %v543
    %v716 = vpack.c.b16 %v548, %v544
    %v717 = vpack.c.b16 %v549, %v545
    %v718 = vpack.c.b16 %v554, %v550
    %v719 = vpack.c.b16 %v555, %v551
    %v720 = vpack.c.b16 %v556, %v552
    %v721 = vpack.c.b16 %v557, %v553
    %v722 = vpack.c.b16 %v562, %v558
    %v723 = vpack.c.b16 %v563, %v559
    %v724 = vpack.c.b16 %v564, %v560
    %v725 = vpack.c.b16 %v565, %v561
    %v726 = vpack.c.b16 %v570, %v566
    %v727 = vpack.c.b16 %v571, %v567
    %v728 = vpack.c.b16 %v572, %v568
    %v729 = vpack.c.b16 %v573, %v569
    %v730 = vpack.c.b16 %v578, %v574
    %v731 = vpack.c.b16 %v579, %v575
    %v732 = vpack.c.b16 %v580, %v576
    %v733 = vpack.c.b16 %v581, %v577
    %v734 = vpack.c.b16 %v586, %v582
    %v735 = vpack.c.b16 %v587, %v583
    %v736 = vpack.c.b16 %v588, %v584
    %v737 = vpack.c.b16 %v589, %v585
    %v738 = vpack.c.b16 %v594, %v590
    %v739 = vpack.c.b16 %v595, %v591
    %v740 = vpack.c.b16 %v596, %v592
    %v741 = vpack.c.b16 %v597, %v593
    %v742 = vpack.c.b16 %v602, %v598
    %v743 = vpack.c.b16 %v603, %v599
    %v744 = vpack.c.b16 %v604, %v600
    %v745 = vpack.c.b16 %v605, %v601
    %v746 = vpack.c.b16 %v610, %v606
    %v747 = vpack.c.b16 %v611, %v607
    %v748 = vpack.c.b16 %v612, %v608
    %v749 = vpack.c.b16 %v613, %v609
    %v750 = vpack.c.b16 %v618, %v614
    %v751 = vpack.c.b16 %v619, %v615
    %v752 = vpack.c.b16 %v620, %v616
    %v753 = vpack.c.b16 %v621, %v617
    %v754 = vpack.c.b16 %v626, %v622
    %v755 = vpack.c.b16 %v627, %v623
    %v756 = vpack.c.b16 %v628, %v624
    %v757 = vpack.c.b16 %v629, %v625
    %886 = vmatpush.bf16.msra.mxu0 %v221
    %887 = vmatpush.bf16.msra.mxu0 %v220
    %888 = vmatpush.bf16.msra.mxu0 %v219
    %889 = vmatpush.bf16.msra.mxu0 %v218
    %890 = vmatpush.bf16.msra.mxu0 %v217
    %891 = vmatpush.bf16.msra.mxu0 %v216
    %892 = vmatpush.bf16.msra.mxu0 %v215
    %893 = vmatpush.bf16.msra.mxu0 %v214
    %894 = vmatmul.bf16.gmra.mxu0 %v630
    %v895 = vpop.f32.mrf.mxu0
    %v896 = vadd.f32 0.0, %v895
    %v897 = vpop.f32.mrf.mxu0
    %v898 = vadd.f32 0.0, %v897
    %899 = vmatmul.bf16.gmra.mxu0 %v634
    %v900 = vpop.f32.mrf.mxu0
    %v901 = vadd.f32 0.0, %v900
    %v902 = vpop.f32.mrf.mxu0
    %v903 = vadd.f32 0.0, %v902
    %904 = vmatmul.bf16.gmra.mxu0 %v638
    %v905 = vpop.f32.mrf.mxu0
    %v906 = vadd.f32 0.0, %v905
    %v907 = vpop.f32.mrf.mxu0
    %v908 = vadd.f32 0.0, %v907
    %909 = vmatmul.bf16.gmra.mxu0 %v642
    %v910 = vpop.f32.mrf.mxu0
    %v911 = vadd.f32 0.0, %v910
    %v912 = vpop.f32.mrf.mxu0
    %v913 = vadd.f32 0.0, %v912
    %914 = vmatmul.bf16.gmra.mxu0 %v646
    %v915 = vpop.f32.mrf.mxu0
    %v916 = vadd.f32 0.0, %v915
    %v917 = vpop.f32.mrf.mxu0
    %v918 = vadd.f32 0.0, %v917
    %919 = vmatmul.bf16.gmra.mxu0 %v650
    %v920 = vpop.f32.mrf.mxu0
    %v921 = vadd.f32 0.0, %v920
    %v922 = vpop.f32.mrf.mxu0
    %v923 = vadd.f32 0.0, %v922
    %924 = vmatmul.bf16.gmra.mxu0 %v654
    %v925 = vpop.f32.mrf.mxu0
    %v926 = vadd.f32 0.0, %v925
    %v927 = vpop.f32.mrf.mxu0
    %v928 = vadd.f32 0.0, %v927
    %929 = vmatmul.bf16.gmra.mxu0 %v658
    %v930 = vpop.f32.mrf.mxu0
    %v931 = vadd.f32 0.0, %v930
    %v932 = vpop.f32.mrf.mxu0
    %v933 = vadd.f32 0.0, %v932
    %934 = vmatmul.bf16.gmra.mxu0 %v662
    %v935 = vpop.f32.mrf.mxu0
    %v936 = vadd.f32 0.0, %v935
    %v937 = vpop.f32.mrf.mxu0
    %v938 = vadd.f32 0.0, %v937
    %939 = vmatmul.bf16.gmra.mxu0 %v666
    %v940 = vpop.f32.mrf.mxu0
    %v941 = vadd.f32 0.0, %v940
    %v942 = vpop.f32.mrf.mxu0
    %v943 = vadd.f32 0.0, %v942
    %944 = vmatmul.bf16.gmra.mxu0 %v670
    %v945 = vpop.f32.mrf.mxu0
    %v946 = vadd.f32 0.0, %v945
    %v947 = vpop.f32.mrf.mxu0
    %v948 = vadd.f32 0.0, %v947
    %949 = vmatmul.bf16.gmra.mxu0 %v674
    %v950 = vpop.f32.mrf.mxu0
    %v951 = vadd.f32 0.0, %v950
    %v952 = vpop.f32.mrf.mxu0
    %v953 = vadd.f32 0.0, %v952
    %954 = vmatmul.bf16.gmra.mxu0 %v678
    %v955 = vpop.f32.mrf.mxu0
    %v956 = vadd.f32 0.0, %v955
    %v957 = vpop.f32.mrf.mxu0
    %v958 = vadd.f32 0.0, %v957
    %959 = vmatmul.bf16.gmra.mxu0 %v682
    %v960 = vpop.f32.mrf.mxu0
    %v961 = vadd.f32 0.0, %v960
    %v962 = vpop.f32.mrf.mxu0
    %v963 = vadd.f32 0.0, %v962
    %964 = vmatmul.bf16.gmra.mxu0 %v686
    %v965 = vpop.f32.mrf.mxu0
    %v966 = vadd.f32 0.0, %v965
    %v967 = vpop.f32.mrf.mxu0
    %v968 = vadd.f32 0.0, %v967
    %969 = vmatmul.bf16.gmra.mxu0 %v690
    %v970 = vpop.f32.mrf.mxu0
    %v971 = vadd.f32 0.0, %v970
    %v972 = vpop.f32.mrf.mxu0
    %v973 = vadd.f32 0.0, %v972
    %974 = vmatmul.bf16.gmra.mxu0 %v694
    %v975 = vpop.f32.mrf.mxu0
    %v976 = vadd.f32 0.0, %v975
    %v977 = vpop.f32.mrf.mxu0
    %v978 = vadd.f32 0.0, %v977
    %979 = vmatmul.bf16.gmra.mxu0 %v698
    %v980 = vpop.f32.mrf.mxu0
    %v981 = vadd.f32 0.0, %v980
    %v982 = vpop.f32.mrf.mxu0
    %v983 = vadd.f32 0.0, %v982
    %984 = vmatmul.bf16.gmra.mxu0 %v702
    %v985 = vpop.f32.mrf.mxu0
    %v986 = vadd.f32 0.0, %v985
    %v987 = vpop.f32.mrf.mxu0
    %v988 = vadd.f32 0.0, %v987
    %989 = vmatmul.bf16.gmra.mxu0 %v706
    %v990 = vpop.f32.mrf.mxu0
    %v991 = vadd.f32 0.0, %v990
    %v992 = vpop.f32.mrf.mxu0
    %v993 = vadd.f32 0.0, %v992
    %994 = vmatmul.bf16.gmra.mxu0 %v710
    %v995 = vpop.f32.mrf.mxu0
    %v996 = vadd.f32 0.0, %v995
    %v997 = vpop.f32.mrf.mxu0
    %v998 = vadd.f32 0.0, %v997
    %999 = vmatmul.bf16.gmra.mxu0 %v714
    %v1000 = vpop.f32.mrf.mxu0
    %v1001 = vadd.f32 0.0, %v1000
    %v1002 = vpop.f32.mrf.mxu0
    %v1003 = vadd.f32 0.0, %v1002
    %1004 = vmatmul.bf16.gmra.mxu0 %v718
    %v1005 = vpop.f32.mrf.mxu0
    %v1006 = vadd.f32 0.0, %v1005
    %v1007 = vpop.f32.mrf.mxu0
    %v1008 = vadd.f32 0.0, %v1007
    %1009 = vmatmul.bf16.gmra.mxu0 %v722
    %v1010 = vpop.f32.mrf.mxu0
    %v1011 = vadd.f32 0.0, %v1010
    %v1012 = vpop.f32.mrf.mxu0
    %v1013 = vadd.f32 0.0, %v1012
    %1014 = vmatmul.bf16.gmra.mxu0 %v726
    %v1015 = vpop.f32.mrf.mxu0
    %v1016 = vadd.f32 0.0, %v1015
    %v1017 = vpop.f32.mrf.mxu0
    %v1018 = vadd.f32 0.0, %v1017
    %1019 = vmatmul.bf16.gmra.mxu0 %v730
    %v1020 = vpop.f32.mrf.mxu0
    %v1021 = vadd.f32 0.0, %v1020
    %v1022 = vpop.f32.mrf.mxu0
    %v1023 = vadd.f32 0.0, %v1022
    %1024 = vmatmul.bf16.gmra.mxu0 %v734
    %v1025 = vpop.f32.mrf.mxu0
    %v1026 = vadd.f32 0.0, %v1025
    %v1027 = vpop.f32.mrf.mxu0
    %v1028 = vadd.f32 0.0, %v1027
    %1029 = vmatmul.bf16.gmra.mxu0 %v738
    %v1030 = vpop.f32.mrf.mxu0
    %v1031 = vadd.f32 0.0, %v1030
    %v1032 = vpop.f32.mrf.mxu0
    %v1033 = vadd.f32 0.0, %v1032
    %1034 = vmatmul.bf16.gmra.mxu0 %v742
    %v1035 = vpop.f32.mrf.mxu0
    %v1036 = vadd.f32 0.0, %v1035
    %v1037 = vpop.f32.mrf.mxu0
    %v1038 = vadd.f32 0.0, %v1037
    %1039 = vmatmul.bf16.gmra.mxu0 %v746
    %v1040 = vpop.f32.mrf.mxu0
    %v1041 = vadd.f32 0.0, %v1040
    %v1042 = vpop.f32.mrf.mxu0
    %v1043 = vadd.f32 0.0, %v1042
    %1044 = vmatmul.bf16.gmra.mxu0 %v750
    %v1045 = vpop.f32.mrf.mxu0
    %v1046 = vadd.f32 0.0, %v1045
    %v1047 = vpop.f32.mrf.mxu0
    %v1048 = vadd.f32 0.0, %v1047
    %1049 = vmatmul.bf16.gmra.mxu0 %v754
    %v1050 = vpop.f32.mrf.mxu0
    %v1051 = vadd.f32 0.0, %v1050
    %v1052 = vpop.f32.mrf.mxu0
    %v1053 = vadd.f32 0.0, %v1052
    %1054 = vdwg.mxu0
    %1055 = vmatpush.bf16.msra.mxu0 %v229
    %1056 = vmatpush.bf16.msra.mxu0 %v228
    %1057 = vmatpush.bf16.msra.mxu0 %v227
    %1058 = vmatpush.bf16.msra.mxu0 %v226
    %1059 = vmatpush.bf16.msra.mxu0 %v225
    %1060 = vmatpush.bf16.msra.mxu0 %v224
    %1061 = vmatpush.bf16.msra.mxu0 %v223
    %1062 = vmatpush.bf16.msra.mxu0 %v222
    %1063 = vmatmul.bf16.gmra.mxu0 %v631
    %v1064 = vpop.f32.mrf.mxu0
    %v1065 = vadd.f32 %v896, %v1064
    %v1066 = vpop.f32.mrf.mxu0
    %v1067 = vadd.f32 %v898, %v1066
    %1068 = vmatmul.bf16.gmra.mxu0 %v635
    %v1069 = vpop.f32.mrf.mxu0
    %v1070 = vadd.f32 %v901, %v1069
    %v1071 = vpop.f32.mrf.mxu0
    %v1072 = vadd.f32 %v903, %v1071
    %1073 = vmatmul.bf16.gmra.mxu0 %v639
    %v1074 = vpop.f32.mrf.mxu0
    %v1075 = vadd.f32 %v906, %v1074
    %v1076 = vpop.f32.mrf.mxu0
    %v1077 = vadd.f32 %v908, %v1076
    %1078 = vmatmul.bf16.gmra.mxu0 %v643
    %v1079 = vpop.f32.mrf.mxu0
    %v1080 = vadd.f32 %v911, %v1079
    %v1081 = vpop.f32.mrf.mxu0
    %v1082 = vadd.f32 %v913, %v1081
    %1083 = vmatmul.bf16.gmra.mxu0 %v647
    %v1084 = vpop.f32.mrf.mxu0
    %v1085 = vadd.f32 %v916, %v1084
    %v1086 = vpop.f32.mrf.mxu0
    %v1087 = vadd.f32 %v918, %v1086
    %1088 = vmatmul.bf16.gmra.mxu0 %v651
    %v1089 = vpop.f32.mrf.mxu0
    %v1090 = vadd.f32 %v921, %v1089
    %v1091 = vpop.f32.mrf.mxu0
    %v1092 = vadd.f32 %v923, %v1091
    %1093 = vmatmul.bf16.gmra.mxu0 %v655
    %v1094 = vpop.f32.mrf.mxu0
    %v1095 = vadd.f32 %v926, %v1094
    %v1096 = vpop.f32.mrf.mxu0
    %v1097 = vadd.f32 %v928, %v1096
    %1098 = vmatmul.bf16.gmra.mxu0 %v659
    %v1099 = vpop.f32.mrf.mxu0
    %v1100 = vadd.f32 %v931, %v1099
    %v1101 = vpop.f32.mrf.mxu0
    %v1102 = vadd.f32 %v933, %v1101
    %1103 = vmatmul.bf16.gmra.mxu0 %v663
    %v1104 = vpop.f32.mrf.mxu0
    %v1105 = vadd.f32 %v936, %v1104
    %v1106 = vpop.f32.mrf.mxu0
    %v1107 = vadd.f32 %v938, %v1106
    %1108 = vmatmul.bf16.gmra.mxu0 %v667
    %v1109 = vpop.f32.mrf.mxu0
    %v1110 = vadd.f32 %v941, %v1109
    %v1111 = vpop.f32.mrf.mxu0
    %v1112 = vadd.f32 %v943, %v1111
    %1113 = vmatmul.bf16.gmra.mxu0 %v671
    %v1114 = vpop.f32.mrf.mxu0
    %v1115 = vadd.f32 %v946, %v1114
    %v1116 = vpop.f32.mrf.mxu0
    %v1117 = vadd.f32 %v948, %v1116
    %1118 = vmatmul.bf16.gmra.mxu0 %v675
    %v1119 = vpop.f32.mrf.mxu0
    %v1120 = vadd.f32 %v951, %v1119
    %v1121 = vpop.f32.mrf.mxu0
    %v1122 = vadd.f32 %v953, %v1121
    %1123 = vmatmul.bf16.gmra.mxu0 %v679
    %v1124 = vpop.f32.mrf.mxu0
    %v1125 = vadd.f32 %v956, %v1124
    %v1126 = vpop.f32.mrf.mxu0
    %v1127 = vadd.f32 %v958, %v1126
    %1128 = vmatmul.bf16.gmra.mxu0 %v683
    %v1129 = vpop.f32.mrf.mxu0
    %v1130 = vadd.f32 %v961, %v1129
    %v1131 = vpop.f32.mrf.mxu0
    %v1132 = vadd.f32 %v963, %v1131
    %1133 = vmatmul.bf16.gmra.mxu0 %v687
    %v1134 = vpop.f32.mrf.mxu0
    %v1135 = vadd.f32 %v966, %v1134
    %v1136 = vpop.f32.mrf.mxu0
    %v1137 = vadd.f32 %v968, %v1136
    %1138 = vmatmul.bf16.gmra.mxu0 %v691
    %v1139 = vpop.f32.mrf.mxu0
    %v1140 = vadd.f32 %v971, %v1139
    %v1141 = vpop.f32.mrf.mxu0
    %v1142 = vadd.f32 %v973, %v1141
    %1143 = vmatmul.bf16.gmra.mxu0 %v695
    %v1144 = vpop.f32.mrf.mxu0
    %v1145 = vadd.f32 %v976, %v1144
    %v1146 = vpop.f32.mrf.mxu0
    %v1147 = vadd.f32 %v978, %v1146
    %1148 = vmatmul.bf16.gmra.mxu0 %v699
    %v1149 = vpop.f32.mrf.mxu0
    %v1150 = vadd.f32 %v981, %v1149
    %v1151 = vpop.f32.mrf.mxu0
    %v1152 = vadd.f32 %v983, %v1151
    %1153 = vmatmul.bf16.gmra.mxu0 %v703
    %v1154 = vpop.f32.mrf.mxu0
    %v1155 = vadd.f32 %v986, %v1154
    %v1156 = vpop.f32.mrf.mxu0
    %v1157 = vadd.f32 %v988, %v1156
    %1158 = vmatmul.bf16.gmra.mxu0 %v707
    %v1159 = vpop.f32.mrf.mxu0
    %v1160 = vadd.f32 %v991, %v1159
    %v1161 = vpop.f32.mrf.mxu0
    %v1162 = vadd.f32 %v993, %v1161
    %1163 = vmatmul.bf16.gmra.mxu0 %v711
    %v1164 = vpop.f32.mrf.mxu0
    %v1165 = vadd.f32 %v996, %v1164
    %v1166 = vpop.f32.mrf.mxu0
    %v1167 = vadd.f32 %v998, %v1166
    %1168 = vmatmul.bf16.gmra.mxu0 %v715
    %v1169 = vpop.f32.mrf.mxu0
    %v1170 = vadd.f32 %v1001, %v1169
    %v1171 = vpop.f32.mrf.mxu0
    %v1172 = vadd.f32 %v1003, %v1171
    %1173 = vmatmul.bf16.gmra.mxu0 %v719
    %v1174 = vpop.f32.mrf.mxu0
    %v1175 = vadd.f32 %v1006, %v1174
    %v1176 = vpop.f32.mrf.mxu0
    %v1177 = vadd.f32 %v1008, %v1176
    %1178 = vmatmul.bf16.gmra.mxu0 %v723
    %v1179 = vpop.f32.mrf.mxu0
    %v1180 = vadd.f32 %v1011, %v1179
    %v1181 = vpop.f32.mrf.mxu0
    %v1182 = vadd.f32 %v1013, %v1181
    %1183 = vmatmul.bf16.gmra.mxu0 %v727
    %v1184 = vpop.f32.mrf.mxu0
    %v1185 = vadd.f32 %v1016, %v1184
    %v1186 = vpop.f32.mrf.mxu0
    %v1187 = vadd.f32 %v1018, %v1186
    %1188 = vmatmul.bf16.gmra.mxu0 %v731
    %v1189 = vpop.f32.mrf.mxu0
    %v1190 = vadd.f32 %v1021, %v1189
    %v1191 = vpop.f32.mrf.mxu0
    %v1192 = vadd.f32 %v1023, %v1191
    %1193 = vmatmul.bf16.gmra.mxu0 %v735
    %v1194 = vpop.f32.mrf.mxu0
    %v1195 = vadd.f32 %v1026, %v1194
    %v1196 = vpop.f32.mrf.mxu0
    %v1197 = vadd.f32 %v1028, %v1196
    %1198 = vmatmul.bf16.gmra.mxu0 %v739
    %v1199 = vpop.f32.mrf.mxu0
    %v1200 = vadd.f32 %v1031, %v1199
    %v1201 = vpop.f32.mrf.mxu0
    %v1202 = vadd.f32 %v1033, %v1201
    %1203 = vmatmul.bf16.gmra.mxu0 %v743
    %v1204 = vpop.f32.mrf.mxu0
    %v1205 = vadd.f32 %v1036, %v1204
    %v1206 = vpop.f32.mrf.mxu0
    %v1207 = vadd.f32 %v1038, %v1206
    %1208 = vmatmul.bf16.gmra.mxu0 %v747
    %v1209 = vpop.f32.mrf.mxu0
    %v1210 = vadd.f32 %v1041, %v1209
    %v1211 = vpop.f32.mrf.mxu0
    %v1212 = vadd.f32 %v1043, %v1211
    %1213 = vmatmul.bf16.gmra.mxu0 %v751
    %v1214 = vpop.f32.mrf.mxu0
    %v1215 = vadd.f32 %v1046, %v1214
    %v1216 = vpop.f32.mrf.mxu0
    %v1217 = vadd.f32 %v1048, %v1216
    %1218 = vmatmul.bf16.gmra.mxu0 %v755
    %v1219 = vpop.f32.mrf.mxu0
    %v1220 = vadd.f32 %v1051, %v1219
    %v1221 = vpop.f32.mrf.mxu0
    %v1222 = vadd.f32 %v1053, %v1221
    %1223 = vdwg.mxu0
    %1224 = vmatpush.bf16.msra.mxu0 %v237
    %1225 = vmatpush.bf16.msra.mxu0 %v236
    %1226 = vmatpush.bf16.msra.mxu0 %v235
    %1227 = vmatpush.bf16.msra.mxu0 %v234
    %1228 = vmatpush.bf16.msra.mxu0 %v233
    %1229 = vmatpush.bf16.msra.mxu0 %v232
    %1230 = vmatpush.bf16.msra.mxu0 %v231
    %1231 = vmatpush.bf16.msra.mxu0 %v230
    %1232 = vmatmul.bf16.gmra.mxu0 %v632
    %v1233 = vpop.f32.mrf.mxu0
    %v1234 = vadd.f32 %v1065, %v1233
    %v1235 = vpop.f32.mrf.mxu0
    %v1236 = vadd.f32 %v1067, %v1235
    %1237 = vmatmul.bf16.gmra.mxu0 %v636
    %v1238 = vpop.f32.mrf.mxu0
    %v1239 = vadd.f32 %v1070, %v1238
    %v1240 = vpop.f32.mrf.mxu0
    %v1241 = vadd.f32 %v1072, %v1240
    %1242 = vmatmul.bf16.gmra.mxu0 %v640
    %v1243 = vpop.f32.mrf.mxu0
    %v1244 = vadd.f32 %v1075, %v1243
    %v1245 = vpop.f32.mrf.mxu0
    %v1246 = vadd.f32 %v1077, %v1245
    %1247 = vmatmul.bf16.gmra.mxu0 %v644
    %v1248 = vpop.f32.mrf.mxu0
    %v1249 = vadd.f32 %v1080, %v1248
    %v1250 = vpop.f32.mrf.mxu0
    %v1251 = vadd.f32 %v1082, %v1250
    %1252 = vmatmul.bf16.gmra.mxu0 %v648
    %v1253 = vpop.f32.mrf.mxu0
    %v1254 = vadd.f32 %v1085, %v1253
    %v1255 = vpop.f32.mrf.mxu0
    %v1256 = vadd.f32 %v1087, %v1255
    %1257 = vmatmul.bf16.gmra.mxu0 %v652
    %v1258 = vpop.f32.mrf.mxu0
    %v1259 = vadd.f32 %v1090, %v1258
    %v1260 = vpop.f32.mrf.mxu0
    %v1261 = vadd.f32 %v1092, %v1260
    %1262 = vmatmul.bf16.gmra.mxu0 %v656
    %v1263 = vpop.f32.mrf.mxu0
    %v1264 = vadd.f32 %v1095, %v1263
    %v1265 = vpop.f32.mrf.mxu0
    %v1266 = vadd.f32 %v1097, %v1265
    %1267 = vmatmul.bf16.gmra.mxu0 %v660
    %v1268 = vpop.f32.mrf.mxu0
    %v1269 = vadd.f32 %v1100, %v1268
    %v1270 = vpop.f32.mrf.mxu0
    %v1271 = vadd.f32 %v1102, %v1270
    %1272 = vmatmul.bf16.gmra.mxu0 %v664
    %v1273 = vpop.f32.mrf.mxu0
    %v1274 = vadd.f32 %v1105, %v1273
    %v1275 = vpop.f32.mrf.mxu0
    %v1276 = vadd.f32 %v1107, %v1275
    %1277 = vmatmul.bf16.gmra.mxu0 %v668
    %v1278 = vpop.f32.mrf.mxu0
    %v1279 = vadd.f32 %v1110, %v1278
    %v1280 = vpop.f32.mrf.mxu0
    %v1281 = vadd.f32 %v1112, %v1280
    %1282 = vmatmul.bf16.gmra.mxu0 %v672
    %v1283 = vpop.f32.mrf.mxu0
    %v1284 = vadd.f32 %v1115, %v1283
    %v1285 = vpop.f32.mrf.mxu0
    %v1286 = vadd.f32 %v1117, %v1285
    %1287 = vmatmul.bf16.gmra.mxu0 %v676
    %v1288 = vpop.f32.mrf.mxu0
    %v1289 = vadd.f32 %v1120, %v1288
    %v1290 = vpop.f32.mrf.mxu0
    %v1291 = vadd.f32 %v1122, %v1290
    %1292 = vmatmul.bf16.gmra.mxu0 %v680
    %v1293 = vpop.f32.mrf.mxu0
    %v1294 = vadd.f32 %v1125, %v1293
    %v1295 = vpop.f32.mrf.mxu0
    %v1296 = vadd.f32 %v1127, %v1295
    %1297 = vmatmul.bf16.gmra.mxu0 %v684
    %v1298 = vpop.f32.mrf.mxu0
    %v1299 = vadd.f32 %v1130, %v1298
    %v1300 = vpop.f32.mrf.mxu0
    %v1301 = vadd.f32 %v1132, %v1300
    %1302 = vmatmul.bf16.gmra.mxu0 %v688
    %v1303 = vpop.f32.mrf.mxu0
    %v1304 = vadd.f32 %v1135, %v1303
    %v1305 = vpop.f32.mrf.mxu0
    %v1306 = vadd.f32 %v1137, %v1305
    %1307 = vmatmul.bf16.gmra.mxu0 %v692
    %v1308 = vpop.f32.mrf.mxu0
    %v1309 = vadd.f32 %v1140, %v1308
    %v1310 = vpop.f32.mrf.mxu0
    %v1311 = vadd.f32 %v1142, %v1310
    %1312 = vmatmul.bf16.gmra.mxu0 %v696
    %v1313 = vpop.f32.mrf.mxu0
    %v1314 = vadd.f32 %v1145, %v1313
    %v1315 = vpop.f32.mrf.mxu0
    %v1316 = vadd.f32 %v1147, %v1315
    %1317 = vmatmul.bf16.gmra.mxu0 %v700
    %v1318 = vpop.f32.mrf.mxu0
    %v1319 = vadd.f32 %v1150, %v1318
    %v1320 = vpop.f32.mrf.mxu0
    %v1321 = vadd.f32 %v1152, %v1320
    %1322 = vmatmul.bf16.gmra.mxu0 %v704
    %v1323 = vpop.f32.mrf.mxu0
    %v1324 = vadd.f32 %v1155, %v1323
    %v1325 = vpop.f32.mrf.mxu0
    %v1326 = vadd.f32 %v1157, %v1325
    %1327 = vmatmul.bf16.gmra.mxu0 %v708
    %v1328 = vpop.f32.mrf.mxu0
    %v1329 = vadd.f32 %v1160, %v1328
    %v1330 = vpop.f32.mrf.mxu0
    %v1331 = vadd.f32 %v1162, %v1330
    %1332 = vmatmul.bf16.gmra.mxu0 %v712
    %v1333 = vpop.f32.mrf.mxu0
    %v1334 = vadd.f32 %v1165, %v1333
    %v1335 = vpop.f32.mrf.mxu0
    %v1336 = vadd.f32 %v1167, %v1335
    %1337 = vmatmul.bf16.gmra.mxu0 %v716
    %v1338 = vpop.f32.mrf.mxu0
    %v1339 = vadd.f32 %v1170, %v1338
    %v1340 = vpop.f32.mrf.mxu0
    %v1341 = vadd.f32 %v1172, %v1340
    %1342 = vmatmul.bf16.gmra.mxu0 %v720
    %v1343 = vpop.f32.mrf.mxu0
    %v1344 = vadd.f32 %v1175, %v1343
    %v1345 = vpop.f32.mrf.mxu0
    %v1346 = vadd.f32 %v1177, %v1345
    %1347 = vmatmul.bf16.gmra.mxu0 %v724
    %v1348 = vpop.f32.mrf.mxu0
    %v1349 = vadd.f32 %v1180, %v1348
    %v1350 = vpop.f32.mrf.mxu0
    %v1351 = vadd.f32 %v1182, %v1350
    %1352 = vmatmul.bf16.gmra.mxu0 %v728
    %v1353 = vpop.f32.mrf.mxu0
    %v1354 = vadd.f32 %v1185, %v1353
    %v1355 = vpop.f32.mrf.mxu0
    %v1356 = vadd.f32 %v1187, %v1355
    %1357 = vmatmul.bf16.gmra.mxu0 %v732
    %v1358 = vpop.f32.mrf.mxu0
    %v1359 = vadd.f32 %v1190, %v1358
    %v1360 = vpop.f32.mrf.mxu0
    %v1361 = vadd.f32 %v1192, %v1360
    %1362 = vmatmul.bf16.gmra.mxu0 %v736
    %v1363 = vpop.f32.mrf.mxu0
    %v1364 = vadd.f32 %v1195, %v1363
    %v1365 = vpop.f32.mrf.mxu0
    %v1366 = vadd.f32 %v1197, %v1365
    %1367 = vmatmul.bf16.gmra.mxu0 %v740
    %v1368 = vpop.f32.mrf.mxu0
    %v1369 = vadd.f32 %v1200, %v1368
    %v1370 = vpop.f32.mrf.mxu0
    %v1371 = vadd.f32 %v1202, %v1370
    %1372 = vmatmul.bf16.gmra.mxu0 %v744
    %v1373 = vpop.f32.mrf.mxu0
    %v1374 = vadd.f32 %v1205, %v1373
    %v1375 = vpop.f32.mrf.mxu0
    %v1376 = vadd.f32 %v1207, %v1375
    %1377 = vmatmul.bf16.gmra.mxu0 %v748
    %v1378 = vpop.f32.mrf.mxu0
    %v1379 = vadd.f32 %v1210, %v1378
    %v1380 = vpop.f32.mrf.mxu0
    %v1381 = vadd.f32 %v1212, %v1380
    %1382 = vmatmul.bf16.gmra.mxu0 %v752
    %v1383 = vpop.f32.mrf.mxu0
    %v1384 = vadd.f32 %v1215, %v1383
    %v1385 = vpop.f32.mrf.mxu0
    %v1386 = vadd.f32 %v1217, %v1385
    %1387 = vmatmul.bf16.gmra.mxu0 %v756
    %v1388 = vpop.f32.mrf.mxu0
    %v1389 = vadd.f32 %v1220, %v1388
    %v1390 = vpop.f32.mrf.mxu0
    %v1391 = vadd.f32 %v1222, %v1390
    %1392 = vdwg.mxu0
    %1393 = vmatpush.bf16.msra.mxu0 %v245
    %1394 = vmatpush.bf16.msra.mxu0 %v244
    %1395 = vmatpush.bf16.msra.mxu0 %v243
    %1396 = vmatpush.bf16.msra.mxu0 %v242
    %1397 = vmatpush.bf16.msra.mxu0 %v241
    %1398 = vmatpush.bf16.msra.mxu0 %v240
    %1399 = vmatpush.bf16.msra.mxu0 %v239
    %1400 = vmatpush.bf16.msra.mxu0 %v238
    %1401 = vmatmul.bf16.gmra.mxu0 %v633
    %v1402 = vpop.f32.mrf.mxu0
    %v1403 = vadd.f32 %v1234, %v1402
    %v1404 = vpop.f32.mrf.mxu0
    %v1405 = vadd.f32 %v1236, %v1404
    %1406 = vmatmul.bf16.gmra.mxu0 %v637
    %v1407 = vpop.f32.mrf.mxu0
    %v1408 = vadd.f32 %v1239, %v1407
    %v1409 = vpop.f32.mrf.mxu0
    %v1410 = vadd.f32 %v1241, %v1409
    %1411 = vmatmul.bf16.gmra.mxu0 %v641
    %v1412 = vpop.f32.mrf.mxu0
    %v1413 = vadd.f32 %v1244, %v1412
    %v1414 = vpop.f32.mrf.mxu0
    %v1415 = vadd.f32 %v1246, %v1414
    %1416 = vmatmul.bf16.gmra.mxu0 %v645
    %v1417 = vpop.f32.mrf.mxu0
    %v1418 = vadd.f32 %v1249, %v1417
    %v1419 = vpop.f32.mrf.mxu0
    %v1420 = vadd.f32 %v1251, %v1419
    %1421 = vmatmul.bf16.gmra.mxu0 %v649
    %v1422 = vpop.f32.mrf.mxu0
    %v1423 = vadd.f32 %v1254, %v1422
    %v1424 = vpop.f32.mrf.mxu0
    %v1425 = vadd.f32 %v1256, %v1424
    %1426 = vmatmul.bf16.gmra.mxu0 %v653
    %v1427 = vpop.f32.mrf.mxu0
    %v1428 = vadd.f32 %v1259, %v1427
    %v1429 = vpop.f32.mrf.mxu0
    %v1430 = vadd.f32 %v1261, %v1429
    %1431 = vmatmul.bf16.gmra.mxu0 %v657
    %v1432 = vpop.f32.mrf.mxu0
    %v1433 = vadd.f32 %v1264, %v1432
    %v1434 = vpop.f32.mrf.mxu0
    %v1435 = vadd.f32 %v1266, %v1434
    %1436 = vmatmul.bf16.gmra.mxu0 %v661
    %v1437 = vpop.f32.mrf.mxu0
    %v1438 = vadd.f32 %v1269, %v1437
    %v1439 = vpop.f32.mrf.mxu0
    %v1440 = vadd.f32 %v1271, %v1439
    %1441 = vmatmul.bf16.gmra.mxu0 %v665
    %v1442 = vpop.f32.mrf.mxu0
    %v1443 = vadd.f32 %v1274, %v1442
    %v1444 = vpop.f32.mrf.mxu0
    %v1445 = vadd.f32 %v1276, %v1444
    %1446 = vmatmul.bf16.gmra.mxu0 %v669
    %v1447 = vpop.f32.mrf.mxu0
    %v1448 = vadd.f32 %v1279, %v1447
    %v1449 = vpop.f32.mrf.mxu0
    %v1450 = vadd.f32 %v1281, %v1449
    %1451 = vmatmul.bf16.gmra.mxu0 %v673
    %v1452 = vpop.f32.mrf.mxu0
    %v1453 = vadd.f32 %v1284, %v1452
    %v1454 = vpop.f32.mrf.mxu0
    %v1455 = vadd.f32 %v1286, %v1454
    %1456 = vmatmul.bf16.gmra.mxu0 %v677
    %v1457 = vpop.f32.mrf.mxu0
    %v1458 = vadd.f32 %v1289, %v1457
    %v1459 = vpop.f32.mrf.mxu0
    %v1460 = vadd.f32 %v1291, %v1459
    %1461 = vmatmul.bf16.gmra.mxu0 %v681
    %v1462 = vpop.f32.mrf.mxu0
    %v1463 = vadd.f32 %v1294, %v1462
    %v1464 = vpop.f32.mrf.mxu0
    %v1465 = vadd.f32 %v1296, %v1464
    %1466 = vmatmul.bf16.gmra.mxu0 %v685
    %v1467 = vpop.f32.mrf.mxu0
    %v1468 = vadd.f32 %v1299, %v1467
    %v1469 = vpop.f32.mrf.mxu0
    %v1470 = vadd.f32 %v1301, %v1469
    %1471 = vmatmul.bf16.gmra.mxu0 %v689
    %v1472 = vpop.f32.mrf.mxu0
    %v1473 = vadd.f32 %v1304, %v1472
    %v1474 = vpop.f32.mrf.mxu0
    %v1475 = vadd.f32 %v1306, %v1474
    %1476 = vmatmul.bf16.gmra.mxu0 %v693
    %v1477 = vpop.f32.mrf.mxu0
    %v1478 = vadd.f32 %v1309, %v1477
    %v1479 = vpop.f32.mrf.mxu0
    %v1480 = vadd.f32 %v1311, %v1479
    %1481 = vmatmul.bf16.gmra.mxu0 %v697
    %v1482 = vpop.f32.mrf.mxu0
    %v1483 = vadd.f32 %v1314, %v1482
    %v1484 = vpop.f32.mrf.mxu0
    %v1485 = vadd.f32 %v1316, %v1484
    %1486 = vmatmul.bf16.gmra.mxu0 %v701
    %v1487 = vpop.f32.mrf.mxu0
    %v1488 = vadd.f32 %v1319, %v1487
    %v1489 = vpop.f32.mrf.mxu0
    %v1490 = vadd.f32 %v1321, %v1489
    %1491 = vmatmul.bf16.gmra.mxu0 %v705
    %v1492 = vpop.f32.mrf.mxu0
    %v1493 = vadd.f32 %v1324, %v1492
    %v1494 = vpop.f32.mrf.mxu0
    %v1495 = vadd.f32 %v1326, %v1494
    %1496 = vmatmul.bf16.gmra.mxu0 %v709
    %v1497 = vpop.f32.mrf.mxu0
    %v1498 = vadd.f32 %v1329, %v1497
    %v1499 = vpop.f32.mrf.mxu0
    %v1500 = vadd.f32 %v1331, %v1499
    %1501 = vmatmul.bf16.gmra.mxu0 %v713
    %v1502 = vpop.f32.mrf.mxu0
    %v1503 = vadd.f32 %v1334, %v1502
    %v1504 = vpop.f32.mrf.mxu0
    %v1505 = vadd.f32 %v1336, %v1504
    %1506 = vmatmul.bf16.gmra.mxu0 %v717
    %v1507 = vpop.f32.mrf.mxu0
    %v1508 = vadd.f32 %v1339, %v1507
    %v1509 = vpop.f32.mrf.mxu0
    %v1510 = vadd.f32 %v1341, %v1509
    %1511 = vmatmul.bf16.gmra.mxu0 %v721
    %v1512 = vpop.f32.mrf.mxu0
    %v1513 = vadd.f32 %v1344, %v1512
    %v1514 = vpop.f32.mrf.mxu0
    %v1515 = vadd.f32 %v1346, %v1514
    %1516 = vmatmul.bf16.gmra.mxu0 %v725
    %v1517 = vpop.f32.mrf.mxu0
    %v1518 = vadd.f32 %v1349, %v1517
    %v1519 = vpop.f32.mrf.mxu0
    %v1520 = vadd.f32 %v1351, %v1519
    %1521 = vmatmul.bf16.gmra.mxu0 %v729
    %v1522 = vpop.f32.mrf.mxu0
    %v1523 = vadd.f32 %v1354, %v1522
    %v1524 = vpop.f32.mrf.mxu0
    %v1525 = vadd.f32 %v1356, %v1524
    %1526 = vmatmul.bf16.gmra.mxu0 %v733
    %v1527 = vpop.f32.mrf.mxu0
    %v1528 = vadd.f32 %v1359, %v1527
    %v1529 = vpop.f32.mrf.mxu0
    %v1530 = vadd.f32 %v1361, %v1529
    %1531 = vmatmul.bf16.gmra.mxu0 %v737
    %v1532 = vpop.f32.mrf.mxu0
    %v1533 = vadd.f32 %v1364, %v1532
    %v1534 = vpop.f32.mrf.mxu0
    %v1535 = vadd.f32 %v1366, %v1534
    %1536 = vmatmul.bf16.gmra.mxu0 %v741
    %v1537 = vpop.f32.mrf.mxu0
    %v1538 = vadd.f32 %v1369, %v1537
    %v1539 = vpop.f32.mrf.mxu0
    %v1540 = vadd.f32 %v1371, %v1539
    %1541 = vmatmul.bf16.gmra.mxu0 %v745
    %v1542 = vpop.f32.mrf.mxu0
    %v1543 = vadd.f32 %v1374, %v1542
    %v1544 = vpop.f32.mrf.mxu0
    %v1545 = vadd.f32 %v1376, %v1544
    %1546 = vmatmul.bf16.gmra.mxu0 %v749
    %v1547 = vpop.f32.mrf.mxu0
    %v1548 = vadd.f32 %v1379, %v1547
    %v1549 = vpop.f32.mrf.mxu0
    %v1550 = vadd.f32 %v1381, %v1549
    %1551 = vmatmul.bf16.gmra.mxu0 %v753
    %v1552 = vpop.f32.mrf.mxu0
    %v1553 = vadd.f32 %v1384, %v1552
    %v1554 = vpop.f32.mrf.mxu0
    %v1555 = vadd.f32 %v1386, %v1554
    %1556 = vmatmul.bf16.gmra.mxu0 %v757
    %v1557 = vpop.f32.mrf.mxu0
    %v1558 = vadd.f32 %v1389, %v1557
    %v1559 = vpop.f32.mrf.mxu0
    %v1560 = vadd.f32 %v1391, %v1559
    %1561 = vdwg.mxu0
    %v1562 = vld [vmem:[%s1] sm:$0xff]
    %v1563 = vld [vmem:[%s1 + $0x8] sm:$0xff]
    %v1564 = vld [vmem:[%s1 + $0x10] sm:$0xff]
    %v1565 = vld [vmem:[%s1 + $0x18] sm:$0xff]
    %v1566 = vld [vmem:[%s1 + $0x20] sm:$0xff]
    %v1567 = vld [vmem:[%s1 + $0x28] sm:$0xff]
    %v1568 = vld [vmem:[%s1 + $0x30] sm:$0xff]
    %v1569 = vld [vmem:[%s1 + $0x38] sm:$0xff]
    %v1570 = vld [vmem:[%s1 + $0x40] sm:$0xff]
    %v1571 = vld [vmem:[%s1 + $0x48] sm:$0xff]
    %v1572 = vld [vmem:[%s1 + $0x50] sm:$0xff]
    %v1573 = vld [vmem:[%s1 + $0x58] sm:$0xff]
    %v1574 = vld [vmem:[%s1 + $0x60] sm:$0xff]
    %v1575 = vld [vmem:[%s1 + $0x68] sm:$0xff]
    %v1576 = vld [vmem:[%s1 + $0x70] sm:$0xff]
    %v1577 = vld [vmem:[%s1 + $0x78] sm:$0xff]
    %v1578 = vld [vmem:[%s1 + $0x80] sm:$0xff]
    %v1579 = vld [vmem:[%s1 + $0x88] sm:$0xff]
    %v1580 = vld [vmem:[%s1 + $0x90] sm:$0xff]
    %v1581 = vld [vmem:[%s1 + $0x98] sm:$0xff]
    %v1582 = vld [vmem:[%s1 + $0xa0] sm:$0xff]
    %v1583 = vld [vmem:[%s1 + $0xa8] sm:$0xff]
    %v1584 = vld [vmem:[%s1 + $0xb0] sm:$0xff]
    %v1585 = vld [vmem:[%s1 + $0xb8] sm:$0xff]
    %v1586 = vld [vmem:[%s1 + $0xc0] sm:$0xff]
    %v1587 = vld [vmem:[%s1 + $0xc8] sm:$0xff]
    %v1588 = vld [vmem:[%s1 + $0xd0] sm:$0xff]
    %v1589 = vld [vmem:[%s1 + $0xd8] sm:$0xff]
    %v1590 = vld [vmem:[%s1 + $0xe0] sm:$0xff]
    %v1591 = vld [vmem:[%s1 + $0xe8] sm:$0xff]
    %v1592 = vld [vmem:[%s1 + $0xf0] sm:$0xff]
    %v1593 = vld [vmem:[%s1 + $0xf8] sm:$0xff]
    %v1594 = vld [vmem:[%s1 + $0x100] sm:$0xff]
    %v1595 = vld [vmem:[%s1 + $0x108] sm:$0xff]
    %v1596 = vld [vmem:[%s1 + $0x110] sm:$0xff]
    %v1597 = vld [vmem:[%s1 + $0x118] sm:$0xff]
    %v1598 = vld [vmem:[%s1 + $0x120] sm:$0xff]
    %v1599 = vld [vmem:[%s1 + $0x128] sm:$0xff]
    %v1600 = vld [vmem:[%s1 + $0x130] sm:$0xff]
    %v1601 = vld [vmem:[%s1 + $0x138] sm:$0xff]
    %v1602 = vld [vmem:[%s1 + $0x140] sm:$0xff]
    %v1603 = vld [vmem:[%s1 + $0x148] sm:$0xff]
    %v1604 = vld [vmem:[%s1 + $0x150] sm:$0xff]
    %v1605 = vld [vmem:[%s1 + $0x158] sm:$0xff]
    %v1606 = vld [vmem:[%s1 + $0x160] sm:$0xff]
    %v1607 = vld [vmem:[%s1 + $0x168] sm:$0xff]
    %v1608 = vld [vmem:[%s1 + $0x170] sm:$0xff]
    %v1609 = vld [vmem:[%s1 + $0x178] sm:$0xff]
    %v1610 = vld [vmem:[%s1 + $0x180] sm:$0xff]
    %v1611 = vld [vmem:[%s1 + $0x188] sm:$0xff]
    %v1612 = vld [vmem:[%s1 + $0x190] sm:$0xff]
    %v1613 = vld [vmem:[%s1 + $0x198] sm:$0xff]
    %v1614 = vld [vmem:[%s1 + $0x1a0] sm:$0xff]
    %v1615 = vld [vmem:[%s1 + $0x1a8] sm:$0xff]
    %v1616 = vld [vmem:[%s1 + $0x1b0] sm:$0xff]
    %v1617 = vld [vmem:[%s1 + $0x1b8] sm:$0xff]
    %v1618 = vld [vmem:[%s1 + $0x1c0] sm:$0xff]
    %v1619 = vld [vmem:[%s1 + $0x1c8] sm:$0xff]
    %v1620 = vld [vmem:[%s1 + $0x1d0] sm:$0xff]
    %v1621 = vld [vmem:[%s1 + $0x1d8] sm:$0xff]
    %v1622 = vld [vmem:[%s1 + $0x1e0] sm:$0xff]
    %v1623 = vld [vmem:[%s1 + $0x1e8] sm:$0xff]
    %v1624 = vld [vmem:[%s1 + $0x1f0] sm:$0xff]
    %v1625 = vld [vmem:[%s1 + $0x1f8] sm:$0xff]
    %1627 = vset.pattern.permute.xlu0 0
    %1628 = vperm.xlu0 %1627, %v1562
    %v1629 = vpop.permute.xlu0 %1628
    %1632 = vset.pattern.permute.xlu0 0
    %1633 = vperm.xlu0 %1632, %v1563
    %v1634 = vpop.permute.xlu0 %1633
    %1637 = vset.pattern.permute.xlu0 0
    %1638 = vperm.xlu0 %1637, %v1564
    %v1639 = vpop.permute.xlu0 %1638
    %1642 = vset.pattern.permute.xlu0 0
    %1643 = vperm.xlu0 %1642, %v1565
    %v1644 = vpop.permute.xlu0 %1643
    %1647 = vset.pattern.permute.xlu0 0
    %1648 = vperm.xlu0 %1647, %v1566
    %v1649 = vpop.permute.xlu0 %1648
    %1652 = vset.pattern.permute.xlu0 0
    %1653 = vperm.xlu0 %1652, %v1567
    %v1654 = vpop.permute.xlu0 %1653
    %1657 = vset.pattern.permute.xlu0 0
    %1658 = vperm.xlu0 %1657, %v1568
    %v1659 = vpop.permute.xlu0 %1658
    %1662 = vset.pattern.permute.xlu0 0
    %1663 = vperm.xlu0 %1662, %v1569
    %v1664 = vpop.permute.xlu0 %1663
    %1667 = vset.pattern.permute.xlu0 0
    %1668 = vperm.xlu0 %1667, %v1570
    %v1669 = vpop.permute.xlu0 %1668
    %1672 = vset.pattern.permute.xlu0 0
    %1673 = vperm.xlu0 %1672, %v1571
    %v1674 = vpop.permute.xlu0 %1673
    %1677 = vset.pattern.permute.xlu0 0
    %1678 = vperm.xlu0 %1677, %v1572
    %v1679 = vpop.permute.xlu0 %1678
    %1682 = vset.pattern.permute.xlu0 0
    %1683 = vperm.xlu0 %1682, %v1573
    %v1684 = vpop.permute.xlu0 %1683
    %1687 = vset.pattern.permute.xlu0 0
    %1688 = vperm.xlu0 %1687, %v1574
    %v1689 = vpop.permute.xlu0 %1688
    %1692 = vset.pattern.permute.xlu0 0
    %1693 = vperm.xlu0 %1692, %v1575
    %v1694 = vpop.permute.xlu0 %1693
    %1697 = vset.pattern.permute.xlu0 0
    %1698 = vperm.xlu0 %1697, %v1576
    %v1699 = vpop.permute.xlu0 %1698
    %1702 = vset.pattern.permute.xlu0 0
    %1703 = vperm.xlu0 %1702, %v1577
    %v1704 = vpop.permute.xlu0 %1703
    %1707 = vset.pattern.permute.xlu0 0
    %1708 = vperm.xlu0 %1707, %v1578
    %v1709 = vpop.permute.xlu0 %1708
    %1712 = vset.pattern.permute.xlu0 0
    %1713 = vperm.xlu0 %1712, %v1579
    %v1714 = vpop.permute.xlu0 %1713
    %1717 = vset.pattern.permute.xlu0 0
    %1718 = vperm.xlu0 %1717, %v1580
    %v1719 = vpop.permute.xlu0 %1718
    %1722 = vset.pattern.permute.xlu0 0
    %1723 = vperm.xlu0 %1722, %v1581
    %v1724 = vpop.permute.xlu0 %1723
    %1727 = vset.pattern.permute.xlu0 0
    %1728 = vperm.xlu0 %1727, %v1582
    %v1729 = vpop.permute.xlu0 %1728
    %1732 = vset.pattern.permute.xlu0 0
    %1733 = vperm.xlu0 %1732, %v1583
    %v1734 = vpop.permute.xlu0 %1733
    %1737 = vset.pattern.permute.xlu0 0
    %1738 = vperm.xlu0 %1737, %v1584
    %v1739 = vpop.permute.xlu0 %1738
    %1742 = vset.pattern.permute.xlu0 0
    %1743 = vperm.xlu0 %1742, %v1585
    %v1744 = vpop.permute.xlu0 %1743
    %1747 = vset.pattern.permute.xlu0 0
    %1748 = vperm.xlu0 %1747, %v1586
    %v1749 = vpop.permute.xlu0 %1748
    %1752 = vset.pattern.permute.xlu0 0
    %1753 = vperm.xlu0 %1752, %v1587
    %v1754 = vpop.permute.xlu0 %1753
    %1757 = vset.pattern.permute.xlu0 0
    %1758 = vperm.xlu0 %1757, %v1588
    %v1759 = vpop.permute.xlu0 %1758
    %1762 = vset.pattern.permute.xlu0 0
    %1763 = vperm.xlu0 %1762, %v1589
    %v1764 = vpop.permute.xlu0 %1763
    %1767 = vset.pattern.permute.xlu0 0
    %1768 = vperm.xlu0 %1767, %v1590
    %v1769 = vpop.permute.xlu0 %1768
    %1772 = vset.pattern.permute.xlu0 0
    %1773 = vperm.xlu0 %1772, %v1591
    %v1774 = vpop.permute.xlu0 %1773
    %1777 = vset.pattern.permute.xlu0 0
    %1778 = vperm.xlu0 %1777, %v1592
    %v1779 = vpop.permute.xlu0 %1778
    %1782 = vset.pattern.permute.xlu0 0
    %1783 = vperm.xlu0 %1782, %v1593
    %v1784 = vpop.permute.xlu0 %1783
    %1787 = vset.pattern.permute.xlu0 0
    %1788 = vperm.xlu0 %1787, %v1594
    %v1789 = vpop.permute.xlu0 %1788
    %1792 = vset.pattern.permute.xlu0 0
    %1793 = vperm.xlu0 %1792, %v1595
    %v1794 = vpop.permute.xlu0 %1793
    %1797 = vset.pattern.permute.xlu0 0
    %1798 = vperm.xlu0 %1797, %v1596
    %v1799 = vpop.permute.xlu0 %1798
    %1802 = vset.pattern.permute.xlu0 0
    %1803 = vperm.xlu0 %1802, %v1597
    %v1804 = vpop.permute.xlu0 %1803
    %1807 = vset.pattern.permute.xlu0 0
    %1808 = vperm.xlu0 %1807, %v1598
    %v1809 = vpop.permute.xlu0 %1808
    %1812 = vset.pattern.permute.xlu0 0
    %1813 = vperm.xlu0 %1812, %v1599
    %v1814 = vpop.permute.xlu0 %1813
    %1817 = vset.pattern.permute.xlu0 0
    %1818 = vperm.xlu0 %1817, %v1600
    %v1819 = vpop.permute.xlu0 %1818
    %1822 = vset.pattern.permute.xlu0 0
    %1823 = vperm.xlu0 %1822, %v1601
    %v1824 = vpop.permute.xlu0 %1823
    %1827 = vset.pattern.permute.xlu0 0
    %1828 = vperm.xlu0 %1827, %v1602
    %v1829 = vpop.permute.xlu0 %1828
    %1832 = vset.pattern.permute.xlu0 0
    %1833 = vperm.xlu0 %1832, %v1603
    %v1834 = vpop.permute.xlu0 %1833
    %1837 = vset.pattern.permute.xlu0 0
    %1838 = vperm.xlu0 %1837, %v1604
    %v1839 = vpop.permute.xlu0 %1838
    %1842 = vset.pattern.permute.xlu0 0
    %1843 = vperm.xlu0 %1842, %v1605
    %v1844 = vpop.permute.xlu0 %1843
    %1847 = vset.pattern.permute.xlu0 0
    %1848 = vperm.xlu0 %1847, %v1606
    %v1849 = vpop.permute.xlu0 %1848
    %1852 = vset.pattern.permute.xlu0 0
    %1853 = vperm.xlu0 %1852, %v1607
    %v1854 = vpop.permute.xlu0 %1853
    %1857 = vset.pattern.permute.xlu0 0
    %1858 = vperm.xlu0 %1857, %v1608
    %v1859 = vpop.permute.xlu0 %1858
    %1862 = vset.pattern.permute.xlu0 0
    %1863 = vperm.xlu0 %1862, %v1609
    %v1864 = vpop.permute.xlu0 %1863
    %1867 = vset.pattern.permute.xlu0 0
    %1868 = vperm.xlu0 %1867, %v1610
    %v1869 = vpop.permute.xlu0 %1868
    %1872 = vset.pattern.permute.xlu0 0
    %1873 = vperm.xlu0 %1872, %v1611
    %v1874 = vpop.permute.xlu0 %1873
    %1877 = vset.pattern.permute.xlu0 0
    %1878 = vperm.xlu0 %1877, %v1612
    %v1879 = vpop.permute.xlu0 %1878
    %1882 = vset.pattern.permute.xlu0 0
    %1883 = vperm.xlu0 %1882, %v1613
    %v1884 = vpop.permute.xlu0 %1883
    %1887 = vset.pattern.permute.xlu0 0
    %1888 = vperm.xlu0 %1887, %v1614
    %v1889 = vpop.permute.xlu0 %1888
    %1892 = vset.pattern.permute.xlu0 0
    %1893 = vperm.xlu0 %1892, %v1615
    %v1894 = vpop.permute.xlu0 %1893
    %1897 = vset.pattern.permute.xlu0 0
    %1898 = vperm.xlu0 %1897, %v1616
    %v1899 = vpop.permute.xlu0 %1898
    %1902 = vset.pattern.permute.xlu0 0
    %1903 = vperm.xlu0 %1902, %v1617
    %v1904 = vpop.permute.xlu0 %1903
    %1907 = vset.pattern.permute.xlu0 0
    %1908 = vperm.xlu0 %1907, %v1618
    %v1909 = vpop.permute.xlu0 %1908
    %1912 = vset.pattern.permute.xlu0 0
    %1913 = vperm.xlu0 %1912, %v1619
    %v1914 = vpop.permute.xlu0 %1913
    %1917 = vset.pattern.permute.xlu0 0
    %1918 = vperm.xlu0 %1917, %v1620
    %v1919 = vpop.permute.xlu0 %1918
    %1922 = vset.pattern.permute.xlu0 0
    %1923 = vperm.xlu0 %1922, %v1621
    %v1924 = vpop.permute.xlu0 %1923
    %1927 = vset.pattern.permute.xlu0 0
    %1928 = vperm.xlu0 %1927, %v1622
    %v1929 = vpop.permute.xlu0 %1928
    %1932 = vset.pattern.permute.xlu0 0
    %1933 = vperm.xlu0 %1932, %v1623
    %v1934 = vpop.permute.xlu0 %1933
    %1937 = vset.pattern.permute.xlu0 0
    %1938 = vperm.xlu0 %1937, %v1624
    %v1939 = vpop.permute.xlu0 %1938
    %1942 = vset.pattern.permute.xlu0 0
    %1943 = vperm.xlu0 %1942, %v1625
    %v1944 = vpop.permute.xlu0 %1943
    %v1946 = vmul.f32 %v1403, %v1629
    %v1947 = vmul.f32 %v1405, %v1634
    %v1948 = vmul.f32 %v1408, %v1639
    %v1949 = vmul.f32 %v1410, %v1644
    %v1950 = vmul.f32 %v1413, %v1649
    %v1951 = vmul.f32 %v1415, %v1654
    %v1952 = vmul.f32 %v1418, %v1659
    %v1953 = vmul.f32 %v1420, %v1664
    %v1954 = vmul.f32 %v1423, %v1669
    %v1955 = vmul.f32 %v1425, %v1674
    %v1956 = vmul.f32 %v1428, %v1679
    %v1957 = vmul.f32 %v1430, %v1684
    %v1958 = vmul.f32 %v1433, %v1689
    %v1959 = vmul.f32 %v1435, %v1694
    %v1960 = vmul.f32 %v1438, %v1699
    %v1961 = vmul.f32 %v1440, %v1704
    %v1962 = vmul.f32 %v1443, %v1709
    %v1963 = vmul.f32 %v1445, %v1714
    %v1964 = vmul.f32 %v1448, %v1719
    %v1965 = vmul.f32 %v1450, %v1724
    %v1966 = vmul.f32 %v1453, %v1729
    %v1967 = vmul.f32 %v1455, %v1734
    %v1968 = vmul.f32 %v1458, %v1739
    %v1969 = vmul.f32 %v1460, %v1744
    %v1970 = vmul.f32 %v1463, %v1749
    %v1971 = vmul.f32 %v1465, %v1754
    %v1972 = vmul.f32 %v1468, %v1759
    %v1973 = vmul.f32 %v1470, %v1764
    %v1974 = vmul.f32 %v1473, %v1769
    %v1975 = vmul.f32 %v1475, %v1774
    %v1976 = vmul.f32 %v1478, %v1779
    %v1977 = vmul.f32 %v1480, %v1784
    %v1978 = vmul.f32 %v1483, %v1789
    %v1979 = vmul.f32 %v1485, %v1794
    %v1980 = vmul.f32 %v1488, %v1799
    %v1981 = vmul.f32 %v1490, %v1804
    %v1982 = vmul.f32 %v1493, %v1809
    %v1983 = vmul.f32 %v1495, %v1814
    %v1984 = vmul.f32 %v1498, %v1819
    %v1985 = vmul.f32 %v1500, %v1824
    %v1986 = vmul.f32 %v1503, %v1829
    %v1987 = vmul.f32 %v1505, %v1834
    %v1988 = vmul.f32 %v1508, %v1839
    %v1989 = vmul.f32 %v1510, %v1844
    %v1990 = vmul.f32 %v1513, %v1849
    %v1991 = vmul.f32 %v1515, %v1854
    %v1992 = vmul.f32 %v1518, %v1859
    %v1993 = vmul.f32 %v1520, %v1864
    %v1994 = vmul.f32 %v1523, %v1869
    %v1995 = vmul.f32 %v1525, %v1874
    %v1996 = vmul.f32 %v1528, %v1879
    %v1997 = vmul.f32 %v1530, %v1884
    %v1998 = vmul.f32 %v1533, %v1889
    %v1999 = vmul.f32 %v1535, %v1894
    %v2000 = vmul.f32 %v1538, %v1899
    %v2001 = vmul.f32 %v1540, %v1904
    %v2002 = vmul.f32 %v1543, %v1909
    %v2003 = vmul.f32 %v1545, %v1914
    %v2004 = vmul.f32 %v1548, %v1919
    %v2005 = vmul.f32 %v1550, %v1924
    %v2006 = vmul.f32 %v1553, %v1929
    %v2007 = vmul.f32 %v1555, %v1934
    %v2008 = vmul.f32 %v1558, %v1939
    %v2009 = vmul.f32 %v1560, %v1944
    %s2010 = scalar_lea.vmem %s2, %s21
    %v2011 = vld [vmem:[%s2010] sm:$0xff]
    %v2012 = vld [vmem:[%s2010 + $0x8] sm:$0xff]
    %v2013 = vld [vmem:[%s2010 + $0x10] sm:$0xff]
    %v2014 = vld [vmem:[%s2010 + $0x18] sm:$0xff]
    %v2015 = vld [vmem:[%s2010 + $0x20] sm:$0xff]
    %v2016 = vld [vmem:[%s2010 + $0x28] sm:$0xff]
    %v2017 = vld [vmem:[%s2010 + $0x30] sm:$0xff]
    %v2018 = vld [vmem:[%s2010 + $0x38] sm:$0xff]
    %v2019 = vld [vmem:[%s2010 + $0x40] sm:$0xff]
    %v2020 = vld [vmem:[%s2010 + $0x48] sm:$0xff]
    %v2021 = vld [vmem:[%s2010 + $0x50] sm:$0xff]
    %v2022 = vld [vmem:[%s2010 + $0x58] sm:$0xff]
    %v2023 = vld [vmem:[%s2010 + $0x60] sm:$0xff]
    %v2024 = vld [vmem:[%s2010 + $0x68] sm:$0xff]
    %v2025 = vld [vmem:[%s2010 + $0x70] sm:$0xff]
    %v2026 = vld [vmem:[%s2010 + $0x78] sm:$0xff]
    %v2027 = vld [vmem:[%s2010 + $0x80] sm:$0xff]
    %v2028 = vld [vmem:[%s2010 + $0x88] sm:$0xff]
    %v2029 = vld [vmem:[%s2010 + $0x90] sm:$0xff]
    %v2030 = vld [vmem:[%s2010 + $0x98] sm:$0xff]
    %v2031 = vld [vmem:[%s2010 + $0xa0] sm:$0xff]
    %v2032 = vld [vmem:[%s2010 + $0xa8] sm:$0xff]
    %v2033 = vld [vmem:[%s2010 + $0xb0] sm:$0xff]
    %v2034 = vld [vmem:[%s2010 + $0xb8] sm:$0xff]
    %v2035 = vld [vmem:[%s2010 + $0xc0] sm:$0xff]
    %v2036 = vld [vmem:[%s2010 + $0xc8] sm:$0xff]
    %v2037 = vld [vmem:[%s2010 + $0xd0] sm:$0xff]
    %v2038 = vld [vmem:[%s2010 + $0xd8] sm:$0xff]
    %v2039 = vld [vmem:[%s2010 + $0xe0] sm:$0xff]
    %v2040 = vld [vmem:[%s2010 + $0xe8] sm:$0xff]
    %v2041 = vld [vmem:[%s2010 + $0xf0] sm:$0xff]
    %v2042 = vld [vmem:[%s2010 + $0xf8] sm:$0xff]
    %v2043 = vld [vmem:[%s2010 + $0x100] sm:$0xff]
    %v2044 = vld [vmem:[%s2010 + $0x108] sm:$0xff]
    %v2045 = vld [vmem:[%s2010 + $0x110] sm:$0xff]
    %v2046 = vld [vmem:[%s2010 + $0x118] sm:$0xff]
    %v2047 = vld [vmem:[%s2010 + $0x120] sm:$0xff]
    %v2048 = vld [vmem:[%s2010 + $0x128] sm:$0xff]
    %v2049 = vld [vmem:[%s2010 + $0x130] sm:$0xff]
    %v2050 = vld [vmem:[%s2010 + $0x138] sm:$0xff]
    %v2051 = vld [vmem:[%s2010 + $0x140] sm:$0xff]
    %v2052 = vld [vmem:[%s2010 + $0x148] sm:$0xff]
    %v2053 = vld [vmem:[%s2010 + $0x150] sm:$0xff]
    %v2054 = vld [vmem:[%s2010 + $0x158] sm:$0xff]
    %v2055 = vld [vmem:[%s2010 + $0x160] sm:$0xff]
    %v2056 = vld [vmem:[%s2010 + $0x168] sm:$0xff]
    %v2057 = vld [vmem:[%s2010 + $0x170] sm:$0xff]
    %v2058 = vld [vmem:[%s2010 + $0x178] sm:$0xff]
    %v2059 = vld [vmem:[%s2010 + $0x180] sm:$0xff]
    %v2060 = vld [vmem:[%s2010 + $0x188] sm:$0xff]
    %v2061 = vld [vmem:[%s2010 + $0x190] sm:$0xff]
    %v2062 = vld [vmem:[%s2010 + $0x198] sm:$0xff]
    %v2063 = vld [vmem:[%s2010 + $0x1a0] sm:$0xff]
    %v2064 = vld [vmem:[%s2010 + $0x1a8] sm:$0xff]
    %v2065 = vld [vmem:[%s2010 + $0x1b0] sm:$0xff]
    %v2066 = vld [vmem:[%s2010 + $0x1b8] sm:$0xff]
    %v2067 = vld [vmem:[%s2010 + $0x1c0] sm:$0xff]
    %v2068 = vld [vmem:[%s2010 + $0x1c8] sm:$0xff]
    %v2069 = vld [vmem:[%s2010 + $0x1d0] sm:$0xff]
    %v2070 = vld [vmem:[%s2010 + $0x1d8] sm:$0xff]
    %v2071 = vld [vmem:[%s2010 + $0x1e0] sm:$0xff]
    %v2072 = vld [vmem:[%s2010 + $0x1e8] sm:$0xff]
    %v2073 = vld [vmem:[%s2010 + $0x1f0] sm:$0xff]
    %v2074 = vld [vmem:[%s2010 + $0x1f8] sm:$0xff]
    %2139 = vrot.lane.b32.xlu0 %v2011, 16
    %v2140 = vpop.permute.xlu0 %2139
    %2141 = vrot.lane.b32.xlu0 %v2012, 16
    %v2142 = vpop.permute.xlu0 %2141
    %2143 = vrot.lane.b32.xlu0 %v2013, 16
    %v2144 = vpop.permute.xlu0 %2143
    %2145 = vrot.lane.b32.xlu0 %v2014, 16
    %v2146 = vpop.permute.xlu0 %2145
    %2147 = vrot.lane.b32.xlu0 %v2015, 16
    %v2148 = vpop.permute.xlu0 %2147
    %2149 = vrot.lane.b32.xlu0 %v2016, 16
    %v2150 = vpop.permute.xlu0 %2149
    %2151 = vrot.lane.b32.xlu0 %v2017, 16
    %v2152 = vpop.permute.xlu0 %2151
    %2153 = vrot.lane.b32.xlu0 %v2018, 16
    %v2154 = vpop.permute.xlu0 %2153
    %2155 = vrot.lane.b32.xlu0 %v2019, 16
    %v2156 = vpop.permute.xlu0 %2155
    %2157 = vrot.lane.b32.xlu0 %v2020, 16
    %v2158 = vpop.permute.xlu0 %2157
    %2159 = vrot.lane.b32.xlu0 %v2021, 16
    %v2160 = vpop.permute.xlu0 %2159
    %2161 = vrot.lane.b32.xlu0 %v2022, 16
    %v2162 = vpop.permute.xlu0 %2161
    %2163 = vrot.lane.b32.xlu0 %v2023, 16
    %v2164 = vpop.permute.xlu0 %2163
    %2165 = vrot.lane.b32.xlu0 %v2024, 16
    %v2166 = vpop.permute.xlu0 %2165
    %2167 = vrot.lane.b32.xlu0 %v2025, 16
    %v2168 = vpop.permute.xlu0 %2167
    %2169 = vrot.lane.b32.xlu0 %v2026, 16
    %v2170 = vpop.permute.xlu0 %2169
    %2171 = vrot.lane.b32.xlu0 %v2027, 16
    %v2172 = vpop.permute.xlu0 %2171
    %2173 = vrot.lane.b32.xlu0 %v2028, 16
    %v2174 = vpop.permute.xlu0 %2173
    %2175 = vrot.lane.b32.xlu0 %v2029, 16
    %v2176 = vpop.permute.xlu0 %2175
    %2177 = vrot.lane.b32.xlu0 %v2030, 16
    %v2178 = vpop.permute.xlu0 %2177
    %2179 = vrot.lane.b32.xlu0 %v2031, 16
    %v2180 = vpop.permute.xlu0 %2179
    %2181 = vrot.lane.b32.xlu0 %v2032, 16
    %v2182 = vpop.permute.xlu0 %2181
    %2183 = vrot.lane.b32.xlu0 %v2033, 16
    %v2184 = vpop.permute.xlu0 %2183
    %2185 = vrot.lane.b32.xlu0 %v2034, 16
    %v2186 = vpop.permute.xlu0 %2185
    %2187 = vrot.lane.b32.xlu0 %v2035, 16
    %v2188 = vpop.permute.xlu0 %2187
    %2189 = vrot.lane.b32.xlu0 %v2036, 16
    %v2190 = vpop.permute.xlu0 %2189
    %2191 = vrot.lane.b32.xlu0 %v2037, 16
    %v2192 = vpop.permute.xlu0 %2191
    %2193 = vrot.lane.b32.xlu0 %v2038, 16
    %v2194 = vpop.permute.xlu0 %2193
    %2195 = vrot.lane.b32.xlu0 %v2039, 16
    %v2196 = vpop.permute.xlu0 %2195
    %2197 = vrot.lane.b32.xlu0 %v2040, 16
    %v2198 = vpop.permute.xlu0 %2197
    %2199 = vrot.lane.b32.xlu0 %v2041, 16
    %v2200 = vpop.permute.xlu0 %2199
    %2201 = vrot.lane.b32.xlu0 %v2042, 16
    %v2202 = vpop.permute.xlu0 %2201
    %2203 = vrot.lane.b32.xlu0 %v2043, 16
    %v2204 = vpop.permute.xlu0 %2203
    %2205 = vrot.lane.b32.xlu0 %v2044, 16
    %v2206 = vpop.permute.xlu0 %2205
    %2207 = vrot.lane.b32.xlu0 %v2045, 16
    %v2208 = vpop.permute.xlu0 %2207
    %2209 = vrot.lane.b32.xlu0 %v2046, 16
    %v2210 = vpop.permute.xlu0 %2209
    %2211 = vrot.lane.b32.xlu0 %v2047, 16
    %v2212 = vpop.permute.xlu0 %2211
    %2213 = vrot.lane.b32.xlu0 %v2048, 16
    %v2214 = vpop.permute.xlu0 %2213
    %2215 = vrot.lane.b32.xlu0 %v2049, 16
    %v2216 = vpop.permute.xlu0 %2215
    %2217 = vrot.lane.b32.xlu0 %v2050, 16
    %v2218 = vpop.permute.xlu0 %2217
    %2219 = vrot.lane.b32.xlu0 %v2051, 16
    %v2220 = vpop.permute.xlu0 %2219
    %2221 = vrot.lane.b32.xlu0 %v2052, 16
    %v2222 = vpop.permute.xlu0 %2221
    %2223 = vrot.lane.b32.xlu0 %v2053, 16
    %v2224 = vpop.permute.xlu0 %2223
    %2225 = vrot.lane.b32.xlu0 %v2054, 16
    %v2226 = vpop.permute.xlu0 %2225
    %2227 = vrot.lane.b32.xlu0 %v2055, 16
    %v2228 = vpop.permute.xlu0 %2227
    %2229 = vrot.lane.b32.xlu0 %v2056, 16
    %v2230 = vpop.permute.xlu0 %2229
    %2231 = vrot.lane.b32.xlu0 %v2057, 16
    %v2232 = vpop.permute.xlu0 %2231
    %2233 = vrot.lane.b32.xlu0 %v2058, 16
    %v2234 = vpop.permute.xlu0 %2233
    %2235 = vrot.lane.b32.xlu0 %v2059, 16
    %v2236 = vpop.permute.xlu0 %2235
    %2237 = vrot.lane.b32.xlu0 %v2060, 16
    %v2238 = vpop.permute.xlu0 %2237
    %2239 = vrot.lane.b32.xlu0 %v2061, 16
    %v2240 = vpop.permute.xlu0 %2239
    %2241 = vrot.lane.b32.xlu0 %v2062, 16
    %v2242 = vpop.permute.xlu0 %2241
    %2243 = vrot.lane.b32.xlu0 %v2063, 16
    %v2244 = vpop.permute.xlu0 %2243
    %2245 = vrot.lane.b32.xlu0 %v2064, 16
    %v2246 = vpop.permute.xlu0 %2245
    %2247 = vrot.lane.b32.xlu0 %v2065, 16
    %v2248 = vpop.permute.xlu0 %2247
    %2249 = vrot.lane.b32.xlu0 %v2066, 16
    %v2250 = vpop.permute.xlu0 %2249
    %2251 = vrot.lane.b32.xlu0 %v2067, 16
    %v2252 = vpop.permute.xlu0 %2251
    %2253 = vrot.lane.b32.xlu0 %v2068, 16
    %v2254 = vpop.permute.xlu0 %2253
    %2255 = vrot.lane.b32.xlu0 %v2069, 16
    %v2256 = vpop.permute.xlu0 %2255
    %2257 = vrot.lane.b32.xlu0 %v2070, 16
    %v2258 = vpop.permute.xlu0 %2257
    %2259 = vrot.lane.b32.xlu0 %v2071, 16
    %v2260 = vpop.permute.xlu0 %2259
    %2261 = vrot.lane.b32.xlu0 %v2072, 16
    %v2262 = vpop.permute.xlu0 %2261
    %2263 = vrot.lane.b32.xlu0 %v2073, 16
    %v2264 = vpop.permute.xlu0 %2263
    %2265 = vrot.lane.b32.xlu0 %v2074, 16
    %v2266 = vpop.permute.xlu0 %2265
    %vm2331 = vcmask 130048
    %v2332 = vsel %vm2331, %v1946, %v2140
    %v2333 = vsel %vm2331, %v1947, %v2142
    %v2334 = vsel %vm2331, %v1948, %v2144
    %v2335 = vsel %vm2331, %v1949, %v2146
    %v2336 = vsel %vm2331, %v1950, %v2148
    %v2337 = vsel %vm2331, %v1951, %v2150
    %v2338 = vsel %vm2331, %v1952, %v2152
    %v2339 = vsel %vm2331, %v1953, %v2154
    %v2340 = vsel %vm2331, %v1954, %v2156
    %v2341 = vsel %vm2331, %v1955, %v2158
    %v2342 = vsel %vm2331, %v1956, %v2160
    %v2343 = vsel %vm2331, %v1957, %v2162
    %v2344 = vsel %vm2331, %v1958, %v2164
    %v2345 = vsel %vm2331, %v1959, %v2166
    %v2346 = vsel %vm2331, %v1960, %v2168
    %v2347 = vsel %vm2331, %v1961, %v2170
    %v2348 = vsel %vm2331, %v1962, %v2172
    %v2349 = vsel %vm2331, %v1963, %v2174
    %v2350 = vsel %vm2331, %v1964, %v2176
    %v2351 = vsel %vm2331, %v1965, %v2178
    %v2352 = vsel %vm2331, %v1966, %v2180
    %v2353 = vsel %vm2331, %v1967, %v2182
    %v2354 = vsel %vm2331, %v1968, %v2184
    %v2355 = vsel %vm2331, %v1969, %v2186
    %v2356 = vsel %vm2331, %v1970, %v2188
    %v2357 = vsel %vm2331, %v1971, %v2190
    %v2358 = vsel %vm2331, %v1972, %v2192
    %v2359 = vsel %vm2331, %v1973, %v2194
    %v2360 = vsel %vm2331, %v1974, %v2196
    %v2361 = vsel %vm2331, %v1975, %v2198
    %v2362 = vsel %vm2331, %v1976, %v2200
    %v2363 = vsel %vm2331, %v1977, %v2202
    %v2364 = vsel %vm2331, %v1978, %v2204
    %v2365 = vsel %vm2331, %v1979, %v2206
    %v2366 = vsel %vm2331, %v1980, %v2208
    %v2367 = vsel %vm2331, %v1981, %v2210
    %v2368 = vsel %vm2331, %v1982, %v2212
    %v2369 = vsel %vm2331, %v1983, %v2214
    %v2370 = vsel %vm2331, %v1984, %v2216
    %v2371 = vsel %vm2331, %v1985, %v2218
    %v2372 = vsel %vm2331, %v1986, %v2220
    %v2373 = vsel %vm2331, %v1987, %v2222
    %v2374 = vsel %vm2331, %v1988, %v2224
    %v2375 = vsel %vm2331, %v1989, %v2226
    %v2376 = vsel %vm2331, %v1990, %v2228
    %v2377 = vsel %vm2331, %v1991, %v2230
    %v2378 = vsel %vm2331, %v1992, %v2232
    %v2379 = vsel %vm2331, %v1993, %v2234
    %v2380 = vsel %vm2331, %v1994, %v2236
    %v2381 = vsel %vm2331, %v1995, %v2238
    %v2382 = vsel %vm2331, %v1996, %v2240
    %v2383 = vsel %vm2331, %v1997, %v2242
    %v2384 = vsel %vm2331, %v1998, %v2244
    %v2385 = vsel %vm2331, %v1999, %v2246
    %v2386 = vsel %vm2331, %v2000, %v2248
    %v2387 = vsel %vm2331, %v2001, %v2250
    %v2388 = vsel %vm2331, %v2002, %v2252
    %v2389 = vsel %vm2331, %v2003, %v2254
    %v2390 = vsel %vm2331, %v2004, %v2256
    %v2391 = vsel %vm2331, %v2005, %v2258
    %v2392 = vsel %vm2331, %v2006, %v2260
    %v2393 = vsel %vm2331, %v2007, %v2262
    %v2394 = vsel %vm2331, %v2008, %v2264
    %v2395 = vsel %vm2331, %v2009, %v2266
    %v2396 = vld [vmem:[%s3] sm:$0xff]
    %v2397 = vld [vmem:[%s3 + $0x8] sm:$0xff]
    %v2398 = vld [vmem:[%s3 + $0x10] sm:$0xff]
    %v2399 = vld [vmem:[%s3 + $0x18] sm:$0xff]
    %v2400 = vld [vmem:[%s4] sm:$0x1]
    %v2402 = vperm.slane %v2400, 0
    %vm2404 = vcmask 261120
    %v2406 = vsel %vm2404, %v2332, 0
    %v2409 = vsel %vm2404, %v2333, 0
    %v2412 = vsel %vm2404, %v2334, 0
    %v2415 = vsel %vm2404, %v2335, 0
    %v2418 = vsel %vm2404, %v2336, 0
    %v2421 = vsel %vm2404, %v2337, 0
    %v2424 = vsel %vm2404, %v2338, 0
    %v2427 = vsel %vm2404, %v2339, 0
    %v2430 = vsel %vm2404, %v2340, 0
    %v2433 = vsel %vm2404, %v2341, 0
    %v2436 = vsel %vm2404, %v2342, 0
    %v2439 = vsel %vm2404, %v2343, 0
    %v2442 = vsel %vm2404, %v2344, 0
    %v2445 = vsel %vm2404, %v2345, 0
    %v2448 = vsel %vm2404, %v2346, 0
    %v2451 = vsel %vm2404, %v2347, 0
    %v2454 = vsel %vm2404, %v2348, 0
    %v2457 = vsel %vm2404, %v2349, 0
    %v2460 = vsel %vm2404, %v2350, 0
    %v2463 = vsel %vm2404, %v2351, 0
    %v2466 = vsel %vm2404, %v2352, 0
    %v2469 = vsel %vm2404, %v2353, 0
    %v2472 = vsel %vm2404, %v2354, 0
    %v2475 = vsel %vm2404, %v2355, 0
    %v2478 = vsel %vm2404, %v2356, 0
    %v2481 = vsel %vm2404, %v2357, 0
    %v2484 = vsel %vm2404, %v2358, 0
    %v2487 = vsel %vm2404, %v2359, 0
    %v2490 = vsel %vm2404, %v2360, 0
    %v2493 = vsel %vm2404, %v2361, 0
    %v2496 = vsel %vm2404, %v2362, 0
    %v2499 = vsel %vm2404, %v2363, 0
    %v2502 = vsel %vm2404, %v2364, 0
    %v2505 = vsel %vm2404, %v2365, 0
    %v2508 = vsel %vm2404, %v2366, 0
    %v2511 = vsel %vm2404, %v2367, 0
    %v2514 = vsel %vm2404, %v2368, 0
    %v2517 = vsel %vm2404, %v2369, 0
    %v2520 = vsel %vm2404, %v2370, 0
    %v2523 = vsel %vm2404, %v2371, 0
    %v2526 = vsel %vm2404, %v2372, 0
    %v2529 = vsel %vm2404, %v2373, 0
    %v2532 = vsel %vm2404, %v2374, 0
    %v2535 = vsel %vm2404, %v2375, 0
    %v2538 = vsel %vm2404, %v2376, 0
    %v2541 = vsel %vm2404, %v2377, 0
    %v2544 = vsel %vm2404, %v2378, 0
    %v2547 = vsel %vm2404, %v2379, 0
    %v2550 = vsel %vm2404, %v2380, 0
    %v2553 = vsel %vm2404, %v2381, 0
    %v2556 = vsel %vm2404, %v2382, 0
    %v2559 = vsel %vm2404, %v2383, 0
    %v2562 = vsel %vm2404, %v2384, 0
    %v2565 = vsel %vm2404, %v2385, 0
    %v2568 = vsel %vm2404, %v2386, 0
    %v2571 = vsel %vm2404, %v2387, 0
    %v2574 = vsel %vm2404, %v2388, 0
    %v2577 = vsel %vm2404, %v2389, 0
    %v2580 = vsel %vm2404, %v2390, 0
    %v2583 = vsel %vm2404, %v2391, 0
    %v2586 = vsel %vm2404, %v2392, 0
    %v2589 = vsel %vm2404, %v2393, 0
    %v2592 = vsel %vm2404, %v2394, 0
    %v2595 = vsel %vm2404, %v2395, 0
    %2597 = vmatpush.msra.mxu0 0.0
    %2598 = vmatpush.msra.mxu0 0.0
    %2599 = vmatpush.msra.mxu0 0.0
    %2600 = vmatpush.msra.mxu0 0.0
    %2601 = vmatpush.msra.mxu0 0.0
    %2602 = vmatpush.msra.mxu0 0.0
    %2603 = vmatpush.msra.mxu0 0.0
    %2604 = vmatpush.msra.mxu0 0.0
    %2605 = vmatpush.msra.mxu0 0.0
    %2606 = vmatpush.msra.mxu0 0.0
    %2607 = vmatpush.msra.mxu0 0.0
    %2608 = vmatpush.msra.mxu0 0.0
    %2609 = vmatpush.msra.mxu0 %v2399
    %2610 = vmatpush.msra.mxu0 %v2398
    %2611 = vmatpush.msra.mxu0 %v2397
    %2612 = vmatpush.msra.mxu0 %v2396
    %2613 = vmatmul.f32.gmra.mxu0 %v2406
    %v2614 = vpop.f32.mrf.mxu0
    %v2615 = vadd.f32 %v2402, %v2614
    %2616 = vmatmul.f32.gmra.mxu0 %v2409
    %v2617 = vpop.f32.mrf.mxu0
    %v2618 = vadd.f32 %v2402, %v2617
    %2619 = vmatmul.f32.gmra.mxu0 %v2412
    %v2620 = vpop.f32.mrf.mxu0
    %v2621 = vadd.f32 %v2402, %v2620
    %2622 = vmatmul.f32.gmra.mxu0 %v2415
    %v2623 = vpop.f32.mrf.mxu0
    %v2624 = vadd.f32 %v2402, %v2623
    %2625 = vmatmul.f32.gmra.mxu0 %v2418
    %v2626 = vpop.f32.mrf.mxu0
    %v2627 = vadd.f32 %v2402, %v2626
    %2628 = vmatmul.f32.gmra.mxu0 %v2421
    %v2629 = vpop.f32.mrf.mxu0
    %v2630 = vadd.f32 %v2402, %v2629
    %2631 = vmatmul.f32.gmra.mxu0 %v2424
    %v2632 = vpop.f32.mrf.mxu0
    %v2633 = vadd.f32 %v2402, %v2632
    %2634 = vmatmul.f32.gmra.mxu0 %v2427
    %v2635 = vpop.f32.mrf.mxu0
    %v2636 = vadd.f32 %v2402, %v2635
    %2637 = vmatmul.f32.gmra.mxu0 %v2430
    %v2638 = vpop.f32.mrf.mxu0
    %v2639 = vadd.f32 %v2402, %v2638
    %2640 = vmatmul.f32.gmra.mxu0 %v2433
    %v2641 = vpop.f32.mrf.mxu0
    %v2642 = vadd.f32 %v2402, %v2641
    %2643 = vmatmul.f32.gmra.mxu0 %v2436
    %v2644 = vpop.f32.mrf.mxu0
    %v2645 = vadd.f32 %v2402, %v2644
    %2646 = vmatmul.f32.gmra.mxu0 %v2439
    %v2647 = vpop.f32.mrf.mxu0
    %v2648 = vadd.f32 %v2402, %v2647
    %2649 = vmatmul.f32.gmra.mxu0 %v2442
    %v2650 = vpop.f32.mrf.mxu0
    %v2651 = vadd.f32 %v2402, %v2650
    %2652 = vmatmul.f32.gmra.mxu0 %v2445
    %v2653 = vpop.f32.mrf.mxu0
    %v2654 = vadd.f32 %v2402, %v2653
    %2655 = vmatmul.f32.gmra.mxu0 %v2448
    %v2656 = vpop.f32.mrf.mxu0
    %v2657 = vadd.f32 %v2402, %v2656
    %2658 = vmatmul.f32.gmra.mxu0 %v2451
    %v2659 = vpop.f32.mrf.mxu0
    %v2660 = vadd.f32 %v2402, %v2659
    %2661 = vmatmul.f32.gmra.mxu0 %v2454
    %v2662 = vpop.f32.mrf.mxu0
    %v2663 = vadd.f32 %v2402, %v2662
    %2664 = vmatmul.f32.gmra.mxu0 %v2457
    %v2665 = vpop.f32.mrf.mxu0
    %v2666 = vadd.f32 %v2402, %v2665
    %2667 = vmatmul.f32.gmra.mxu0 %v2460
    %v2668 = vpop.f32.mrf.mxu0
    %v2669 = vadd.f32 %v2402, %v2668
    %2670 = vmatmul.f32.gmra.mxu0 %v2463
    %v2671 = vpop.f32.mrf.mxu0
    %v2672 = vadd.f32 %v2402, %v2671
    %2673 = vmatmul.f32.gmra.mxu0 %v2466
    %v2674 = vpop.f32.mrf.mxu0
    %v2675 = vadd.f32 %v2402, %v2674
    %2676 = vmatmul.f32.gmra.mxu0 %v2469
    %v2677 = vpop.f32.mrf.mxu0
    %v2678 = vadd.f32 %v2402, %v2677
    %2679 = vmatmul.f32.gmra.mxu0 %v2472
    %v2680 = vpop.f32.mrf.mxu0
    %v2681 = vadd.f32 %v2402, %v2680
    %2682 = vmatmul.f32.gmra.mxu0 %v2475
    %v2683 = vpop.f32.mrf.mxu0
    %v2684 = vadd.f32 %v2402, %v2683
    %2685 = vmatmul.f32.gmra.mxu0 %v2478
    %v2686 = vpop.f32.mrf.mxu0
    %v2687 = vadd.f32 %v2402, %v2686
    %2688 = vmatmul.f32.gmra.mxu0 %v2481
    %v2689 = vpop.f32.mrf.mxu0
    %v2690 = vadd.f32 %v2402, %v2689
    %2691 = vmatmul.f32.gmra.mxu0 %v2484
    %v2692 = vpop.f32.mrf.mxu0
    %v2693 = vadd.f32 %v2402, %v2692
    %2694 = vmatmul.f32.gmra.mxu0 %v2487
    %v2695 = vpop.f32.mrf.mxu0
    %v2696 = vadd.f32 %v2402, %v2695
    %2697 = vmatmul.f32.gmra.mxu0 %v2490
    %v2698 = vpop.f32.mrf.mxu0
    %v2699 = vadd.f32 %v2402, %v2698
    %2700 = vmatmul.f32.gmra.mxu0 %v2493
    %v2701 = vpop.f32.mrf.mxu0
    %v2702 = vadd.f32 %v2402, %v2701
    %2703 = vmatmul.f32.gmra.mxu0 %v2496
    %v2704 = vpop.f32.mrf.mxu0
    %v2705 = vadd.f32 %v2402, %v2704
    %2706 = vmatmul.f32.gmra.mxu0 %v2499
    %v2707 = vpop.f32.mrf.mxu0
    %v2708 = vadd.f32 %v2402, %v2707
    %2709 = vmatmul.f32.gmra.mxu0 %v2502
    %v2710 = vpop.f32.mrf.mxu0
    %v2711 = vadd.f32 %v2402, %v2710
    %2712 = vmatmul.f32.gmra.mxu0 %v2505
    %v2713 = vpop.f32.mrf.mxu0
    %v2714 = vadd.f32 %v2402, %v2713
    %2715 = vmatmul.f32.gmra.mxu0 %v2508
    %v2716 = vpop.f32.mrf.mxu0
    %v2717 = vadd.f32 %v2402, %v2716
    %2718 = vmatmul.f32.gmra.mxu0 %v2511
    %v2719 = vpop.f32.mrf.mxu0
    %v2720 = vadd.f32 %v2402, %v2719
    %2721 = vmatmul.f32.gmra.mxu0 %v2514
    %v2722 = vpop.f32.mrf.mxu0
    %v2723 = vadd.f32 %v2402, %v2722
    %2724 = vmatmul.f32.gmra.mxu0 %v2517
    %v2725 = vpop.f32.mrf.mxu0
    %v2726 = vadd.f32 %v2402, %v2725
    %2727 = vmatmul.f32.gmra.mxu0 %v2520
    %v2728 = vpop.f32.mrf.mxu0
    %v2729 = vadd.f32 %v2402, %v2728
    %2730 = vmatmul.f32.gmra.mxu0 %v2523
    %v2731 = vpop.f32.mrf.mxu0
    %v2732 = vadd.f32 %v2402, %v2731
    %2733 = vmatmul.f32.gmra.mxu0 %v2526
    %v2734 = vpop.f32.mrf.mxu0
    %v2735 = vadd.f32 %v2402, %v2734
    %2736 = vmatmul.f32.gmra.mxu0 %v2529
    %v2737 = vpop.f32.mrf.mxu0
    %v2738 = vadd.f32 %v2402, %v2737
    %2739 = vmatmul.f32.gmra.mxu0 %v2532
    %v2740 = vpop.f32.mrf.mxu0
    %v2741 = vadd.f32 %v2402, %v2740
    %2742 = vmatmul.f32.gmra.mxu0 %v2535
    %v2743 = vpop.f32.mrf.mxu0
    %v2744 = vadd.f32 %v2402, %v2743
    %2745 = vmatmul.f32.gmra.mxu0 %v2538
    %v2746 = vpop.f32.mrf.mxu0
    %v2747 = vadd.f32 %v2402, %v2746
    %2748 = vmatmul.f32.gmra.mxu0 %v2541
    %v2749 = vpop.f32.mrf.mxu0
    %v2750 = vadd.f32 %v2402, %v2749
    %2751 = vmatmul.f32.gmra.mxu0 %v2544
    %v2752 = vpop.f32.mrf.mxu0
    %v2753 = vadd.f32 %v2402, %v2752
    %2754 = vmatmul.f32.gmra.mxu0 %v2547
    %v2755 = vpop.f32.mrf.mxu0
    %v2756 = vadd.f32 %v2402, %v2755
    %2757 = vmatmul.f32.gmra.mxu0 %v2550
    %v2758 = vpop.f32.mrf.mxu0
    %v2759 = vadd.f32 %v2402, %v2758
    %2760 = vmatmul.f32.gmra.mxu0 %v2553
    %v2761 = vpop.f32.mrf.mxu0
    %v2762 = vadd.f32 %v2402, %v2761
    %2763 = vmatmul.f32.gmra.mxu0 %v2556
    %v2764 = vpop.f32.mrf.mxu0
    %v2765 = vadd.f32 %v2402, %v2764
    %2766 = vmatmul.f32.gmra.mxu0 %v2559
    %v2767 = vpop.f32.mrf.mxu0
    %v2768 = vadd.f32 %v2402, %v2767
    %2769 = vmatmul.f32.gmra.mxu0 %v2562
    %v2770 = vpop.f32.mrf.mxu0
    %v2771 = vadd.f32 %v2402, %v2770
    %2772 = vmatmul.f32.gmra.mxu0 %v2565
    %v2773 = vpop.f32.mrf.mxu0
    %v2774 = vadd.f32 %v2402, %v2773
    %2775 = vmatmul.f32.gmra.mxu0 %v2568
    %v2776 = vpop.f32.mrf.mxu0
    %v2777 = vadd.f32 %v2402, %v2776
    %2778 = vmatmul.f32.gmra.mxu0 %v2571
    %v2779 = vpop.f32.mrf.mxu0
    %v2780 = vadd.f32 %v2402, %v2779
    %2781 = vmatmul.f32.gmra.mxu0 %v2574
    %v2782 = vpop.f32.mrf.mxu0
    %v2783 = vadd.f32 %v2402, %v2782
    %2784 = vmatmul.f32.gmra.mxu0 %v2577
    %v2785 = vpop.f32.mrf.mxu0
    %v2786 = vadd.f32 %v2402, %v2785
    %2787 = vmatmul.f32.gmra.mxu0 %v2580
    %v2788 = vpop.f32.mrf.mxu0
    %v2789 = vadd.f32 %v2402, %v2788
    %2790 = vmatmul.f32.gmra.mxu0 %v2583
    %v2791 = vpop.f32.mrf.mxu0
    %v2792 = vadd.f32 %v2402, %v2791
    %2793 = vmatmul.f32.gmra.mxu0 %v2586
    %v2794 = vpop.f32.mrf.mxu0
    %v2795 = vadd.f32 %v2402, %v2794
    %2796 = vmatmul.f32.gmra.mxu0 %v2589
    %v2797 = vpop.f32.mrf.mxu0
    %v2798 = vadd.f32 %v2402, %v2797
    %2799 = vmatmul.f32.gmra.mxu0 %v2592
    %v2800 = vpop.f32.mrf.mxu0
    %v2801 = vadd.f32 %v2402, %v2800
    %2802 = vmatmul.f32.gmra.mxu0 %v2595
    %v2803 = vpop.f32.mrf.mxu0
    %v2804 = vadd.f32 %v2402, %v2803
    %2805 = vdwg.mxu0
    %v2806 = vmax.f32 %v2615, 0.0
    %v2807 = vmax.f32 %v2618, 0.0
    %v2808 = vmax.f32 %v2621, 0.0
    %v2809 = vmax.f32 %v2624, 0.0
    %v2810 = vmax.f32 %v2627, 0.0
    %v2811 = vmax.f32 %v2630, 0.0
    %v2812 = vmax.f32 %v2633, 0.0
    %v2813 = vmax.f32 %v2636, 0.0
    %v2814 = vmax.f32 %v2639, 0.0
    %v2815 = vmax.f32 %v2642, 0.0
    %v2816 = vmax.f32 %v2645, 0.0
    %v2817 = vmax.f32 %v2648, 0.0
    %v2818 = vmax.f32 %v2651, 0.0
    %v2819 = vmax.f32 %v2654, 0.0
    %v2820 = vmax.f32 %v2657, 0.0
    %v2821 = vmax.f32 %v2660, 0.0
    %v2822 = vmax.f32 %v2663, 0.0
    %v2823 = vmax.f32 %v2666, 0.0
    %v2824 = vmax.f32 %v2669, 0.0
    %v2825 = vmax.f32 %v2672, 0.0
    %v2826 = vmax.f32 %v2675, 0.0
    %v2827 = vmax.f32 %v2678, 0.0
    %v2828 = vmax.f32 %v2681, 0.0
    %v2829 = vmax.f32 %v2684, 0.0
    %v2830 = vmax.f32 %v2687, 0.0
    %v2831 = vmax.f32 %v2690, 0.0
    %v2832 = vmax.f32 %v2693, 0.0
    %v2833 = vmax.f32 %v2696, 0.0
    %v2834 = vmax.f32 %v2699, 0.0
    %v2835 = vmax.f32 %v2702, 0.0
    %v2836 = vmax.f32 %v2705, 0.0
    %v2837 = vmax.f32 %v2708, 0.0
    %v2838 = vmax.f32 %v2711, 0.0
    %v2839 = vmax.f32 %v2714, 0.0
    %v2840 = vmax.f32 %v2717, 0.0
    %v2841 = vmax.f32 %v2720, 0.0
    %v2842 = vmax.f32 %v2723, 0.0
    %v2843 = vmax.f32 %v2726, 0.0
    %v2844 = vmax.f32 %v2729, 0.0
    %v2845 = vmax.f32 %v2732, 0.0
    %v2846 = vmax.f32 %v2735, 0.0
    %v2847 = vmax.f32 %v2738, 0.0
    %v2848 = vmax.f32 %v2741, 0.0
    %v2849 = vmax.f32 %v2744, 0.0
    %v2850 = vmax.f32 %v2747, 0.0
    %v2851 = vmax.f32 %v2750, 0.0
    %v2852 = vmax.f32 %v2753, 0.0
    %v2853 = vmax.f32 %v2756, 0.0
    %v2854 = vmax.f32 %v2759, 0.0
    %v2855 = vmax.f32 %v2762, 0.0
    %v2856 = vmax.f32 %v2765, 0.0
    %v2857 = vmax.f32 %v2768, 0.0
    %v2858 = vmax.f32 %v2771, 0.0
    %v2859 = vmax.f32 %v2774, 0.0
    %v2860 = vmax.f32 %v2777, 0.0
    %v2861 = vmax.f32 %v2780, 0.0
    %v2862 = vmax.f32 %v2783, 0.0
    %v2863 = vmax.f32 %v2786, 0.0
    %v2864 = vmax.f32 %v2789, 0.0
    %v2865 = vmax.f32 %v2792, 0.0
    %v2866 = vmax.f32 %v2795, 0.0
    %v2867 = vmax.f32 %v2798, 0.0
    %v2868 = vmax.f32 %v2801, 0.0
    %v2869 = vmax.f32 %v2804, 0.0
    %2870 = vst [vmem:[#allocation2] sm:$0xff] %v2806
    %2871 = vst [vmem:[#allocation2 + $0x8] sm:$0xff] %v2807
    %2872 = vst [vmem:[#allocation2 + $0x10] sm:$0xff] %v2808
    %2873 = vst [vmem:[#allocation2 + $0x18] sm:$0xff] %v2809
    %2874 = vst [vmem:[#allocation2 + $0x20] sm:$0xff] %v2810
    %2875 = vst [vmem:[#allocation2 + $0x28] sm:$0xff] %v2811
    %2876 = vst [vmem:[#allocation2 + $0x30] sm:$0xff] %v2812
    %2877 = vst [vmem:[#allocation2 + $0x38] sm:$0xff] %v2813
    %2878 = vst [vmem:[#allocation2 + $0x40] sm:$0xff] %v2814
    %2879 = vst [vmem:[#allocation2 + $0x48] sm:$0xff] %v2815
    %2880 = vst [vmem:[#allocation2 + $0x50] sm:$0xff] %v2816
    %2881 = vst [vmem:[#allocation2 + $0x58] sm:$0xff] %v2817
    %2882 = vst [vmem:[#allocation2 + $0x60] sm:$0xff] %v2818
    %2883 = vst [vmem:[#allocation2 + $0x68] sm:$0xff] %v2819
    %2884 = vst [vmem:[#allocation2 + $0x70] sm:$0xff] %v2820
    %2885 = vst [vmem:[#allocation2 + $0x78] sm:$0xff] %v2821
    %2886 = vst [vmem:[#allocation2 + $0x80] sm:$0xff] %v2822
    %2887 = vst [vmem:[#allocation2 + $0x88] sm:$0xff] %v2823
    %2888 = vst [vmem:[#allocation2 + $0x90] sm:$0xff] %v2824
    %2889 = vst [vmem:[#allocation2 + $0x98] sm:$0xff] %v2825
    %2890 = vst [vmem:[#allocation2 + $0xa0] sm:$0xff] %v2826
    %2891 = vst [vmem:[#allocation2 + $0xa8] sm:$0xff] %v2827
    %2892 = vst [vmem:[#allocation2 + $0xb0] sm:$0xff] %v2828
    %2893 = vst [vmem:[#allocation2 + $0xb8] sm:$0xff] %v2829
    %2894 = vst [vmem:[#allocation2 + $0xc0] sm:$0xff] %v2830
    %2895 = vst [vmem:[#allocation2 + $0xc8] sm:$0xff] %v2831
    %2896 = vst [vmem:[#allocation2 + $0xd0] sm:$0xff] %v2832
    %2897 = vst [vmem:[#allocation2 + $0xd8] sm:$0xff] %v2833
    %2898 = vst [vmem:[#allocation2 + $0xe0] sm:$0xff] %v2834
    %2899 = vst [vmem:[#allocation2 + $0xe8] sm:$0xff] %v2835
    %2900 = vst [vmem:[#allocation2 + $0xf0] sm:$0xff] %v2836
    %2901 = vst [vmem:[#allocation2 + $0xf8] sm:$0xff] %v2837
    %2902 = vst [vmem:[#allocation2 + $0x100] sm:$0xff] %v2838
    %2903 = vst [vmem:[#allocation2 + $0x108] sm:$0xff] %v2839
    %2904 = vst [vmem:[#allocation2 + $0x110] sm:$0xff] %v2840
    %2905 = vst [vmem:[#allocation2 + $0x118] sm:$0xff] %v2841
    %2906 = vst [vmem:[#allocation2 + $0x120] sm:$0xff] %v2842
    %2907 = vst [vmem:[#allocation2 + $0x128] sm:$0xff] %v2843
    %2908 = vst [vmem:[#allocation2 + $0x130] sm:$0xff] %v2844
    %2909 = vst [vmem:[#allocation2 + $0x138] sm:$0xff] %v2845
    %2910 = vst [vmem:[#allocation2 + $0x140] sm:$0xff] %v2846
    %2911 = vst [vmem:[#allocation2 + $0x148] sm:$0xff] %v2847
    %2912 = vst [vmem:[#allocation2 + $0x150] sm:$0xff] %v2848
    %2913 = vst [vmem:[#allocation2 + $0x158] sm:$0xff] %v2849
    %2914 = vst [vmem:[#allocation2 + $0x160] sm:$0xff] %v2850
    %2915 = vst [vmem:[#allocation2 + $0x168] sm:$0xff] %v2851
    %2916 = vst [vmem:[#allocation2 + $0x170] sm:$0xff] %v2852
    %2917 = vst [vmem:[#allocation2 + $0x178] sm:$0xff] %v2853
    %2918 = vst [vmem:[#allocation2 + $0x180] sm:$0xff] %v2854
    %2919 = vst [vmem:[#allocation2 + $0x188] sm:$0xff] %v2855
    %2920 = vst [vmem:[#allocation2 + $0x190] sm:$0xff] %v2856
    %2921 = vst [vmem:[#allocation2 + $0x198] sm:$0xff] %v2857
    %2922 = vst [vmem:[#allocation2 + $0x1a0] sm:$0xff] %v2858
    %2923 = vst [vmem:[#allocation2 + $0x1a8] sm:$0xff] %v2859
    %2924 = vst [vmem:[#allocation2 + $0x1b0] sm:$0xff] %v2860
    %2925 = vst [vmem:[#allocation2 + $0x1b8] sm:$0xff] %v2861
    %2926 = vst [vmem:[#allocation2 + $0x1c0] sm:$0xff] %v2862
    %2927 = vst [vmem:[#allocation2 + $0x1c8] sm:$0xff] %v2863
    %2928 = vst [vmem:[#allocation2 + $0x1d0] sm:$0xff] %v2864
    %2929 = vst [vmem:[#allocation2 + $0x1d8] sm:$0xff] %v2865
    %2930 = vst [vmem:[#allocation2 + $0x1e0] sm:$0xff] %v2866
    %2931 = vst [vmem:[#allocation2 + $0x1e8] sm:$0xff] %v2867
    %2932 = vst [vmem:[#allocation2 + $0x1f0] sm:$0xff] %v2868
    %2933 = vst [vmem:[#allocation2 + $0x1f8] sm:$0xff] %v2869
    // Predicated region
    $region22: #{tpu_custom_call.1} parent=1 // pred_check
      _
    $region23: #{tpu_custom_call.1} parent=1 // pred_check_branch
      %2935 = sbr.rel (0) target = $region25
    $region24: #{tpu_custom_call.1} parent=1 // pred_region
      %2937 = vsyncadd [#allocation3], 0
      %s2938 = sshll.u32 [#allocation2], 4
      %s2939 = int_to_ptr.vmem [resolvable:$true] %s2938
      %s2940 = sshll.u32 %s5, 4
      %s2941 = int_to_ptr.hbm [resolvable:$true] %s2940
      %2946 = dma.vmem_to_hbm [thread:$0]  %s2939, 8192, %s2941, [#allocation3], 128, 128, 8
    $region25: #{tpu_custom_call.1} parent=1 // pred_fallthru
      _
    // Predicated region
    $region26: #{tpu_custom_call.1} parent=1 // pred_check
      _
    $region27: #{tpu_custom_call.1} parent=1 // pred_check_branch
      %2948 = sbr.rel (0) target = $region29
    $region28: #{tpu_custom_call.1} parent=1 // pred_region
      %2950 = dma.done [#allocation3], 8192
    $region29: #{tpu_custom_call.1} parent=1 // pred_fallthru
      _
    %2951 = vsyncpa [#allocation3], 1

</llo_original>
